<compile_context>
chip_gen: v6e
topology: v6e:2x2x1
jax: 0.10.0
libtpu: 0.0.40
codegen_flags: <defaults>
</compile_context>

<pallas_src>
import functools

import jax
import jax.numpy as jnp
from jax.experimental import pallas as pl
from jax.experimental.pallas import tpu as pltpu


def _kan_linear_kernel(x_ref, grid_ref, w_ref, o_ref, *, spline_order: int):
    # x_ref:    (TB, I)              input tile
    # grid_ref: (n_knots, I)         knot t for every input feature (= PyTorch grid.T)
    # w_ref:    (I*(C+1), O)         fused [base | spline] weight (resident)
    # o_ref:    (TB, O)              output tile
    x = x_ref[...].astype(jnp.float32)                       # (TB, I)
    g = grid_ref[...].astype(jnp.float32)                    # (n_knots, I)
    n_knots = g.shape[0]

    # SiLU base activation: x * sigmoid(x)   (exp on the EUP).
    silu_x = x * (1.0 / (1.0 + jnp.exp(-x)))                 # (TB, I)

    # Degree-0 B-spline indicator bases, one (TB, I) slab per knot interval.
    bases = [
        ((x >= g[t:t + 1, :]) & (x < g[t + 1:t + 2, :])).astype(jnp.float32)
        for t in range(n_knots - 1)
    ]
    # Cox-de Boor recursion, statically unrolled.  Denominators are
    # x-independent (1, I) vectors -> reciprocal once, then multiply.
    for k in range(1, spline_order + 1):
        new_bases = []
        for t in range(len(bases) - 1):
            inv1 = 1.0 / (g[t + k:t + k + 1, :] - g[t:t + 1, :])          # (1, I)
            inv2 = 1.0 / (g[t + k + 1:t + k + 2, :] - g[t + 1:t + 2, :])  # (1, I)
            w1 = (x - g[t:t + 1, :]) * inv1                               # (TB, I)
            w2 = (g[t + k + 1:t + k + 2, :] - x) * inv2                   # (TB, I)
            new_bases.append(w1 * bases[t] + w2 * bases[t + 1])
        bases = new_bases
    # len(bases) == grid_size + spline_order == C

    # Single fused MXU matmul: [silu(x) | bases] @ [base_weight.T ; spline_w].
    feats = jnp.concatenate([silu_x] + bases, axis=-1)        # (TB, I*(C+1))
    out = jnp.dot(feats, w_ref[...].astype(jnp.float32),
                  preferred_element_type=jnp.float32)         # (TB, O) f32 acc
    o_ref[...] = out.astype(o_ref.dtype)


def kan_linear_forward(x, grid_feat, base_weight, spline_weight,
                       spline_scaler=None, *, spline_order: int, tb: int = 128):
    """KANLinear.forward.

    x:             (B, in_features)
    grid_feat:     (in_features, grid_size + 2*spline_order + 1)   module `grid` buffer
    base_weight:   (out_features, in_features)
    spline_weight: (out_features, in_features, grid_size + spline_order)
    spline_scaler: (out_features, in_features) or None
    Returns (B, out_features).
    """
    out_f, in_f, n_coeff = spline_weight.shape
    assert x.ndim == 2 and x.shape[1] == in_f

    # --- wrapper-side weight fusion (layout plumbing, done once) ------------
    ssw = spline_weight
    if spline_scaler is not None:
        ssw = ssw * spline_scaler[:, :, None]                  # (O, I, C)
    # Kernel feature order: [silu(x) (I cols)] ++ [bases_t (I cols) for t=0..C-1]
    # so spline rows are indexed t*I + i  ->  transpose to (C, I, O) and flatten.
    w_spline = jnp.transpose(ssw, (2, 1, 0)).reshape(n_coeff * in_f, out_f)
    w_fused = jnp.concatenate([jnp.transpose(base_weight, (1, 0)), w_spline],
                              axis=0).astype(jnp.float32)      # (I*(C+1), O)

    grid_t = jnp.transpose(grid_feat, (1, 0)).astype(jnp.float32)  # (n_knots, I)
    n_knots = grid_t.shape[0]
    k_fused = w_fused.shape[0]

    # --- pad ragged batch to a multiple of the batch tile --------------------
    b = x.shape[0]
    b_pad = pl.cdiv(b, tb) * tb
    x2d = x if b_pad == b else jnp.pad(x, ((0, b_pad - b), (0, 0)))

    kernel = functools.partial(_kan_linear_kernel, spline_order=spline_order)

    out = pl.pallas_call(
        kernel,
        out_shape=jax.ShapeDtypeStruct((b_pad, out_f), x.dtype),
        grid_spec=pltpu.PrefetchScalarGridSpec(
            num_scalar_prefetch=0,
            grid=(b_pad // tb,),
            in_specs=[
                pl.BlockSpec((tb, in_f), lambda i: (i, 0)),
                pl.BlockSpec((n_knots, in_f), lambda i: (0, 0)),
                pl.BlockSpec((k_fused, out_f), lambda i: (0, 0)),
            ],
            out_specs=pl.BlockSpec((tb, out_f), lambda i: (i, 0)),
        ),
        compiler_params=pltpu.CompilerParams(
            dimension_semantics=("parallel",),
            vmem_limit_bytes=32 * 1024 * 1024),
    )(x2d, grid_t, w_fused)
    return out[:b]


# ---------------------------- pure-JAX reference ----------------------------
def _b_splines_ref(x, grid_feat, spline_order):
    x_e = x[:, :, None]                                       # (B, I, 1)
    g = grid_feat[None, :, :]                                  # (1, I, n_knots)
    bases = ((x_e >= g[:, :, :-1]) & (x_e < g[:, :, 1:])).astype(x.dtype)
    for k in range(1, spline_order + 1):
        bases = ((x_e - g[:, :, :-(k + 1)])
                 / (g[:, :, k:-1] - g[:, :, :-(k + 1)]) * bases[:, :, :-1]
                 + (g[:, :, k + 1:] - x_e)
                 / (g[:, :, k + 1:] - g[:, :, 1:-k]) * bases[:, :, 1:])
    return bases                                               # (B, I, C)


def _reference(x, grid_feat, base_weight, spline_weight, spline_scaler,
               *, spline_order):
    silu_x = x * jax.nn.sigmoid(x)
    base_out = silu_x @ base_weight.T
    bases = _b_splines_ref(x, grid_feat, spline_order)
    ssw = spline_weight * spline_scaler[:, :, None]
    spline_out = bases.reshape(x.shape[0], -1) @ ssw.reshape(ssw.shape[0], -1).T
    return base_out + spline_out


if __name__ == "__main__":
    in_features = 32
    out_features = 128
    grid_size = 5
    spline_order = 3
    batch = 256                     # -> 2 grid steps of TB=128 (keeps both v7x TCs busy)

    key = jax.random.PRNGKey(0)
    kx, kb, ks, kc = jax.random.split(key, 4)

    # Grid buffer exactly as the module builds it (identical per-feature rows,
    # grid_range = [-1, 1]).
    h = 2.0 / grid_size
    knots = jnp.arange(-spline_order, grid_size + spline_order + 1,
                       dtype=jnp.float32) * h - 1.0            # (G + 2K + 1,)
    grid_feat = jnp.tile(knots[None, :], (in_features, 1))      # (I, n_knots)

    # Deterministic parameters with the module's shapes.
    base_weight = 0.1 * jax.random.normal(
        kb, (out_features, in_features), dtype=jnp.float32)
    spline_weight = 0.1 * jax.random.normal(
        ks, (out_features, in_features, grid_size + spline_order),
        dtype=jnp.float32)
    spline_scaler = 1.0 + 0.1 * jax.random.normal(
        kc, (out_features, in_features), dtype=jnp.float32)

    x = jax.random.normal(kx, (batch, in_features), dtype=jnp.float32)

    out = kan_linear_forward(x, grid_feat, base_weight, spline_weight,
                             spline_scaler, spline_order=spline_order)
    out = jax.block_until_ready(out)

    ref = _reference(x, grid_feat, base_weight, spline_weight, spline_scaler,
                     spline_order=spline_order)
    assert out.shape == (batch, out_features)
    err = jnp.max(jnp.abs(out - ref))
    assert err < 2e-4, f"max abs error {err}"

    print("KERNEL_OK")
</pallas_src>

<mosaic_0001>
module attributes {stable_mosaic.version = 11 : i64} {
  func.func @_kan_linear_kernel(%arg0: i32, %arg1: memref<128x32xf32, #tpu.memory_space<vmem>>, %arg2: memref<12x32xf32, #tpu.memory_space<vmem>>, %arg3: memref<288x128xf32, #tpu.memory_space<vmem>>, %arg4: memref<128x128xf32, #tpu.memory_space<vmem>>) attributes {dimension_semantics = [#tpu.dimension_semantics<parallel>], iteration_bounds = array<i64: 2>, scalar_prefetch = 0 : i64, scratch_operands = 0 : i64, tpu.core_type = #tpu.core_type<tc>, window_params = [{transform_indices = @transform_0, window_bounds = array<i64: 128, 32>}, {pipeline_mode = #tpu.pipeline_mode<synchronous>, transform_indices = @transform_1, window_bounds = array<i64: 12, 32>}, {pipeline_mode = #tpu.pipeline_mode<synchronous>, transform_indices = @transform_2, window_bounds = array<i64: 288, 128>}, {transform_indices = @transform_3, window_bounds = array<i64: 128, 128>}]} {
    %c0 = arith.constant 0 : index
    %c0_0 = arith.constant 0 : index
    %0 = vector.load %arg1[%c0, %c0_0] : memref<128x32xf32, #tpu.memory_space<vmem>>, vector<128x32xf32>
    %c0_1 = arith.constant 0 : index
    %c0_2 = arith.constant 0 : index
    %1 = vector.load %arg2[%c0_1, %c0_2] : memref<12x32xf32, #tpu.memory_space<vmem>>, vector<12x32xf32>
    %cst = arith.constant 0.000000e+00 : f32
    %2 = vector.broadcast %cst : f32 to vector<128x32xf32>
    %3 = arith.subf %2, %0 : vector<128x32xf32>
    %4 = math.exp %3 : vector<128x32xf32>
    %cst_3 = arith.constant 1.000000e+00 : f32
    %5 = vector.broadcast %cst_3 : f32 to vector<128x32xf32>
    %6 = arith.addf %5, %4 : vector<128x32xf32>
    %cst_4 = arith.constant 1.000000e+00 : f32
    %7 = vector.broadcast %cst_4 : f32 to vector<128x32xf32>
    %8 = arith.divf %7, %6 : vector<128x32xf32>
    %9 = arith.mulf %0, %8 : vector<128x32xf32>
    %10 = vector.extract_strided_slice %1 {offsets = [0, 0], sizes = [1, 32], strides = [1, 1]} : vector<12x32xf32> to vector<1x32xf32>
    %11 = vector.broadcast %10 : vector<1x32xf32> to vector<128x32xf32>
    %12 = arith.cmpf oge, %0, %11 : vector<128x32xf32>
    %13 = vector.extract_strided_slice %1 {offsets = [1, 0], sizes = [1, 32], strides = [1, 1]} : vector<12x32xf32> to vector<1x32xf32>
    %14 = vector.broadcast %13 : vector<1x32xf32> to vector<128x32xf32>
    %15 = arith.cmpf olt, %0, %14 : vector<128x32xf32>
    %16 = arith.andi %12, %15 : vector<128x32xi1>
    %17 = arith.extui %16 : vector<128x32xi1> to vector<128x32xi32>
    %18 = arith.sitofp %17 : vector<128x32xi32> to vector<128x32xf32>
    %19 = vector.extract_strided_slice %1 {offsets = [1, 0], sizes = [1, 32], strides = [1, 1]} : vector<12x32xf32> to vector<1x32xf32>
    %20 = vector.broadcast %19 : vector<1x32xf32> to vector<128x32xf32>
    %21 = arith.cmpf oge, %0, %20 : vector<128x32xf32>
    %22 = vector.extract_strided_slice %1 {offsets = [2, 0], sizes = [1, 32], strides = [1, 1]} : vector<12x32xf32> to vector<1x32xf32>
    %23 = vector.broadcast %22 : vector<1x32xf32> to vector<128x32xf32>
    %24 = arith.cmpf olt, %0, %23 : vector<128x32xf32>
    %25 = arith.andi %21, %24 : vector<128x32xi1>
    %26 = arith.extui %25 : vector<128x32xi1> to vector<128x32xi32>
    %27 = arith.sitofp %26 : vector<128x32xi32> to vector<128x32xf32>
    %28 = vector.extract_strided_slice %1 {offsets = [2, 0], sizes = [1, 32], strides = [1, 1]} : vector<12x32xf32> to vector<1x32xf32>
    %29 = vector.broadcast %28 : vector<1x32xf32> to vector<128x32xf32>
    %30 = arith.cmpf oge, %0, %29 : vector<128x32xf32>
    %31 = vector.extract_strided_slice %1 {offsets = [3, 0], sizes = [1, 32], strides = [1, 1]} : vector<12x32xf32> to vector<1x32xf32>
    %32 = vector.broadcast %31 : vector<1x32xf32> to vector<128x32xf32>
    %33 = arith.cmpf olt, %0, %32 : vector<128x32xf32>
    %34 = arith.andi %30, %33 : vector<128x32xi1>
    %35 = arith.extui %34 : vector<128x32xi1> to vector<128x32xi32>
    %36 = arith.sitofp %35 : vector<128x32xi32> to vector<128x32xf32>
    %37 = vector.extract_strided_slice %1 {offsets = [3, 0], sizes = [1, 32], strides = [1, 1]} : vector<12x32xf32> to vector<1x32xf32>
    %38 = vector.broadcast %37 : vector<1x32xf32> to vector<128x32xf32>
    %39 = arith.cmpf oge, %0, %38 : vector<128x32xf32>
    %40 = vector.extract_strided_slice %1 {offsets = [4, 0], sizes = [1, 32], strides = [1, 1]} : vector<12x32xf32> to vector<1x32xf32>
    %41 = vector.broadcast %40 : vector<1x32xf32> to vector<128x32xf32>
    %42 = arith.cmpf olt, %0, %41 : vector<128x32xf32>
    %43 = arith.andi %39, %42 : vector<128x32xi1>
    %44 = arith.extui %43 : vector<128x32xi1> to vector<128x32xi32>
    %45 = arith.sitofp %44 : vector<128x32xi32> to vector<128x32xf32>
    %46 = vector.extract_strided_slice %1 {offsets = [4, 0], sizes = [1, 32], strides = [1, 1]} : vector<12x32xf32> to vector<1x32xf32>
    %47 = vector.broadcast %46 : vector<1x32xf32> to vector<128x32xf32>
    %48 = arith.cmpf oge, %0, %47 : vector<128x32xf32>
    %49 = vector.extract_strided_slice %1 {offsets = [5, 0], sizes = [1, 32], strides = [1, 1]} : vector<12x32xf32> to vector<1x32xf32>
    %50 = vector.broadcast %49 : vector<1x32xf32> to vector<128x32xf32>
    %51 = arith.cmpf olt, %0, %50 : vector<128x32xf32>
    %52 = arith.andi %48, %51 : vector<128x32xi1>
    %53 = arith.extui %52 : vector<128x32xi1> to vector<128x32xi32>
    %54 = arith.sitofp %53 : vector<128x32xi32> to vector<128x32xf32>
    %55 = vector.extract_strided_slice %1 {offsets = [5, 0], sizes = [1, 32], strides = [1, 1]} : vector<12x32xf32> to vector<1x32xf32>
    %56 = vector.broadcast %55 : vector<1x32xf32> to vector<128x32xf32>
    %57 = arith.cmpf oge, %0, %56 : vector<128x32xf32>
    %58 = vector.extract_strided_slice %1 {offsets = [6, 0], sizes = [1, 32], strides = [1, 1]} : vector<12x32xf32> to vector<1x32xf32>
    %59 = vector.broadcast %58 : vector<1x32xf32> to vector<128x32xf32>
    %60 = arith.cmpf olt, %0, %59 : vector<128x32xf32>
    %61 = arith.andi %57, %60 : vector<128x32xi1>
    %62 = arith.extui %61 : vector<128x32xi1> to vector<128x32xi32>
    %63 = arith.sitofp %62 : vector<128x32xi32> to vector<128x32xf32>
    %64 = vector.extract_strided_slice %1 {offsets = [6, 0], sizes = [1, 32], strides = [1, 1]} : vector<12x32xf32> to vector<1x32xf32>
    %65 = vector.broadcast %64 : vector<1x32xf32> to vector<128x32xf32>
    %66 = arith.cmpf oge, %0, %65 : vector<128x32xf32>
    %67 = vector.extract_strided_slice %1 {offsets = [7, 0], sizes = [1, 32], strides = [1, 1]} : vector<12x32xf32> to vector<1x32xf32>
    %68 = vector.broadcast %67 : vector<1x32xf32> to vector<128x32xf32>
    %69 = arith.cmpf olt, %0, %68 : vector<128x32xf32>
    %70 = arith.andi %66, %69 : vector<128x32xi1>
    %71 = arith.extui %70 : vector<128x32xi1> to vector<128x32xi32>
    %72 = arith.sitofp %71 : vector<128x32xi32> to vector<128x32xf32>
    %73 = vector.extract_strided_slice %1 {offsets = [7, 0], sizes = [1, 32], strides = [1, 1]} : vector<12x32xf32> to vector<1x32xf32>
    %74 = vector.broadcast %73 : vector<1x32xf32> to vector<128x32xf32>
    %75 = arith.cmpf oge, %0, %74 : vector<128x32xf32>
    %76 = vector.extract_strided_slice %1 {offsets = [8, 0], sizes = [1, 32], strides = [1, 1]} : vector<12x32xf32> to vector<1x32xf32>
    %77 = vector.broadcast %76 : vector<1x32xf32> to vector<128x32xf32>
    %78 = arith.cmpf olt, %0, %77 : vector<128x32xf32>
    %79 = arith.andi %75, %78 : vector<128x32xi1>
    %80 = arith.extui %79 : vector<128x32xi1> to vector<128x32xi32>
    %81 = arith.sitofp %80 : vector<128x32xi32> to vector<128x32xf32>
    %82 = vector.extract_strided_slice %1 {offsets = [8, 0], sizes = [1, 32], strides = [1, 1]} : vector<12x32xf32> to vector<1x32xf32>
    %83 = vector.broadcast %82 : vector<1x32xf32> to vector<128x32xf32>
    %84 = arith.cmpf oge, %0, %83 : vector<128x32xf32>
    %85 = vector.extract_strided_slice %1 {offsets = [9, 0], sizes = [1, 32], strides = [1, 1]} : vector<12x32xf32> to vector<1x32xf32>
    %86 = vector.broadcast %85 : vector<1x32xf32> to vector<128x32xf32>
    %87 = arith.cmpf olt, %0, %86 : vector<128x32xf32>
    %88 = arith.andi %84, %87 : vector<128x32xi1>
    %89 = arith.extui %88 : vector<128x32xi1> to vector<128x32xi32>
    %90 = arith.sitofp %89 : vector<128x32xi32> to vector<128x32xf32>
    %91 = vector.extract_strided_slice %1 {offsets = [9, 0], sizes = [1, 32], strides = [1, 1]} : vector<12x32xf32> to vector<1x32xf32>
    %92 = vector.broadcast %91 : vector<1x32xf32> to vector<128x32xf32>
    %93 = arith.cmpf oge, %0, %92 : vector<128x32xf32>
    %94 = vector.extract_strided_slice %1 {offsets = [10, 0], sizes = [1, 32], strides = [1, 1]} : vector<12x32xf32> to vector<1x32xf32>
    %95 = vector.broadcast %94 : vector<1x32xf32> to vector<128x32xf32>
    %96 = arith.cmpf olt, %0, %95 : vector<128x32xf32>
    %97 = arith.andi %93, %96 : vector<128x32xi1>
    %98 = arith.extui %97 : vector<128x32xi1> to vector<128x32xi32>
    %99 = arith.sitofp %98 : vector<128x32xi32> to vector<128x32xf32>
    %100 = vector.extract_strided_slice %1 {offsets = [10, 0], sizes = [1, 32], strides = [1, 1]} : vector<12x32xf32> to vector<1x32xf32>
    %101 = vector.broadcast %100 : vector<1x32xf32> to vector<128x32xf32>
    %102 = arith.cmpf oge, %0, %101 : vector<128x32xf32>
    %103 = vector.extract_strided_slice %1 {offsets = [11, 0], sizes = [1, 32], strides = [1, 1]} : vector<12x32xf32> to vector<1x32xf32>
    %104 = vector.broadcast %103 : vector<1x32xf32> to vector<128x32xf32>
    %105 = arith.cmpf olt, %0, %104 : vector<128x32xf32>
    %106 = arith.andi %102, %105 : vector<128x32xi1>
    %107 = arith.extui %106 : vector<128x32xi1> to vector<128x32xi32>
    %108 = arith.sitofp %107 : vector<128x32xi32> to vector<128x32xf32>
    %109 = vector.extract_strided_slice %1 {offsets = [1, 0], sizes = [1, 32], strides = [1, 1]} : vector<12x32xf32> to vector<1x32xf32>
    %110 = vector.extract_strided_slice %1 {offsets = [0, 0], sizes = [1, 32], strides = [1, 1]} : vector<12x32xf32> to vector<1x32xf32>
    %111 = arith.subf %109, %110 : vector<1x32xf32>
    %cst_5 = arith.constant 1.000000e+00 : f32
    %112 = vector.broadcast %cst_5 : f32 to vector<1x32xf32>
    %113 = arith.divf %112, %111 : vector<1x32xf32>
    %114 = vector.extract_strided_slice %1 {offsets = [2, 0], sizes = [1, 32], strides = [1, 1]} : vector<12x32xf32> to vector<1x32xf32>
    %115 = vector.extract_strided_slice %1 {offsets = [1, 0], sizes = [1, 32], strides = [1, 1]} : vector<12x32xf32> to vector<1x32xf32>
    %116 = arith.subf %114, %115 : vector<1x32xf32>
    %cst_6 = arith.constant 1.000000e+00 : f32
    %117 = vector.broadcast %cst_6 : f32 to vector<1x32xf32>
    %118 = arith.divf %117, %116 : vector<1x32xf32>
    %119 = vector.extract_strided_slice %1 {offsets = [0, 0], sizes = [1, 32], strides = [1, 1]} : vector<12x32xf32> to vector<1x32xf32>
    %120 = vector.broadcast %119 : vector<1x32xf32> to vector<128x32xf32>
    %121 = arith.subf %0, %120 : vector<128x32xf32>
    %122 = vector.broadcast %113 : vector<1x32xf32> to vector<128x32xf32>
    %123 = arith.mulf %121, %122 : vector<128x32xf32>
    %124 = vector.extract_strided_slice %1 {offsets = [2, 0], sizes = [1, 32], strides = [1, 1]} : vector<12x32xf32> to vector<1x32xf32>
    %125 = vector.broadcast %124 : vector<1x32xf32> to vector<128x32xf32>
    %126 = arith.subf %125, %0 : vector<128x32xf32>
    %127 = vector.broadcast %118 : vector<1x32xf32> to vector<128x32xf32>
    %128 = arith.mulf %126, %127 : vector<128x32xf32>
    %129 = arith.mulf %123, %18 : vector<128x32xf32>
    %130 = arith.mulf %128, %27 : vector<128x32xf32>
    %131 = arith.addf %129, %130 : vector<128x32xf32>
    %132 = vector.extract_strided_slice %1 {offsets = [2, 0], sizes = [1, 32], strides = [1, 1]} : vector<12x32xf32> to vector<1x32xf32>
    %133 = vector.extract_strided_slice %1 {offsets = [1, 0], sizes = [1, 32], strides = [1, 1]} : vector<12x32xf32> to vector<1x32xf32>
    %134 = arith.subf %132, %133 : vector<1x32xf32>
    %cst_7 = arith.constant 1.000000e+00 : f32
    %135 = vector.broadcast %cst_7 : f32 to vector<1x32xf32>
    %136 = arith.divf %135, %134 : vector<1x32xf32>
    %137 = vector.extract_strided_slice %1 {offsets = [3, 0], sizes = [1, 32], strides = [1, 1]} : vector<12x32xf32> to vector<1x32xf32>
    %138 = vector.extract_strided_slice %1 {offsets = [2, 0], sizes = [1, 32], strides = [1, 1]} : vector<12x32xf32> to vector<1x32xf32>
    %139 = arith.subf %137, %138 : vector<1x32xf32>
    %cst_8 = arith.constant 1.000000e+00 : f32
    %140 = vector.broadcast %cst_8 : f32 to vector<1x32xf32>
    %141 = arith.divf %140, %139 : vector<1x32xf32>
    %142 = vector.extract_strided_slice %1 {offsets = [1, 0], sizes = [1, 32], strides = [1, 1]} : vector<12x32xf32> to vector<1x32xf32>
    %143 = vector.broadcast %142 : vector<1x32xf32> to vector<128x32xf32>
    %144 = arith.subf %0, %143 : vector<128x32xf32>
    %145 = vector.broadcast %136 : vector<1x32xf32> to vector<128x32xf32>
    %146 = arith.mulf %144, %145 : vector<128x32xf32>
    %147 = vector.extract_strided_slice %1 {offsets = [3, 0], sizes = [1, 32], strides = [1, 1]} : vector<12x32xf32> to vector<1x32xf32>
    %148 = vector.broadcast %147 : vector<1x32xf32> to vector<128x32xf32>
    %149 = arith.subf %148, %0 : vector<128x32xf32>
    %150 = vector.broadcast %141 : vector<1x32xf32> to vector<128x32xf32>
    %151 = arith.mulf %149, %150 : vector<128x32xf32>
    %152 = arith.mulf %146, %27 : vector<128x32xf32>
    %153 = arith.mulf %151, %36 : vector<128x32xf32>
    %154 = arith.addf %152, %153 : vector<128x32xf32>
    %155 = vector.extract_strided_slice %1 {offsets = [3, 0], sizes = [1, 32], strides = [1, 1]} : vector<12x32xf32> to vector<1x32xf32>
    %156 = vector.extract_strided_slice %1 {offsets = [2, 0], sizes = [1, 32], strides = [1, 1]} : vector<12x32xf32> to vector<1x32xf32>
    %157 = arith.subf %155, %156 : vector<1x32xf32>
    %cst_9 = arith.constant 1.000000e+00 : f32
    %158 = vector.broadcast %cst_9 : f32 to vector<1x32xf32>
    %159 = arith.divf %158, %157 : vector<1x32xf32>
    %160 = vector.extract_strided_slice %1 {offsets = [4, 0], sizes = [1, 32], strides = [1, 1]} : vector<12x32xf32> to vector<1x32xf32>
    %161 = vector.extract_strided_slice %1 {offsets = [3, 0], sizes = [1, 32], strides = [1, 1]} : vector<12x32xf32> to vector<1x32xf32>
    %162 = arith.subf %160, %161 : vector<1x32xf32>
    %cst_10 = arith.constant 1.000000e+00 : f32
    %163 = vector.broadcast %cst_10 : f32 to vector<1x32xf32>
    %164 = arith.divf %163, %162 : vector<1x32xf32>
    %165 = vector.extract_strided_slice %1 {offsets = [2, 0], sizes = [1, 32], strides = [1, 1]} : vector<12x32xf32> to vector<1x32xf32>
    %166 = vector.broadcast %165 : vector<1x32xf32> to vector<128x32xf32>
    %167 = arith.subf %0, %166 : vector<128x32xf32>
    %168 = vector.broadcast %159 : vector<1x32xf32> to vector<128x32xf32>
    %169 = arith.mulf %167, %168 : vector<128x32xf32>
    %170 = vector.extract_strided_slice %1 {offsets = [4, 0], sizes = [1, 32], strides = [1, 1]} : vector<12x32xf32> to vector<1x32xf32>
    %171 = vector.broadcast %170 : vector<1x32xf32> to vector<128x32xf32>
    %172 = arith.subf %171, %0 : vector<128x32xf32>
    %173 = vector.broadcast %164 : vector<1x32xf32> to vector<128x32xf32>
    %174 = arith.mulf %172, %173 : vector<128x32xf32>
    %175 = arith.mulf %169, %36 : vector<128x32xf32>
    %176 = arith.mulf %174, %45 : vector<128x32xf32>
    %177 = arith.addf %175, %176 : vector<128x32xf32>
    %178 = vector.extract_strided_slice %1 {offsets = [4, 0], sizes = [1, 32], strides = [1, 1]} : vector<12x32xf32> to vector<1x32xf32>
    %179 = vector.extract_strided_slice %1 {offsets = [3, 0], sizes = [1, 32], strides = [1, 1]} : vector<12x32xf32> to vector<1x32xf32>
    %180 = arith.subf %178, %179 : vector<1x32xf32>
    %cst_11 = arith.constant 1.000000e+00 : f32
    %181 = vector.broadcast %cst_11 : f32 to vector<1x32xf32>
    %182 = arith.divf %181, %180 : vector<1x32xf32>
    %183 = vector.extract_strided_slice %1 {offsets = [5, 0], sizes = [1, 32], strides = [1, 1]} : vector<12x32xf32> to vector<1x32xf32>
    %184 = vector.extract_strided_slice %1 {offsets = [4, 0], sizes = [1, 32], strides = [1, 1]} : vector<12x32xf32> to vector<1x32xf32>
    %185 = arith.subf %183, %184 : vector<1x32xf32>
    %cst_12 = arith.constant 1.000000e+00 : f32
    %186 = vector.broadcast %cst_12 : f32 to vector<1x32xf32>
    %187 = arith.divf %186, %185 : vector<1x32xf32>
    %188 = vector.extract_strided_slice %1 {offsets = [3, 0], sizes = [1, 32], strides = [1, 1]} : vector<12x32xf32> to vector<1x32xf32>
    %189 = vector.broadcast %188 : vector<1x32xf32> to vector<128x32xf32>
    %190 = arith.subf %0, %189 : vector<128x32xf32>
    %191 = vector.broadcast %182 : vector<1x32xf32> to vector<128x32xf32>
    %192 = arith.mulf %190, %191 : vector<128x32xf32>
    %193 = vector.extract_strided_slice %1 {offsets = [5, 0], sizes = [1, 32], strides = [1, 1]} : vector<12x32xf32> to vector<1x32xf32>
    %194 = vector.broadcast %193 : vector<1x32xf32> to vector<128x32xf32>
    %195 = arith.subf %194, %0 : vector<128x32xf32>
    %196 = vector.broadcast %187 : vector<1x32xf32> to vector<128x32xf32>
    %197 = arith.mulf %195, %196 : vector<128x32xf32>
    %198 = arith.mulf %192, %45 : vector<128x32xf32>
    %199 = arith.mulf %197, %54 : vector<128x32xf32>
    %200 = arith.addf %198, %199 : vector<128x32xf32>
    %201 = vector.extract_strided_slice %1 {offsets = [5, 0], sizes = [1, 32], strides = [1, 1]} : vector<12x32xf32> to vector<1x32xf32>
    %202 = vector.extract_strided_slice %1 {offsets = [4, 0], sizes = [1, 32], strides = [1, 1]} : vector<12x32xf32> to vector<1x32xf32>
    %203 = arith.subf %201, %202 : vector<1x32xf32>
    %cst_13 = arith.constant 1.000000e+00 : f32
    %204 = vector.broadcast %cst_13 : f32 to vector<1x32xf32>
    %205 = arith.divf %204, %203 : vector<1x32xf32>
    %206 = vector.extract_strided_slice %1 {offsets = [6, 0], sizes = [1, 32], strides = [1, 1]} : vector<12x32xf32> to vector<1x32xf32>
    %207 = vector.extract_strided_slice %1 {offsets = [5, 0], sizes = [1, 32], strides = [1, 1]} : vector<12x32xf32> to vector<1x32xf32>
    %208 = arith.subf %206, %207 : vector<1x32xf32>
    %cst_14 = arith.constant 1.000000e+00 : f32
    %209 = vector.broadcast %cst_14 : f32 to vector<1x32xf32>
    %210 = arith.divf %209, %208 : vector<1x32xf32>
    %211 = vector.extract_strided_slice %1 {offsets = [4, 0], sizes = [1, 32], strides = [1, 1]} : vector<12x32xf32> to vector<1x32xf32>
    %212 = vector.broadcast %211 : vector<1x32xf32> to vector<128x32xf32>
    %213 = arith.subf %0, %212 : vector<128x32xf32>
    %214 = vector.broadcast %205 : vector<1x32xf32> to vector<128x32xf32>
    %215 = arith.mulf %213, %214 : vector<128x32xf32>
    %216 = vector.extract_strided_slice %1 {offsets = [6, 0], sizes = [1, 32], strides = [1, 1]} : vector<12x32xf32> to vector<1x32xf32>
    %217 = vector.broadcast %216 : vector<1x32xf32> to vector<128x32xf32>
    %218 = arith.subf %217, %0 : vector<128x32xf32>
    %219 = vector.broadcast %210 : vector<1x32xf32> to vector<128x32xf32>
    %220 = arith.mulf %218, %219 : vector<128x32xf32>
    %221 = arith.mulf %215, %54 : vector<128x32xf32>
    %222 = arith.mulf %220, %63 : vector<128x32xf32>
    %223 = arith.addf %221, %222 : vector<128x32xf32>
    %224 = vector.extract_strided_slice %1 {offsets = [6, 0], sizes = [1, 32], strides = [1, 1]} : vector<12x32xf32> to vector<1x32xf32>
    %225 = vector.extract_strided_slice %1 {offsets = [5, 0], sizes = [1, 32], strides = [1, 1]} : vector<12x32xf32> to vector<1x32xf32>
    %226 = arith.subf %224, %225 : vector<1x32xf32>
    %cst_15 = arith.constant 1.000000e+00 : f32
    %227 = vector.broadcast %cst_15 : f32 to vector<1x32xf32>
    %228 = arith.divf %227, %226 : vector<1x32xf32>
    %229 = vector.extract_strided_slice %1 {offsets = [7, 0], sizes = [1, 32], strides = [1, 1]} : vector<12x32xf32> to vector<1x32xf32>
    %230 = vector.extract_strided_slice %1 {offsets = [6, 0], sizes = [1, 32], strides = [1, 1]} : vector<12x32xf32> to vector<1x32xf32>
    %231 = arith.subf %229, %230 : vector<1x32xf32>
    %cst_16 = arith.constant 1.000000e+00 : f32
    %232 = vector.broadcast %cst_16 : f32 to vector<1x32xf32>
    %233 = arith.divf %232, %231 : vector<1x32xf32>
    %234 = vector.extract_strided_slice %1 {offsets = [5, 0], sizes = [1, 32], strides = [1, 1]} : vector<12x32xf32> to vector<1x32xf32>
    %235 = vector.broadcast %234 : vector<1x32xf32> to vector<128x32xf32>
    %236 = arith.subf %0, %235 : vector<128x32xf32>
    %237 = vector.broadcast %228 : vector<1x32xf32> to vector<128x32xf32>
    %238 = arith.mulf %236, %237 : vector<128x32xf32>
    %239 = vector.extract_strided_slice %1 {offsets = [7, 0], sizes = [1, 32], strides = [1, 1]} : vector<12x32xf32> to vector<1x32xf32>
    %240 = vector.broadcast %239 : vector<1x32xf32> to vector<128x32xf32>
    %241 = arith.subf %240, %0 : vector<128x32xf32>
    %242 = vector.broadcast %233 : vector<1x32xf32> to vector<128x32xf32>
    %243 = arith.mulf %241, %242 : vector<128x32xf32>
    %244 = arith.mulf %238, %63 : vector<128x32xf32>
    %245 = arith.mulf %243, %72 : vector<128x32xf32>
    %246 = arith.addf %244, %245 : vector<128x32xf32>
    %247 = vector.extract_strided_slice %1 {offsets = [7, 0], sizes = [1, 32], strides = [1, 1]} : vector<12x32xf32> to vector<1x32xf32>
    %248 = vector.extract_strided_slice %1 {offsets = [6, 0], sizes = [1, 32], strides = [1, 1]} : vector<12x32xf32> to vector<1x32xf32>
    %249 = arith.subf %247, %248 : vector<1x32xf32>
    %cst_17 = arith.constant 1.000000e+00 : f32
    %250 = vector.broadcast %cst_17 : f32 to vector<1x32xf32>
    %251 = arith.divf %250, %249 : vector<1x32xf32>
    %252 = vector.extract_strided_slice %1 {offsets = [8, 0], sizes = [1, 32], strides = [1, 1]} : vector<12x32xf32> to vector<1x32xf32>
    %253 = vector.extract_strided_slice %1 {offsets = [7, 0], sizes = [1, 32], strides = [1, 1]} : vector<12x32xf32> to vector<1x32xf32>
    %254 = arith.subf %252, %253 : vector<1x32xf32>
    %cst_18 = arith.constant 1.000000e+00 : f32
    %255 = vector.broadcast %cst_18 : f32 to vector<1x32xf32>
    %256 = arith.divf %255, %254 : vector<1x32xf32>
    %257 = vector.extract_strided_slice %1 {offsets = [6, 0], sizes = [1, 32], strides = [1, 1]} : vector<12x32xf32> to vector<1x32xf32>
    %258 = vector.broadcast %257 : vector<1x32xf32> to vector<128x32xf32>
    %259 = arith.subf %0, %258 : vector<128x32xf32>
    %260 = vector.broadcast %251 : vector<1x32xf32> to vector<128x32xf32>
    %261 = arith.mulf %259, %260 : vector<128x32xf32>
    %262 = vector.extract_strided_slice %1 {offsets = [8, 0], sizes = [1, 32], strides = [1, 1]} : vector<12x32xf32> to vector<1x32xf32>
    %263 = vector.broadcast %262 : vector<1x32xf32> to vector<128x32xf32>
    %264 = arith.subf %263, %0 : vector<128x32xf32>
    %265 = vector.broadcast %256 : vector<1x32xf32> to vector<128x32xf32>
    %266 = arith.mulf %264, %265 : vector<128x32xf32>
    %267 = arith.mulf %261, %72 : vector<128x32xf32>
    %268 = arith.mulf %266, %81 : vector<128x32xf32>
    %269 = arith.addf %267, %268 : vector<128x32xf32>
    %270 = vector.extract_strided_slice %1 {offsets = [8, 0], sizes = [1, 32], strides = [1, 1]} : vector<12x32xf32> to vector<1x32xf32>
    %271 = vector.extract_strided_slice %1 {offsets = [7, 0], sizes = [1, 32], strides = [1, 1]} : vector<12x32xf32> to vector<1x32xf32>
    %272 = arith.subf %270, %271 : vector<1x32xf32>
    %cst_19 = arith.constant 1.000000e+00 : f32
    %273 = vector.broadcast %cst_19 : f32 to vector<1x32xf32>
    %274 = arith.divf %273, %272 : vector<1x32xf32>
    %275 = vector.extract_strided_slice %1 {offsets = [9, 0], sizes = [1, 32], strides = [1, 1]} : vector<12x32xf32> to vector<1x32xf32>
    %276 = vector.extract_strided_slice %1 {offsets = [8, 0], sizes = [1, 32], strides = [1, 1]} : vector<12x32xf32> to vector<1x32xf32>
    %277 = arith.subf %275, %276 : vector<1x32xf32>
    %cst_20 = arith.constant 1.000000e+00 : f32
    %278 = vector.broadcast %cst_20 : f32 to vector<1x32xf32>
    %279 = arith.divf %278, %277 : vector<1x32xf32>
    %280 = vector.extract_strided_slice %1 {offsets = [7, 0], sizes = [1, 32], strides = [1, 1]} : vector<12x32xf32> to vector<1x32xf32>
    %281 = vector.broadcast %280 : vector<1x32xf32> to vector<128x32xf32>
    %282 = arith.subf %0, %281 : vector<128x32xf32>
    %283 = vector.broadcast %274 : vector<1x32xf32> to vector<128x32xf32>
    %284 = arith.mulf %282, %283 : vector<128x32xf32>
    %285 = vector.extract_strided_slice %1 {offsets = [9, 0], sizes = [1, 32], strides = [1, 1]} : vector<12x32xf32> to vector<1x32xf32>
    %286 = vector.broadcast %285 : vector<1x32xf32> to vector<128x32xf32>
    %287 = arith.subf %286, %0 : vector<128x32xf32>
    %288 = vector.broadcast %279 : vector<1x32xf32> to vector<128x32xf32>
    %289 = arith.mulf %287, %288 : vector<128x32xf32>
    %290 = arith.mulf %284, %81 : vector<128x32xf32>
    %291 = arith.mulf %289, %90 : vector<128x32xf32>
    %292 = arith.addf %290, %291 : vector<128x32xf32>
    %293 = vector.extract_strided_slice %1 {offsets = [9, 0], sizes = [1, 32], strides = [1, 1]} : vector<12x32xf32> to vector<1x32xf32>
    %294 = vector.extract_strided_slice %1 {offsets = [8, 0], sizes = [1, 32], strides = [1, 1]} : vector<12x32xf32> to vector<1x32xf32>
    %295 = arith.subf %293, %294 : vector<1x32xf32>
    %cst_21 = arith.constant 1.000000e+00 : f32
    %296 = vector.broadcast %cst_21 : f32 to vector<1x32xf32>
    %297 = arith.divf %296, %295 : vector<1x32xf32>
    %298 = vector.extract_strided_slice %1 {offsets = [10, 0], sizes = [1, 32], strides = [1, 1]} : vector<12x32xf32> to vector<1x32xf32>
    %299 = vector.extract_strided_slice %1 {offsets = [9, 0], sizes = [1, 32], strides = [1, 1]} : vector<12x32xf32> to vector<1x32xf32>
    %300 = arith.subf %298, %299 : vector<1x32xf32>
    %cst_22 = arith.constant 1.000000e+00 : f32
    %301 = vector.broadcast %cst_22 : f32 to vector<1x32xf32>
    %302 = arith.divf %301, %300 : vector<1x32xf32>
    %303 = vector.extract_strided_slice %1 {offsets = [8, 0], sizes = [1, 32], strides = [1, 1]} : vector<12x32xf32> to vector<1x32xf32>
    %304 = vector.broadcast %303 : vector<1x32xf32> to vector<128x32xf32>
    %305 = arith.subf %0, %304 : vector<128x32xf32>
    %306 = vector.broadcast %297 : vector<1x32xf32> to vector<128x32xf32>
    %307 = arith.mulf %305, %306 : vector<128x32xf32>
    %308 = vector.extract_strided_slice %1 {offsets = [10, 0], sizes = [1, 32], strides = [1, 1]} : vector<12x32xf32> to vector<1x32xf32>
    %309 = vector.broadcast %308 : vector<1x32xf32> to vector<128x32xf32>
    %310 = arith.subf %309, %0 : vector<128x32xf32>
    %311 = vector.broadcast %302 : vector<1x32xf32> to vector<128x32xf32>
    %312 = arith.mulf %310, %311 : vector<128x32xf32>
    %313 = arith.mulf %307, %90 : vector<128x32xf32>
    %314 = arith.mulf %312, %99 : vector<128x32xf32>
    %315 = arith.addf %313, %314 : vector<128x32xf32>
    %316 = vector.extract_strided_slice %1 {offsets = [10, 0], sizes = [1, 32], strides = [1, 1]} : vector<12x32xf32> to vector<1x32xf32>
    %317 = vector.extract_strided_slice %1 {offsets = [9, 0], sizes = [1, 32], strides = [1, 1]} : vector<12x32xf32> to vector<1x32xf32>
    %318 = arith.subf %316, %317 : vector<1x32xf32>
    %cst_23 = arith.constant 1.000000e+00 : f32
    %319 = vector.broadcast %cst_23 : f32 to vector<1x32xf32>
    %320 = arith.divf %319, %318 : vector<1x32xf32>
    %321 = vector.extract_strided_slice %1 {offsets = [11, 0], sizes = [1, 32], strides = [1, 1]} : vector<12x32xf32> to vector<1x32xf32>
    %322 = vector.extract_strided_slice %1 {offsets = [10, 0], sizes = [1, 32], strides = [1, 1]} : vector<12x32xf32> to vector<1x32xf32>
    %323 = arith.subf %321, %322 : vector<1x32xf32>
    %cst_24 = arith.constant 1.000000e+00 : f32
    %324 = vector.broadcast %cst_24 : f32 to vector<1x32xf32>
    %325 = arith.divf %324, %323 : vector<1x32xf32>
    %326 = vector.extract_strided_slice %1 {offsets = [9, 0], sizes = [1, 32], strides = [1, 1]} : vector<12x32xf32> to vector<1x32xf32>
    %327 = vector.broadcast %326 : vector<1x32xf32> to vector<128x32xf32>
    %328 = arith.subf %0, %327 : vector<128x32xf32>
    %329 = vector.broadcast %320 : vector<1x32xf32> to vector<128x32xf32>
    %330 = arith.mulf %328, %329 : vector<128x32xf32>
    %331 = vector.extract_strided_slice %1 {offsets = [11, 0], sizes = [1, 32], strides = [1, 1]} : vector<12x32xf32> to vector<1x32xf32>
    %332 = vector.broadcast %331 : vector<1x32xf32> to vector<128x32xf32>
    %333 = arith.subf %332, %0 : vector<128x32xf32>
    %334 = vector.broadcast %325 : vector<1x32xf32> to vector<128x32xf32>
    %335 = arith.mulf %333, %334 : vector<128x32xf32>
    %336 = arith.mulf %330, %99 : vector<128x32xf32>
    %337 = arith.mulf %335, %108 : vector<128x32xf32>
    %338 = arith.addf %336, %337 : vector<128x32xf32>
    %339 = vector.extract_strided_slice %1 {offsets = [2, 0], sizes = [1, 32], strides = [1, 1]} : vector<12x32xf32> to vector<1x32xf32>
    %340 = vector.extract_strided_slice %1 {offsets = [0, 0], sizes = [1, 32], strides = [1, 1]} : vector<12x32xf32> to vector<1x32xf32>
    %341 = arith.subf %339, %340 : vector<1x32xf32>
    %cst_25 = arith.constant 1.000000e+00 : f32
    %342 = vector.broadcast %cst_25 : f32 to vector<1x32xf32>
    %343 = arith.divf %342, %341 : vector<1x32xf32>
    %344 = vector.extract_strided_slice %1 {offsets = [3, 0], sizes = [1, 32], strides = [1, 1]} : vector<12x32xf32> to vector<1x32xf32>
    %345 = vector.extract_strided_slice %1 {offsets = [1, 0], sizes = [1, 32], strides = [1, 1]} : vector<12x32xf32> to vector<1x32xf32>
    %346 = arith.subf %344, %345 : vector<1x32xf32>
    %cst_26 = arith.constant 1.000000e+00 : f32
    %347 = vector.broadcast %cst_26 : f32 to vector<1x32xf32>
    %348 = arith.divf %347, %346 : vector<1x32xf32>
    %349 = vector.extract_strided_slice %1 {offsets = [0, 0], sizes = [1, 32], strides = [1, 1]} : vector<12x32xf32> to vector<1x32xf32>
    %350 = vector.broadcast %349 : vector<1x32xf32> to vector<128x32xf32>
    %351 = arith.subf %0, %350 : vector<128x32xf32>
    %352 = vector.broadcast %343 : vector<1x32xf32> to vector<128x32xf32>
    %353 = arith.mulf %351, %352 : vector<128x32xf32>
    %354 = vector.extract_strided_slice %1 {offsets = [3, 0], sizes = [1, 32], strides = [1, 1]} : vector<12x32xf32> to vector<1x32xf32>
    %355 = vector.broadcast %354 : vector<1x32xf32> to vector<128x32xf32>
    %356 = arith.subf %355, %0 : vector<128x32xf32>
    %357 = vector.broadcast %348 : vector<1x32xf32> to vector<128x32xf32>
    %358 = arith.mulf %356, %357 : vector<128x32xf32>
    %359 = arith.mulf %353, %131 : vector<128x32xf32>
    %360 = arith.mulf %358, %154 : vector<128x32xf32>
    %361 = arith.addf %359, %360 : vector<128x32xf32>
    %362 = vector.extract_strided_slice %1 {offsets = [3, 0], sizes = [1, 32], strides = [1, 1]} : vector<12x32xf32> to vector<1x32xf32>
    %363 = vector.extract_strided_slice %1 {offsets = [1, 0], sizes = [1, 32], strides = [1, 1]} : vector<12x32xf32> to vector<1x32xf32>
    %364 = arith.subf %362, %363 : vector<1x32xf32>
    %cst_27 = arith.constant 1.000000e+00 : f32
    %365 = vector.broadcast %cst_27 : f32 to vector<1x32xf32>
    %366 = arith.divf %365, %364 : vector<1x32xf32>
    %367 = vector.extract_strided_slice %1 {offsets = [4, 0], sizes = [1, 32], strides = [1, 1]} : vector<12x32xf32> to vector<1x32xf32>
    %368 = vector.extract_strided_slice %1 {offsets = [2, 0], sizes = [1, 32], strides = [1, 1]} : vector<12x32xf32> to vector<1x32xf32>
    %369 = arith.subf %367, %368 : vector<1x32xf32>
    %cst_28 = arith.constant 1.000000e+00 : f32
    %370 = vector.broadcast %cst_28 : f32 to vector<1x32xf32>
    %371 = arith.divf %370, %369 : vector<1x32xf32>
    %372 = vector.extract_strided_slice %1 {offsets = [1, 0], sizes = [1, 32], strides = [1, 1]} : vector<12x32xf32> to vector<1x32xf32>
    %373 = vector.broadcast %372 : vector<1x32xf32> to vector<128x32xf32>
    %374 = arith.subf %0, %373 : vector<128x32xf32>
    %375 = vector.broadcast %366 : vector<1x32xf32> to vector<128x32xf32>
    %376 = arith.mulf %374, %375 : vector<128x32xf32>
    %377 = vector.extract_strided_slice %1 {offsets = [4, 0], sizes = [1, 32], strides = [1, 1]} : vector<12x32xf32> to vector<1x32xf32>
    %378 = vector.broadcast %377 : vector<1x32xf32> to vector<128x32xf32>
    %379 = arith.subf %378, %0 : vector<128x32xf32>
    %380 = vector.broadcast %371 : vector<1x32xf32> to vector<128x32xf32>
    %381 = arith.mulf %379, %380 : vector<128x32xf32>
    %382 = arith.mulf %376, %154 : vector<128x32xf32>
    %383 = arith.mulf %381, %177 : vector<128x32xf32>
    %384 = arith.addf %382, %383 : vector<128x32xf32>
    %385 = vector.extract_strided_slice %1 {offsets = [4, 0], sizes = [1, 32], strides = [1, 1]} : vector<12x32xf32> to vector<1x32xf32>
    %386 = vector.extract_strided_slice %1 {offsets = [2, 0], sizes = [1, 32], strides = [1, 1]} : vector<12x32xf32> to vector<1x32xf32>
    %387 = arith.subf %385, %386 : vector<1x32xf32>
    %cst_29 = arith.constant 1.000000e+00 : f32
    %388 = vector.broadcast %cst_29 : f32 to vector<1x32xf32>
    %389 = arith.divf %388, %387 : vector<1x32xf32>
    %390 = vector.extract_strided_slice %1 {offsets = [5, 0], sizes = [1, 32], strides = [1, 1]} : vector<12x32xf32> to vector<1x32xf32>
    %391 = vector.extract_strided_slice %1 {offsets = [3, 0], sizes = [1, 32], strides = [1, 1]} : vector<12x32xf32> to vector<1x32xf32>
    %392 = arith.subf %390, %391 : vector<1x32xf32>
    %cst_30 = arith.constant 1.000000e+00 : f32
    %393 = vector.broadcast %cst_30 : f32 to vector<1x32xf32>
    %394 = arith.divf %393, %392 : vector<1x32xf32>
    %395 = vector.extract_strided_slice %1 {offsets = [2, 0], sizes = [1, 32], strides = [1, 1]} : vector<12x32xf32> to vector<1x32xf32>
    %396 = vector.broadcast %395 : vector<1x32xf32> to vector<128x32xf32>
    %397 = arith.subf %0, %396 : vector<128x32xf32>
    %398 = vector.broadcast %389 : vector<1x32xf32> to vector<128x32xf32>
    %399 = arith.mulf %397, %398 : vector<128x32xf32>
    %400 = vector.extract_strided_slice %1 {offsets = [5, 0], sizes = [1, 32], strides = [1, 1]} : vector<12x32xf32> to vector<1x32xf32>
    %401 = vector.broadcast %400 : vector<1x32xf32> to vector<128x32xf32>
    %402 = arith.subf %401, %0 : vector<128x32xf32>
    %403 = vector.broadcast %394 : vector<1x32xf32> to vector<128x32xf32>
    %404 = arith.mulf %402, %403 : vector<128x32xf32>
    %405 = arith.mulf %399, %177 : vector<128x32xf32>
    %406 = arith.mulf %404, %200 : vector<128x32xf32>
    %407 = arith.addf %405, %406 : vector<128x32xf32>
    %408 = vector.extract_strided_slice %1 {offsets = [5, 0], sizes = [1, 32], strides = [1, 1]} : vector<12x32xf32> to vector<1x32xf32>
    %409 = vector.extract_strided_slice %1 {offsets = [3, 0], sizes = [1, 32], strides = [1, 1]} : vector<12x32xf32> to vector<1x32xf32>
    %410 = arith.subf %408, %409 : vector<1x32xf32>
    %cst_31 = arith.constant 1.000000e+00 : f32
    %411 = vector.broadcast %cst_31 : f32 to vector<1x32xf32>
    %412 = arith.divf %411, %410 : vector<1x32xf32>
    %413 = vector.extract_strided_slice %1 {offsets = [6, 0], sizes = [1, 32], strides = [1, 1]} : vector<12x32xf32> to vector<1x32xf32>
    %414 = vector.extract_strided_slice %1 {offsets = [4, 0], sizes = [1, 32], strides = [1, 1]} : vector<12x32xf32> to vector<1x32xf32>
    %415 = arith.subf %413, %414 : vector<1x32xf32>
    %cst_32 = arith.constant 1.000000e+00 : f32
    %416 = vector.broadcast %cst_32 : f32 to vector<1x32xf32>
    %417 = arith.divf %416, %415 : vector<1x32xf32>
    %418 = vector.extract_strided_slice %1 {offsets = [3, 0], sizes = [1, 32], strides = [1, 1]} : vector<12x32xf32> to vector<1x32xf32>
    %419 = vector.broadcast %418 : vector<1x32xf32> to vector<128x32xf32>
    %420 = arith.subf %0, %419 : vector<128x32xf32>
    %421 = vector.broadcast %412 : vector<1x32xf32> to vector<128x32xf32>
    %422 = arith.mulf %420, %421 : vector<128x32xf32>
    %423 = vector.extract_strided_slice %1 {offsets = [6, 0], sizes = [1, 32], strides = [1, 1]} : vector<12x32xf32> to vector<1x32xf32>
    %424 = vector.broadcast %423 : vector<1x32xf32> to vector<128x32xf32>
    %425 = arith.subf %424, %0 : vector<128x32xf32>
    %426 = vector.broadcast %417 : vector<1x32xf32> to vector<128x32xf32>
    %427 = arith.mulf %425, %426 : vector<128x32xf32>
    %428 = arith.mulf %422, %200 : vector<128x32xf32>
    %429 = arith.mulf %427, %223 : vector<128x32xf32>
    %430 = arith.addf %428, %429 : vector<128x32xf32>
    %431 = vector.extract_strided_slice %1 {offsets = [6, 0], sizes = [1, 32], strides = [1, 1]} : vector<12x32xf32> to vector<1x32xf32>
    %432 = vector.extract_strided_slice %1 {offsets = [4, 0], sizes = [1, 32], strides = [1, 1]} : vector<12x32xf32> to vector<1x32xf32>
    %433 = arith.subf %431, %432 : vector<1x32xf32>
    %cst_33 = arith.constant 1.000000e+00 : f32
    %434 = vector.broadcast %cst_33 : f32 to vector<1x32xf32>
    %435 = arith.divf %434, %433 : vector<1x32xf32>
    %436 = vector.extract_strided_slice %1 {offsets = [7, 0], sizes = [1, 32], strides = [1, 1]} : vector<12x32xf32> to vector<1x32xf32>
    %437 = vector.extract_strided_slice %1 {offsets = [5, 0], sizes = [1, 32], strides = [1, 1]} : vector<12x32xf32> to vector<1x32xf32>
    %438 = arith.subf %436, %437 : vector<1x32xf32>
    %cst_34 = arith.constant 1.000000e+00 : f32
    %439 = vector.broadcast %cst_34 : f32 to vector<1x32xf32>
    %440 = arith.divf %439, %438 : vector<1x32xf32>
    %441 = vector.extract_strided_slice %1 {offsets = [4, 0], sizes = [1, 32], strides = [1, 1]} : vector<12x32xf32> to vector<1x32xf32>
    %442 = vector.broadcast %441 : vector<1x32xf32> to vector<128x32xf32>
    %443 = arith.subf %0, %442 : vector<128x32xf32>
    %444 = vector.broadcast %435 : vector<1x32xf32> to vector<128x32xf32>
    %445 = arith.mulf %443, %444 : vector<128x32xf32>
    %446 = vector.extract_strided_slice %1 {offsets = [7, 0], sizes = [1, 32], strides = [1, 1]} : vector<12x32xf32> to vector<1x32xf32>
    %447 = vector.broadcast %446 : vector<1x32xf32> to vector<128x32xf32>
    %448 = arith.subf %447, %0 : vector<128x32xf32>
    %449 = vector.broadcast %440 : vector<1x32xf32> to vector<128x32xf32>
    %450 = arith.mulf %448, %449 : vector<128x32xf32>
    %451 = arith.mulf %445, %223 : vector<128x32xf32>
    %452 = arith.mulf %450, %246 : vector<128x32xf32>
    %453 = arith.addf %451, %452 : vector<128x32xf32>
    %454 = vector.extract_strided_slice %1 {offsets = [7, 0], sizes = [1, 32], strides = [1, 1]} : vector<12x32xf32> to vector<1x32xf32>
    %455 = vector.extract_strided_slice %1 {offsets = [5, 0], sizes = [1, 32], strides = [1, 1]} : vector<12x32xf32> to vector<1x32xf32>
    %456 = arith.subf %454, %455 : vector<1x32xf32>
    %cst_35 = arith.constant 1.000000e+00 : f32
    %457 = vector.broadcast %cst_35 : f32 to vector<1x32xf32>
    %458 = arith.divf %457, %456 : vector<1x32xf32>
    %459 = vector.extract_strided_slice %1 {offsets = [8, 0], sizes = [1, 32], strides = [1, 1]} : vector<12x32xf32> to vector<1x32xf32>
    %460 = vector.extract_strided_slice %1 {offsets = [6, 0], sizes = [1, 32], strides = [1, 1]} : vector<12x32xf32> to vector<1x32xf32>
    %461 = arith.subf %459, %460 : vector<1x32xf32>
    %cst_36 = arith.constant 1.000000e+00 : f32
    %462 = vector.broadcast %cst_36 : f32 to vector<1x32xf32>
    %463 = arith.divf %462, %461 : vector<1x32xf32>
    %464 = vector.extract_strided_slice %1 {offsets = [5, 0], sizes = [1, 32], strides = [1, 1]} : vector<12x32xf32> to vector<1x32xf32>
    %465 = vector.broadcast %464 : vector<1x32xf32> to vector<128x32xf32>
    %466 = arith.subf %0, %465 : vector<128x32xf32>
    %467 = vector.broadcast %458 : vector<1x32xf32> to vector<128x32xf32>
    %468 = arith.mulf %466, %467 : vector<128x32xf32>
    %469 = vector.extract_strided_slice %1 {offsets = [8, 0], sizes = [1, 32], strides = [1, 1]} : vector<12x32xf32> to vector<1x32xf32>
    %470 = vector.broadcast %469 : vector<1x32xf32> to vector<128x32xf32>
    %471 = arith.subf %470, %0 : vector<128x32xf32>
    %472 = vector.broadcast %463 : vector<1x32xf32> to vector<128x32xf32>
    %473 = arith.mulf %471, %472 : vector<128x32xf32>
    %474 = arith.mulf %468, %246 : vector<128x32xf32>
    %475 = arith.mulf %473, %269 : vector<128x32xf32>
    %476 = arith.addf %474, %475 : vector<128x32xf32>
    %477 = vector.extract_strided_slice %1 {offsets = [8, 0], sizes = [1, 32], strides = [1, 1]} : vector<12x32xf32> to vector<1x32xf32>
    %478 = vector.extract_strided_slice %1 {offsets = [6, 0], sizes = [1, 32], strides = [1, 1]} : vector<12x32xf32> to vector<1x32xf32>
    %479 = arith.subf %477, %478 : vector<1x32xf32>
    %cst_37 = arith.constant 1.000000e+00 : f32
    %480 = vector.broadcast %cst_37 : f32 to vector<1x32xf32>
    %481 = arith.divf %480, %479 : vector<1x32xf32>
    %482 = vector.extract_strided_slice %1 {offsets = [9, 0], sizes = [1, 32], strides = [1, 1]} : vector<12x32xf32> to vector<1x32xf32>
    %483 = vector.extract_strided_slice %1 {offsets = [7, 0], sizes = [1, 32], strides = [1, 1]} : vector<12x32xf32> to vector<1x32xf32>
    %484 = arith.subf %482, %483 : vector<1x32xf32>
    %cst_38 = arith.constant 1.000000e+00 : f32
    %485 = vector.broadcast %cst_38 : f32 to vector<1x32xf32>
    %486 = arith.divf %485, %484 : vector<1x32xf32>
    %487 = vector.extract_strided_slice %1 {offsets = [6, 0], sizes = [1, 32], strides = [1, 1]} : vector<12x32xf32> to vector<1x32xf32>
    %488 = vector.broadcast %487 : vector<1x32xf32> to vector<128x32xf32>
    %489 = arith.subf %0, %488 : vector<128x32xf32>
    %490 = vector.broadcast %481 : vector<1x32xf32> to vector<128x32xf32>
    %491 = arith.mulf %489, %490 : vector<128x32xf32>
    %492 = vector.extract_strided_slice %1 {offsets = [9, 0], sizes = [1, 32], strides = [1, 1]} : vector<12x32xf32> to vector<1x32xf32>
    %493 = vector.broadcast %492 : vector<1x32xf32> to vector<128x32xf32>
    %494 = arith.subf %493, %0 : vector<128x32xf32>
    %495 = vector.broadcast %486 : vector<1x32xf32> to vector<128x32xf32>
    %496 = arith.mulf %494, %495 : vector<128x32xf32>
    %497 = arith.mulf %491, %269 : vector<128x32xf32>
    %498 = arith.mulf %496, %292 : vector<128x32xf32>
    %499 = arith.addf %497, %498 : vector<128x32xf32>
    %500 = vector.extract_strided_slice %1 {offsets = [9, 0], sizes = [1, 32], strides = [1, 1]} : vector<12x32xf32> to vector<1x32xf32>
    %501 = vector.extract_strided_slice %1 {offsets = [7, 0], sizes = [1, 32], strides = [1, 1]} : vector<12x32xf32> to vector<1x32xf32>
    %502 = arith.subf %500, %501 : vector<1x32xf32>
    %cst_39 = arith.constant 1.000000e+00 : f32
    %503 = vector.broadcast %cst_39 : f32 to vector<1x32xf32>
    %504 = arith.divf %503, %502 : vector<1x32xf32>
    %505 = vector.extract_strided_slice %1 {offsets = [10, 0], sizes = [1, 32], strides = [1, 1]} : vector<12x32xf32> to vector<1x32xf32>
    %506 = vector.extract_strided_slice %1 {offsets = [8, 0], sizes = [1, 32], strides = [1, 1]} : vector<12x32xf32> to vector<1x32xf32>
    %507 = arith.subf %505, %506 : vector<1x32xf32>
    %cst_40 = arith.constant 1.000000e+00 : f32
    %508 = vector.broadcast %cst_40 : f32 to vector<1x32xf32>
    %509 = arith.divf %508, %507 : vector<1x32xf32>
    %510 = vector.extract_strided_slice %1 {offsets = [7, 0], sizes = [1, 32], strides = [1, 1]} : vector<12x32xf32> to vector<1x32xf32>
    %511 = vector.broadcast %510 : vector<1x32xf32> to vector<128x32xf32>
    %512 = arith.subf %0, %511 : vector<128x32xf32>
    %513 = vector.broadcast %504 : vector<1x32xf32> to vector<128x32xf32>
    %514 = arith.mulf %512, %513 : vector<128x32xf32>
    %515 = vector.extract_strided_slice %1 {offsets = [10, 0], sizes = [1, 32], strides = [1, 1]} : vector<12x32xf32> to vector<1x32xf32>
    %516 = vector.broadcast %515 : vector<1x32xf32> to vector<128x32xf32>
    %517 = arith.subf %516, %0 : vector<128x32xf32>
    %518 = vector.broadcast %509 : vector<1x32xf32> to vector<128x32xf32>
    %519 = arith.mulf %517, %518 : vector<128x32xf32>
    %520 = arith.mulf %514, %292 : vector<128x32xf32>
    %521 = arith.mulf %519, %315 : vector<128x32xf32>
    %522 = arith.addf %520, %521 : vector<128x32xf32>
    %523 = vector.extract_strided_slice %1 {offsets = [10, 0], sizes = [1, 32], strides = [1, 1]} : vector<12x32xf32> to vector<1x32xf32>
    %524 = vector.extract_strided_slice %1 {offsets = [8, 0], sizes = [1, 32], strides = [1, 1]} : vector<12x32xf32> to vector<1x32xf32>
    %525 = arith.subf %523, %524 : vector<1x32xf32>
    %cst_41 = arith.constant 1.000000e+00 : f32
    %526 = vector.broadcast %cst_41 : f32 to vector<1x32xf32>
    %527 = arith.divf %526, %525 : vector<1x32xf32>
    %528 = vector.extract_strided_slice %1 {offsets = [11, 0], sizes = [1, 32], strides = [1, 1]} : vector<12x32xf32> to vector<1x32xf32>
    %529 = vector.extract_strided_slice %1 {offsets = [9, 0], sizes = [1, 32], strides = [1, 1]} : vector<12x32xf32> to vector<1x32xf32>
    %530 = arith.subf %528, %529 : vector<1x32xf32>
    %cst_42 = arith.constant 1.000000e+00 : f32
    %531 = vector.broadcast %cst_42 : f32 to vector<1x32xf32>
    %532 = arith.divf %531, %530 : vector<1x32xf32>
    %533 = vector.extract_strided_slice %1 {offsets = [8, 0], sizes = [1, 32], strides = [1, 1]} : vector<12x32xf32> to vector<1x32xf32>
    %534 = vector.broadcast %533 : vector<1x32xf32> to vector<128x32xf32>
    %535 = arith.subf %0, %534 : vector<128x32xf32>
    %536 = vector.broadcast %527 : vector<1x32xf32> to vector<128x32xf32>
    %537 = arith.mulf %535, %536 : vector<128x32xf32>
    %538 = vector.extract_strided_slice %1 {offsets = [11, 0], sizes = [1, 32], strides = [1, 1]} : vector<12x32xf32> to vector<1x32xf32>
    %539 = vector.broadcast %538 : vector<1x32xf32> to vector<128x32xf32>
    %540 = arith.subf %539, %0 : vector<128x32xf32>
    %541 = vector.broadcast %532 : vector<1x32xf32> to vector<128x32xf32>
    %542 = arith.mulf %540, %541 : vector<128x32xf32>
    %543 = arith.mulf %537, %315 : vector<128x32xf32>
    %544 = arith.mulf %542, %338 : vector<128x32xf32>
    %545 = arith.addf %543, %544 : vector<128x32xf32>
    %546 = vector.extract_strided_slice %1 {offsets = [3, 0], sizes = [1, 32], strides = [1, 1]} : vector<12x32xf32> to vector<1x32xf32>
    %547 = vector.extract_strided_slice %1 {offsets = [0, 0], sizes = [1, 32], strides = [1, 1]} : vector<12x32xf32> to vector<1x32xf32>
    %548 = arith.subf %546, %547 : vector<1x32xf32>
    %cst_43 = arith.constant 1.000000e+00 : f32
    %549 = vector.broadcast %cst_43 : f32 to vector<1x32xf32>
    %550 = arith.divf %549, %548 : vector<1x32xf32>
    %551 = vector.extract_strided_slice %1 {offsets = [4, 0], sizes = [1, 32], strides = [1, 1]} : vector<12x32xf32> to vector<1x32xf32>
    %552 = vector.extract_strided_slice %1 {offsets = [1, 0], sizes = [1, 32], strides = [1, 1]} : vector<12x32xf32> to vector<1x32xf32>
    %553 = arith.subf %551, %552 : vector<1x32xf32>
    %cst_44 = arith.constant 1.000000e+00 : f32
    %554 = vector.broadcast %cst_44 : f32 to vector<1x32xf32>
    %555 = arith.divf %554, %553 : vector<1x32xf32>
    %556 = vector.extract_strided_slice %1 {offsets = [0, 0], sizes = [1, 32], strides = [1, 1]} : vector<12x32xf32> to vector<1x32xf32>
    %557 = vector.broadcast %556 : vector<1x32xf32> to vector<128x32xf32>
    %558 = arith.subf %0, %557 : vector<128x32xf32>
    %559 = vector.broadcast %550 : vector<1x32xf32> to vector<128x32xf32>
    %560 = arith.mulf %558, %559 : vector<128x32xf32>
    %561 = vector.extract_strided_slice %1 {offsets = [4, 0], sizes = [1, 32], strides = [1, 1]} : vector<12x32xf32> to vector<1x32xf32>
    %562 = vector.broadcast %561 : vector<1x32xf32> to vector<128x32xf32>
    %563 = arith.subf %562, %0 : vector<128x32xf32>
    %564 = vector.broadcast %555 : vector<1x32xf32> to vector<128x32xf32>
    %565 = arith.mulf %563, %564 : vector<128x32xf32>
    %566 = arith.mulf %560, %361 : vector<128x32xf32>
    %567 = arith.mulf %565, %384 : vector<128x32xf32>
    %568 = arith.addf %566, %567 : vector<128x32xf32>
    %569 = vector.extract_strided_slice %1 {offsets = [4, 0], sizes = [1, 32], strides = [1, 1]} : vector<12x32xf32> to vector<1x32xf32>
    %570 = vector.extract_strided_slice %1 {offsets = [1, 0], sizes = [1, 32], strides = [1, 1]} : vector<12x32xf32> to vector<1x32xf32>
    %571 = arith.subf %569, %570 : vector<1x32xf32>
    %cst_45 = arith.constant 1.000000e+00 : f32
    %572 = vector.broadcast %cst_45 : f32 to vector<1x32xf32>
    %573 = arith.divf %572, %571 : vector<1x32xf32>
    %574 = vector.extract_strided_slice %1 {offsets = [5, 0], sizes = [1, 32], strides = [1, 1]} : vector<12x32xf32> to vector<1x32xf32>
    %575 = vector.extract_strided_slice %1 {offsets = [2, 0], sizes = [1, 32], strides = [1, 1]} : vector<12x32xf32> to vector<1x32xf32>
    %576 = arith.subf %574, %575 : vector<1x32xf32>
    %cst_46 = arith.constant 1.000000e+00 : f32
    %577 = vector.broadcast %cst_46 : f32 to vector<1x32xf32>
    %578 = arith.divf %577, %576 : vector<1x32xf32>
    %579 = vector.extract_strided_slice %1 {offsets = [1, 0], sizes = [1, 32], strides = [1, 1]} : vector<12x32xf32> to vector<1x32xf32>
    %580 = vector.broadcast %579 : vector<1x32xf32> to vector<128x32xf32>
    %581 = arith.subf %0, %580 : vector<128x32xf32>
    %582 = vector.broadcast %573 : vector<1x32xf32> to vector<128x32xf32>
    %583 = arith.mulf %581, %582 : vector<128x32xf32>
    %584 = vector.extract_strided_slice %1 {offsets = [5, 0], sizes = [1, 32], strides = [1, 1]} : vector<12x32xf32> to vector<1x32xf32>
    %585 = vector.broadcast %584 : vector<1x32xf32> to vector<128x32xf32>
    %586 = arith.subf %585, %0 : vector<128x32xf32>
    %587 = vector.broadcast %578 : vector<1x32xf32> to vector<128x32xf32>
    %588 = arith.mulf %586, %587 : vector<128x32xf32>
    %589 = arith.mulf %583, %384 : vector<128x32xf32>
    %590 = arith.mulf %588, %407 : vector<128x32xf32>
    %591 = arith.addf %589, %590 : vector<128x32xf32>
    %592 = vector.extract_strided_slice %1 {offsets = [5, 0], sizes = [1, 32], strides = [1, 1]} : vector<12x32xf32> to vector<1x32xf32>
    %593 = vector.extract_strided_slice %1 {offsets = [2, 0], sizes = [1, 32], strides = [1, 1]} : vector<12x32xf32> to vector<1x32xf32>
    %594 = arith.subf %592, %593 : vector<1x32xf32>
    %cst_47 = arith.constant 1.000000e+00 : f32
    %595 = vector.broadcast %cst_47 : f32 to vector<1x32xf32>
    %596 = arith.divf %595, %594 : vector<1x32xf32>
    %597 = vector.extract_strided_slice %1 {offsets = [6, 0], sizes = [1, 32], strides = [1, 1]} : vector<12x32xf32> to vector<1x32xf32>
    %598 = vector.extract_strided_slice %1 {offsets = [3, 0], sizes = [1, 32], strides = [1, 1]} : vector<12x32xf32> to vector<1x32xf32>
    %599 = arith.subf %597, %598 : vector<1x32xf32>
    %cst_48 = arith.constant 1.000000e+00 : f32
    %600 = vector.broadcast %cst_48 : f32 to vector<1x32xf32>
    %601 = arith.divf %600, %599 : vector<1x32xf32>
    %602 = vector.extract_strided_slice %1 {offsets = [2, 0], sizes = [1, 32], strides = [1, 1]} : vector<12x32xf32> to vector<1x32xf32>
    %603 = vector.broadcast %602 : vector<1x32xf32> to vector<128x32xf32>
    %604 = arith.subf %0, %603 : vector<128x32xf32>
    %605 = vector.broadcast %596 : vector<1x32xf32> to vector<128x32xf32>
    %606 = arith.mulf %604, %605 : vector<128x32xf32>
    %607 = vector.extract_strided_slice %1 {offsets = [6, 0], sizes = [1, 32], strides = [1, 1]} : vector<12x32xf32> to vector<1x32xf32>
    %608 = vector.broadcast %607 : vector<1x32xf32> to vector<128x32xf32>
    %609 = arith.subf %608, %0 : vector<128x32xf32>
    %610 = vector.broadcast %601 : vector<1x32xf32> to vector<128x32xf32>
    %611 = arith.mulf %609, %610 : vector<128x32xf32>
    %612 = arith.mulf %606, %407 : vector<128x32xf32>
    %613 = arith.mulf %611, %430 : vector<128x32xf32>
    %614 = arith.addf %612, %613 : vector<128x32xf32>
    %615 = vector.extract_strided_slice %1 {offsets = [6, 0], sizes = [1, 32], strides = [1, 1]} : vector<12x32xf32> to vector<1x32xf32>
    %616 = vector.extract_strided_slice %1 {offsets = [3, 0], sizes = [1, 32], strides = [1, 1]} : vector<12x32xf32> to vector<1x32xf32>
    %617 = arith.subf %615, %616 : vector<1x32xf32>
    %cst_49 = arith.constant 1.000000e+00 : f32
    %618 = vector.broadcast %cst_49 : f32 to vector<1x32xf32>
    %619 = arith.divf %618, %617 : vector<1x32xf32>
    %620 = vector.extract_strided_slice %1 {offsets = [7, 0], sizes = [1, 32], strides = [1, 1]} : vector<12x32xf32> to vector<1x32xf32>
    %621 = vector.extract_strided_slice %1 {offsets = [4, 0], sizes = [1, 32], strides = [1, 1]} : vector<12x32xf32> to vector<1x32xf32>
    %622 = arith.subf %620, %621 : vector<1x32xf32>
    %cst_50 = arith.constant 1.000000e+00 : f32
    %623 = vector.broadcast %cst_50 : f32 to vector<1x32xf32>
    %624 = arith.divf %623, %622 : vector<1x32xf32>
    %625 = vector.extract_strided_slice %1 {offsets = [3, 0], sizes = [1, 32], strides = [1, 1]} : vector<12x32xf32> to vector<1x32xf32>
    %626 = vector.broadcast %625 : vector<1x32xf32> to vector<128x32xf32>
    %627 = arith.subf %0, %626 : vector<128x32xf32>
    %628 = vector.broadcast %619 : vector<1x32xf32> to vector<128x32xf32>
    %629 = arith.mulf %627, %628 : vector<128x32xf32>
    %630 = vector.extract_strided_slice %1 {offsets = [7, 0], sizes = [1, 32], strides = [1, 1]} : vector<12x32xf32> to vector<1x32xf32>
    %631 = vector.broadcast %630 : vector<1x32xf32> to vector<128x32xf32>
    %632 = arith.subf %631, %0 : vector<128x32xf32>
    %633 = vector.broadcast %624 : vector<1x32xf32> to vector<128x32xf32>
    %634 = arith.mulf %632, %633 : vector<128x32xf32>
    %635 = arith.mulf %629, %430 : vector<128x32xf32>
    %636 = arith.mulf %634, %453 : vector<128x32xf32>
    %637 = arith.addf %635, %636 : vector<128x32xf32>
    %638 = vector.extract_strided_slice %1 {offsets = [7, 0], sizes = [1, 32], strides = [1, 1]} : vector<12x32xf32> to vector<1x32xf32>
    %639 = vector.extract_strided_slice %1 {offsets = [4, 0], sizes = [1, 32], strides = [1, 1]} : vector<12x32xf32> to vector<1x32xf32>
    %640 = arith.subf %638, %639 : vector<1x32xf32>
    %cst_51 = arith.constant 1.000000e+00 : f32
    %641 = vector.broadcast %cst_51 : f32 to vector<1x32xf32>
    %642 = arith.divf %641, %640 : vector<1x32xf32>
    %643 = vector.extract_strided_slice %1 {offsets = [8, 0], sizes = [1, 32], strides = [1, 1]} : vector<12x32xf32> to vector<1x32xf32>
    %644 = vector.extract_strided_slice %1 {offsets = [5, 0], sizes = [1, 32], strides = [1, 1]} : vector<12x32xf32> to vector<1x32xf32>
    %645 = arith.subf %643, %644 : vector<1x32xf32>
    %cst_52 = arith.constant 1.000000e+00 : f32
    %646 = vector.broadcast %cst_52 : f32 to vector<1x32xf32>
    %647 = arith.divf %646, %645 : vector<1x32xf32>
    %648 = vector.extract_strided_slice %1 {offsets = [4, 0], sizes = [1, 32], strides = [1, 1]} : vector<12x32xf32> to vector<1x32xf32>
    %649 = vector.broadcast %648 : vector<1x32xf32> to vector<128x32xf32>
    %650 = arith.subf %0, %649 : vector<128x32xf32>
    %651 = vector.broadcast %642 : vector<1x32xf32> to vector<128x32xf32>
    %652 = arith.mulf %650, %651 : vector<128x32xf32>
    %653 = vector.extract_strided_slice %1 {offsets = [8, 0], sizes = [1, 32], strides = [1, 1]} : vector<12x32xf32> to vector<1x32xf32>
    %654 = vector.broadcast %653 : vector<1x32xf32> to vector<128x32xf32>
    %655 = arith.subf %654, %0 : vector<128x32xf32>
    %656 = vector.broadcast %647 : vector<1x32xf32> to vector<128x32xf32>
    %657 = arith.mulf %655, %656 : vector<128x32xf32>
    %658 = arith.mulf %652, %453 : vector<128x32xf32>
    %659 = arith.mulf %657, %476 : vector<128x32xf32>
    %660 = arith.addf %658, %659 : vector<128x32xf32>
    %661 = vector.extract_strided_slice %1 {offsets = [8, 0], sizes = [1, 32], strides = [1, 1]} : vector<12x32xf32> to vector<1x32xf32>
    %662 = vector.extract_strided_slice %1 {offsets = [5, 0], sizes = [1, 32], strides = [1, 1]} : vector<12x32xf32> to vector<1x32xf32>
    %663 = arith.subf %661, %662 : vector<1x32xf32>
    %cst_53 = arith.constant 1.000000e+00 : f32
    %664 = vector.broadcast %cst_53 : f32 to vector<1x32xf32>
    %665 = arith.divf %664, %663 : vector<1x32xf32>
    %666 = vector.extract_strided_slice %1 {offsets = [9, 0], sizes = [1, 32], strides = [1, 1]} : vector<12x32xf32> to vector<1x32xf32>
    %667 = vector.extract_strided_slice %1 {offsets = [6, 0], sizes = [1, 32], strides = [1, 1]} : vector<12x32xf32> to vector<1x32xf32>
    %668 = arith.subf %666, %667 : vector<1x32xf32>
    %cst_54 = arith.constant 1.000000e+00 : f32
    %669 = vector.broadcast %cst_54 : f32 to vector<1x32xf32>
    %670 = arith.divf %669, %668 : vector<1x32xf32>
    %671 = vector.extract_strided_slice %1 {offsets = [5, 0], sizes = [1, 32], strides = [1, 1]} : vector<12x32xf32> to vector<1x32xf32>
    %672 = vector.broadcast %671 : vector<1x32xf32> to vector<128x32xf32>
    %673 = arith.subf %0, %672 : vector<128x32xf32>
    %674 = vector.broadcast %665 : vector<1x32xf32> to vector<128x32xf32>
    %675 = arith.mulf %673, %674 : vector<128x32xf32>
    %676 = vector.extract_strided_slice %1 {offsets = [9, 0], sizes = [1, 32], strides = [1, 1]} : vector<12x32xf32> to vector<1x32xf32>
    %677 = vector.broadcast %676 : vector<1x32xf32> to vector<128x32xf32>
    %678 = arith.subf %677, %0 : vector<128x32xf32>
    %679 = vector.broadcast %670 : vector<1x32xf32> to vector<128x32xf32>
    %680 = arith.mulf %678, %679 : vector<128x32xf32>
    %681 = arith.mulf %675, %476 : vector<128x32xf32>
    %682 = arith.mulf %680, %499 : vector<128x32xf32>
    %683 = arith.addf %681, %682 : vector<128x32xf32>
    %684 = vector.extract_strided_slice %1 {offsets = [9, 0], sizes = [1, 32], strides = [1, 1]} : vector<12x32xf32> to vector<1x32xf32>
    %685 = vector.extract_strided_slice %1 {offsets = [6, 0], sizes = [1, 32], strides = [1, 1]} : vector<12x32xf32> to vector<1x32xf32>
    %686 = arith.subf %684, %685 : vector<1x32xf32>
    %cst_55 = arith.constant 1.000000e+00 : f32
    %687 = vector.broadcast %cst_55 : f32 to vector<1x32xf32>
    %688 = arith.divf %687, %686 : vector<1x32xf32>
    %689 = vector.extract_strided_slice %1 {offsets = [10, 0], sizes = [1, 32], strides = [1, 1]} : vector<12x32xf32> to vector<1x32xf32>
    %690 = vector.extract_strided_slice %1 {offsets = [7, 0], sizes = [1, 32], strides = [1, 1]} : vector<12x32xf32> to vector<1x32xf32>
    %691 = arith.subf %689, %690 : vector<1x32xf32>
    %cst_56 = arith.constant 1.000000e+00 : f32
    %692 = vector.broadcast %cst_56 : f32 to vector<1x32xf32>
    %693 = arith.divf %692, %691 : vector<1x32xf32>
    %694 = vector.extract_strided_slice %1 {offsets = [6, 0], sizes = [1, 32], strides = [1, 1]} : vector<12x32xf32> to vector<1x32xf32>
    %695 = vector.broadcast %694 : vector<1x32xf32> to vector<128x32xf32>
    %696 = arith.subf %0, %695 : vector<128x32xf32>
    %697 = vector.broadcast %688 : vector<1x32xf32> to vector<128x32xf32>
    %698 = arith.mulf %696, %697 : vector<128x32xf32>
    %699 = vector.extract_strided_slice %1 {offsets = [10, 0], sizes = [1, 32], strides = [1, 1]} : vector<12x32xf32> to vector<1x32xf32>
    %700 = vector.broadcast %699 : vector<1x32xf32> to vector<128x32xf32>
    %701 = arith.subf %700, %0 : vector<128x32xf32>
    %702 = vector.broadcast %693 : vector<1x32xf32> to vector<128x32xf32>
    %703 = arith.mulf %701, %702 : vector<128x32xf32>
    %704 = arith.mulf %698, %499 : vector<128x32xf32>
    %705 = arith.mulf %703, %522 : vector<128x32xf32>
    %706 = arith.addf %704, %705 : vector<128x32xf32>
    %707 = vector.extract_strided_slice %1 {offsets = [10, 0], sizes = [1, 32], strides = [1, 1]} : vector<12x32xf32> to vector<1x32xf32>
    %708 = vector.extract_strided_slice %1 {offsets = [7, 0], sizes = [1, 32], strides = [1, 1]} : vector<12x32xf32> to vector<1x32xf32>
    %709 = arith.subf %707, %708 : vector<1x32xf32>
    %cst_57 = arith.constant 1.000000e+00 : f32
    %710 = vector.broadcast %cst_57 : f32 to vector<1x32xf32>
    %711 = arith.divf %710, %709 : vector<1x32xf32>
    %712 = vector.extract_strided_slice %1 {offsets = [11, 0], sizes = [1, 32], strides = [1, 1]} : vector<12x32xf32> to vector<1x32xf32>
    %713 = vector.extract_strided_slice %1 {offsets = [8, 0], sizes = [1, 32], strides = [1, 1]} : vector<12x32xf32> to vector<1x32xf32>
    %714 = arith.subf %712, %713 : vector<1x32xf32>
    %cst_58 = arith.constant 1.000000e+00 : f32
    %715 = vector.broadcast %cst_58 : f32 to vector<1x32xf32>
    %716 = arith.divf %715, %714 : vector<1x32xf32>
    %717 = vector.extract_strided_slice %1 {offsets = [7, 0], sizes = [1, 32], strides = [1, 1]} : vector<12x32xf32> to vector<1x32xf32>
    %718 = vector.broadcast %717 : vector<1x32xf32> to vector<128x32xf32>
    %719 = arith.subf %0, %718 : vector<128x32xf32>
    %720 = vector.broadcast %711 : vector<1x32xf32> to vector<128x32xf32>
    %721 = arith.mulf %719, %720 : vector<128x32xf32>
    %722 = vector.extract_strided_slice %1 {offsets = [11, 0], sizes = [1, 32], strides = [1, 1]} : vector<12x32xf32> to vector<1x32xf32>
    %723 = vector.broadcast %722 : vector<1x32xf32> to vector<128x32xf32>
    %724 = arith.subf %723, %0 : vector<128x32xf32>
    %725 = vector.broadcast %716 : vector<1x32xf32> to vector<128x32xf32>
    %726 = arith.mulf %724, %725 : vector<128x32xf32>
    %727 = arith.mulf %721, %522 : vector<128x32xf32>
    %728 = arith.mulf %726, %545 : vector<128x32xf32>
    %729 = arith.addf %727, %728 : vector<128x32xf32>
    %730 = tpu.concatenate %9, %568, %591, %614, %637, %660, %683, %706, %729 in 1 : vector<128x32xf32>, vector<128x32xf32>, vector<128x32xf32>, vector<128x32xf32>, vector<128x32xf32>, vector<128x32xf32>, vector<128x32xf32>, vector<128x32xf32>, vector<128x32xf32> -> vector<128x288xf32>
    %c0_59 = arith.constant 0 : index
    %c0_60 = arith.constant 0 : index
    %731 = vector.load %arg3[%c0_59, %c0_60] : memref<288x128xf32, #tpu.memory_space<vmem>>, vector<288x128xf32>
    %cst_61 = arith.constant dense<0.000000e+00> : vector<128x128xf32>
    %732 = tpu.matmul %730, %731, %cst_61 {dimension_numbers = #tpu.dot_dimension_numbers<[1], [0], [0], [1], [0, 0, 1, 1], [], []>} : vector<128x288xf32>, vector<288x128xf32>, vector<128x128xf32> -> vector<128x128xf32>
    %c0_62 = arith.constant 0 : index
    %c0_63 = arith.constant 0 : index
    %733 = vector.load %arg4[%c0_62, %c0_63] : memref<128x128xf32, #tpu.memory_space<vmem>>, vector<128x128xf32>
    tpu.vector_store %arg4[%c0_62, %c0_63], %732 {strides = array<i32>} : memref<128x128xf32, #tpu.memory_space<vmem>>, vector<128x128xf32>,
    return
  }
  func.func @transform_0(%arg0: i32) -> (i32, i32) {
    %c0_i32 = arith.constant 0 : i32
    %c0_i32_0 = arith.constant 0 : i32
    return %arg0, %c0_i32 : i32, i32
  }
  func.func @transform_1(%arg0: i32) -> (i32, i32) {
    %c0_i32 = arith.constant 0 : i32
    %c0_i32_0 = arith.constant 0 : i32
    %c0_i32_1 = arith.constant 0 : i32
    return %c0_i32, %c0_i32_0 : i32, i32
  }
  func.func @transform_2(%arg0: i32) -> (i32, i32) {
    %c0_i32 = arith.constant 0 : i32
    %c0_i32_0 = arith.constant 0 : i32
    %c0_i32_1 = arith.constant 0 : i32
    return %c0_i32, %c0_i32_0 : i32, i32
  }
  func.func @transform_3(%arg0: i32) -> (i32, i32) {
    %c0_i32 = arith.constant 0 : i32
    %c0_i32_0 = arith.constant 0 : i32
    return %arg0, %c0_i32 : i32, i32
  }
}

</mosaic_0001>

<llo_original>
// kernel: tpu_custom_call.1
$region0: #{tpu_custom_call.1}
  #allocation0 [shape = 'u32[]', space=smem, size = 0x4, offset = 0x4, fixed_abs, tag = 'smem constant byte address 0x4 - core index']
  #allocation1 [shape = 'u32[144,128]{1,0:T(1,128)}', space=vmem, size = 0x12000, scoped, tag = 'internal scratch']
  %s0 = inlined_call_operand.vmem [shape: f32[256,32], index: 0, kind: input, shape index: {}]
  %s1 = inlined_call_operand.vmem [shape: f32[12,32], index: 1, kind: input, shape index: {}]
  %s2 = inlined_call_operand.vmem [shape: f32[288,128], index: 2, kind: input, shape index: {}]
  %s3 = inlined_call_operand.hbm [shape: f32[256,128], index: 3, kind: output, shape index: {}]
  %s4 = sld [smem:[#allocation0]]
  $region45: #{tpu_custom_call.1} parent=0
    _
  %s6 = ssub.s32 1, %s4
  %s7 = scalar_select 0, %s6, %s4
  $region1: #{tpu_custom_call.1} parent=0
    #allocation2 [shape = 'u8[131072]{0}', space=vmem, size = 0x20000, scoped, tag = 'output window, operand 0']
    #allocation3 [shape = 's32[2]{0}', space=sflag, size = 0x8, scoped, tag = 'scoped memory for tpu_custom_call.1']
    %8 = vsyncpa [#allocation3], 0
    %s9 = scalar_lea.sflag [#allocation3], 1
    %10 = vsyncpa %s9, 0
    loop: start=0, step=1, limit=4
    $region2: #{tpu_custom_call.1} parent=1 // loop_pre_header
      _
    $region3: #{tpu_custom_call.1} parent=1 // loop_header
      %s12 = sphi 0, %s16
      %p13 = scmp.ge.s32.totalorder %s12, 4
      %s22 = sphi 0, %s24
      %s25 = sphi 0, %s22
      %s26 = sphi 0, %s25
      %s42 = sphi 0, %s26
      %s46 = sphi 0, %s46
      %s48 = sphi 0, %s46
      %s49 = sphi 0, %s48
      %s63 = sphi 0, %s49
      %s67 = sphi 0, %s67
      %s69 = sphi 0, %s67
      %s70 = sphi 0, %s69
      %s84 = sphi 0, %s70
      %s90 = sphi 0, %s92
      %s93 = sphi 0, %s90
      %s94 = sphi 0, %s93
      %s110 = sphi 0, %s94
    $region4: #{tpu_custom_call.1} parent=1 // loop_header_branch
      %15 = sbr.rel (%p13) target = $region8
    $region5: #{tpu_custom_call.1} parent=1 // loop_body
      %s17 = ssub.s32 %s12, 1
      %s18 = ssub.s32 %s12, 2
      %s19 = sadd.s32 %s12, 1
      %s20 = ssub.s32 %s12, %s19
      %p21 = scmp.eq.s32.totalorder %s20, 0
      %s23 = sadd.s32 %s22, 1
      %s24 = scalar_select %p21, %s22, %s23
      %p27 = pneg %p21
      %p28 = scmp.eq.s32.totalorder %s12, 1
      %p29 = por %p27, %p28
      %p30 = scmp.ne.s32.totalorder %s22, %s25
      %p31 = scmp.eq.s32.totalorder %s12, 0
      %p32 = por %p30, %p31
      %p33 = scmp.ne.s32.totalorder %s22, %s25
      %p34 = scmp.eq.s32.totalorder %s17, 1
      %p35 = por %p33, %p34
      %p36 = scmp.ne.s32.totalorder %s25, %s26
      %p37 = scmp.eq.s32.totalorder %s17, 0
      %p38 = por %p36, %p37
      %p39 = scmp.ne.s32.totalorder %s25, %s26
      %p40 = scmp.eq.s32.totalorder %s18, 1
      %p41 = por %p39, %p40
      %p43 = scmp.ne.s32.totalorder %s26, %s42
      %p44 = scmp.eq.s32.totalorder %s18, 0
      %p45 = por %p43, %p44
      %s47 = sadd.s32 %s46, 1
      %p50 = scmp.eq.s32.totalorder %s12, 1
      %p51 = scmp.ne.s32.totalorder %s46, %s48
      %p52 = scmp.eq.s32.totalorder %s12, 0
      %p53 = por %p51, %p52
      %p54 = scmp.ne.s32.totalorder %s46, %s48
      %p55 = scmp.eq.s32.totalorder %s17, 1
      %p56 = por %p54, %p55
      %p57 = scmp.ne.s32.totalorder %s48, %s49
      %p58 = scmp.eq.s32.totalorder %s17, 0
      %p59 = por %p57, %p58
      %p60 = scmp.ne.s32.totalorder %s48, %s49
      %p61 = scmp.eq.s32.totalorder %s18, 1
      %p62 = por %p60, %p61
      %p64 = scmp.ne.s32.totalorder %s49, %s63
      %p65 = scmp.eq.s32.totalorder %s18, 0
      %p66 = por %p64, %p65
      %s68 = sadd.s32 %s67, 1
      %p71 = scmp.eq.s32.totalorder %s12, 1
      %p72 = scmp.ne.s32.totalorder %s67, %s69
      %p73 = scmp.eq.s32.totalorder %s12, 0
      %p74 = por %p72, %p73
      %p75 = scmp.ne.s32.totalorder %s67, %s69
      %p76 = scmp.eq.s32.totalorder %s17, 1
      %p77 = por %p75, %p76
      %p78 = scmp.ne.s32.totalorder %s69, %s70
      %p79 = scmp.eq.s32.totalorder %s17, 0
      %p80 = por %p78, %p79
      %p81 = scmp.ne.s32.totalorder %s69, %s70
      %p82 = scmp.eq.s32.totalorder %s18, 1
      %p83 = por %p81, %p82
      %p85 = scmp.ne.s32.totalorder %s70, %s84
      %p86 = scmp.eq.s32.totalorder %s18, 0
      %p87 = por %p85, %p86
      %s88 = ssub.s32 %s12, %s19
      %p89 = scmp.eq.s32.totalorder %s88, 0
      %s91 = sadd.s32 %s90, 1
      %s92 = scalar_select %p89, %s90, %s91
      %p95 = pneg %p89
      %p96 = scmp.eq.s32.totalorder %s12, 1
      %p97 = por %p95, %p96
      %p98 = scmp.ne.s32.totalorder %s90, %s93
      %p99 = scmp.eq.s32.totalorder %s12, 0
      %p100 = por %p98, %p99
      %p101 = scmp.ne.s32.totalorder %s90, %s93
      %p102 = scmp.eq.s32.totalorder %s17, 1
      %p103 = por %p101, %p102
      %p104 = scmp.ne.s32.totalorder %s93, %s94
      %p105 = scmp.eq.s32.totalorder %s17, 0
      %p106 = por %p104, %p105
      %p107 = scmp.ne.s32.totalorder %s93, %s94
      %p108 = scmp.eq.s32.totalorder %s18, 1
      %p109 = por %p107, %p108
      %p111 = scmp.ne.s32.totalorder %s94, %s110
      %p112 = scmp.eq.s32.totalorder %s18, 0
      %p113 = por %p111, %p112
      %p114 = scmp.le.s32.totalorder 1, %s12
      %p115 = scmp.lt.s32.totalorder %s12, 3
      %p116 = pnand %p114, %p115
      %p117 = pneg %p116
      // Predicated region
      $region9: #{tpu_custom_call.1} parent=5 // pred_check
        _
      $region10: #{tpu_custom_call.1} parent=5 // pred_check_branch
        %119 = sbr.rel (%p116) target = $region12
      $region11: #{tpu_custom_call.1} parent=5 // pred_region
        %s120 = ssub.s32 %s12, 1
        // Predicated region
        $region13: #{tpu_custom_call.1} parent=11 // pred_check
          %p121 = pneg %p59
        $region14: #{tpu_custom_call.1} parent=11 // pred_check_branch
          %123 = sbr.rel (%p121) target = $region16
        $region15: #{tpu_custom_call.1} parent=11 // pred_region
          _
        $region16: #{tpu_custom_call.1} parent=11 // pred_fallthru
          _
        // Predicated region
        $region17: #{tpu_custom_call.1} parent=11 // pred_check
          %p124 = pneg %p80
        $region18: #{tpu_custom_call.1} parent=11 // pred_check_branch
          %126 = sbr.rel (%p124) target = $region20
        $region19: #{tpu_custom_call.1} parent=11 // pred_region
          _
        $region20: #{tpu_custom_call.1} parent=11 // pred_fallthru
          _
      $region12: #{tpu_custom_call.1} parent=5 // pred_fallthru
        _
      %p127 = scmp.lt.s32.totalorder %s12, 2
      // Predicated region
      $region21: #{tpu_custom_call.1} parent=5 // pred_check
        %p128 = pneg %p127
      $region22: #{tpu_custom_call.1} parent=5 // pred_check_branch
        %130 = sbr.rel (%p128) target = $region24
      $region23: #{tpu_custom_call.1} parent=5 // pred_region
        // Predicated region
        $region25: #{tpu_custom_call.1} parent=23 // pred_check
          %p131 = pneg %p32
        $region26: #{tpu_custom_call.1} parent=23 // pred_check_branch
          %133 = sbr.rel (%p131) target = $region28
        $region27: #{tpu_custom_call.1} parent=23 // pred_region
          %s134 = smul.u32 16, %s12
          %p135 = scmp.lt.s32.totalorder %s134, 31
          %s136 = scalar_select %p135, %s134, 31
          %s137 = smul.addr %s136, 8
          %s138 = scalar_lea.vmem %s0, %s137
          %s139 = smul.u32 16, %s12
        $region28: #{tpu_custom_call.1} parent=23 // pred_fallthru
          _
      $region24: #{tpu_custom_call.1} parent=5 // pred_fallthru
        _
      %p140 = scmp.le.s32.totalorder 1, %s12
      %p141 = scmp.lt.s32.totalorder %s12, 3
      %p142 = pnand %p140, %p141
      %p143 = pneg %p142
      // Predicated region
      $region29: #{tpu_custom_call.1} parent=5 // pred_check
        _
      $region30: #{tpu_custom_call.1} parent=5 // pred_check_branch
        %145 = sbr.rel (%p142) target = $region32
      $region31: #{tpu_custom_call.1} parent=5 // pred_region
        %s146 = ssub.s32 %s12, 1
        %s147 = smul.u32 16, %s17
        %p148 = scmp.lt.s32.totalorder %s147, 31
        %s149 = scalar_select %p148, %s147, 31
        %s150 = smul.addr %s149, 8
        %s151 = scalar_lea.vmem %s0, %s150
        %p152 = pneg %p38
        %p153 = pneg %p35
        %p154 = pneg %p59
        %p155 = pneg %p56
        %p156 = pneg %p80
        %p157 = pneg %p77
        %p158 = pneg %p106
        %p159 = pneg %p103
        %s160 = sand.u32 %s93, 1
        %s161 = scalar_lea.sflag [#allocation3], %s160
        %s162 = sand.u32 %s93, 1
        %s163 = smul.addr %s162, 128
        %s164 = scalar_lea.vmem [#allocation2], %s163
        %s165 = smul.u32 16, %s17
        %p166 = scmp.lt.s32.totalorder %s165, 31
        %s167 = scalar_select %p166, %s165, 31
        %s168 = smul.addr %s167, 8
        %s169 = scalar_lea.vmem %s0, %s168
        %s170 = smul.u32 16, %s17
        %s171 = smul.u32 16, %s17
        %v172 = vld [vmem:[%s169] sm:$0xff]
        %v173 = vld [vmem:[%s169 + $0x8] sm:$0xff]
        %v174 = vld [vmem:[%s169 + $0x10] sm:$0xff]
        %v175 = vld [vmem:[%s169 + $0x18] sm:$0xff]
        %v176 = vld [vmem:[%s169 + $0x20] sm:$0xff]
        %v177 = vld [vmem:[%s169 + $0x28] sm:$0xff]
        %v178 = vld [vmem:[%s169 + $0x30] sm:$0xff]
        %v179 = vld [vmem:[%s169 + $0x38] sm:$0xff]
        %v180 = vld [vmem:[%s169 + $0x40] sm:$0xff]
        %v181 = vld [vmem:[%s169 + $0x48] sm:$0xff]
        %v182 = vld [vmem:[%s169 + $0x50] sm:$0xff]
        %v183 = vld [vmem:[%s169 + $0x58] sm:$0xff]
        %v184 = vld [vmem:[%s169 + $0x60] sm:$0xff]
        %v185 = vld [vmem:[%s169 + $0x68] sm:$0xff]
        %v186 = vld [vmem:[%s169 + $0x70] sm:$0xff]
        %v187 = vld [vmem:[%s169 + $0x78] sm:$0xff]
        %v188 = vld [vmem:[%s1] sm:$0xff]
        %v189 = vld [vmem:[%s1 + $0x8] sm:$0xf]
        %v190 = vsub.f32 0.0, %v172
        %v191 = vsub.f32 0.0, %v173
        %v192 = vsub.f32 0.0, %v174
        %v193 = vsub.f32 0.0, %v175
        %v194 = vsub.f32 0.0, %v176
        %v195 = vsub.f32 0.0, %v177
        %v196 = vsub.f32 0.0, %v178
        %v197 = vsub.f32 0.0, %v179
        %v198 = vsub.f32 0.0, %v180
        %v199 = vsub.f32 0.0, %v181
        %v200 = vsub.f32 0.0, %v182
        %v201 = vsub.f32 0.0, %v183
        %v202 = vsub.f32 0.0, %v184
        %v203 = vsub.f32 0.0, %v185
        %v204 = vsub.f32 0.0, %v186
        %v205 = vsub.f32 0.0, %v187
        %v206 = vmul.f32 %v190, 1.442695
        %v207 = vpow.pop %v206
        %v208 = vmul.f32 %v191, 1.442695
        %v209 = vpow.pop %v208
        %v210 = vmul.f32 %v192, 1.442695
        %v211 = vpow.pop %v210
        %v212 = vmul.f32 %v193, 1.442695
        %v213 = vpow.pop %v212
        %v214 = vmul.f32 %v194, 1.442695
        %v215 = vpow.pop %v214
        %v216 = vmul.f32 %v195, 1.442695
        %v217 = vpow.pop %v216
        %v218 = vmul.f32 %v196, 1.442695
        %v219 = vpow.pop %v218
        %v220 = vmul.f32 %v197, 1.442695
        %v221 = vpow.pop %v220
        %v222 = vmul.f32 %v198, 1.442695
        %v223 = vpow.pop %v222
        %v224 = vmul.f32 %v199, 1.442695
        %v225 = vpow.pop %v224
        %v226 = vmul.f32 %v200, 1.442695
        %v227 = vpow.pop %v226
        %v228 = vmul.f32 %v201, 1.442695
        %v229 = vpow.pop %v228
        %v230 = vmul.f32 %v202, 1.442695
        %v231 = vpow.pop %v230
        %v232 = vmul.f32 %v203, 1.442695
        %v233 = vpow.pop %v232
        %v234 = vmul.f32 %v204, 1.442695
        %v235 = vpow.pop %v234
        %v236 = vmul.f32 %v205, 1.442695
        %v237 = vpow.pop %v236
        %v238 = vadd.f32 %v207, 1.0
        %v239 = vadd.f32 %v209, 1.0
        %v240 = vadd.f32 %v211, 1.0
        %v241 = vadd.f32 %v213, 1.0
        %v242 = vadd.f32 %v215, 1.0
        %v243 = vadd.f32 %v217, 1.0
        %v244 = vadd.f32 %v219, 1.0
        %v245 = vadd.f32 %v221, 1.0
        %v246 = vadd.f32 %v223, 1.0
        %v247 = vadd.f32 %v225, 1.0
        %v248 = vadd.f32 %v227, 1.0
        %v249 = vadd.f32 %v229, 1.0
        %v250 = vadd.f32 %v231, 1.0
        %v251 = vadd.f32 %v233, 1.0
        %v252 = vadd.f32 %v235, 1.0
        %v253 = vadd.f32 %v237, 1.0
        %v254 = vrcp.pop %v238
        %v255 = vmul.f32 1.0, %v254
        %v256 = vrcp.pop %v239
        %v257 = vmul.f32 1.0, %v256
        %v258 = vrcp.pop %v240
        %v259 = vmul.f32 1.0, %v258
        %v260 = vrcp.pop %v241
        %v261 = vmul.f32 1.0, %v260
        %v262 = vrcp.pop %v242
        %v263 = vmul.f32 1.0, %v262
        %v264 = vrcp.pop %v243
        %v265 = vmul.f32 1.0, %v264
        %v266 = vrcp.pop %v244
        %v267 = vmul.f32 1.0, %v266
        %v268 = vrcp.pop %v245
        %v269 = vmul.f32 1.0, %v268
        %v270 = vrcp.pop %v246
        %v271 = vmul.f32 1.0, %v270
        %v272 = vrcp.pop %v247
        %v273 = vmul.f32 1.0, %v272
        %v274 = vrcp.pop %v248
        %v275 = vmul.f32 1.0, %v274
        %v276 = vrcp.pop %v249
        %v277 = vmul.f32 1.0, %v276
        %v278 = vrcp.pop %v250
        %v279 = vmul.f32 1.0, %v278
        %v280 = vrcp.pop %v251
        %v281 = vmul.f32 1.0, %v280
        %v282 = vrcp.pop %v252
        %v283 = vmul.f32 1.0, %v282
        %v284 = vrcp.pop %v253
        %v285 = vmul.f32 1.0, %v284
        %v286 = vmul.f32 %v172, %v255
        %v287 = vmul.f32 %v173, %v257
        %v288 = vmul.f32 %v174, %v259
        %v289 = vmul.f32 %v175, %v261
        %v290 = vmul.f32 %v176, %v263
        %v291 = vmul.f32 %v177, %v265
        %v292 = vmul.f32 %v178, %v267
        %v293 = vmul.f32 %v179, %v269
        %v294 = vmul.f32 %v180, %v271
        %v295 = vmul.f32 %v181, %v273
        %v296 = vmul.f32 %v182, %v275
        %v297 = vmul.f32 %v183, %v277
        %v298 = vmul.f32 %v184, %v279
        %v299 = vmul.f32 %v185, %v281
        %v300 = vmul.f32 %v186, %v283
        %v301 = vmul.f32 %v187, %v285
        %v302 = vlaneseq
        %v303 = vshrl.u32 %v302, 7
        %v304 = vsub.s32 0, %v303
        %v305 = vrot.slane %v188, %v304
        %vm306 = vcmp.ge.f32.partialorder %v172, %v305
        %vm307 = vcmp.ge.f32.partialorder %v173, %v305
        %vm308 = vcmp.ge.f32.partialorder %v174, %v305
        %vm309 = vcmp.ge.f32.partialorder %v175, %v305
        %vm310 = vcmp.ge.f32.partialorder %v176, %v305
        %vm311 = vcmp.ge.f32.partialorder %v177, %v305
        %vm312 = vcmp.ge.f32.partialorder %v178, %v305
        %vm313 = vcmp.ge.f32.partialorder %v179, %v305
        %vm314 = vcmp.ge.f32.partialorder %v180, %v305
        %vm315 = vcmp.ge.f32.partialorder %v181, %v305
        %vm316 = vcmp.ge.f32.partialorder %v182, %v305
        %vm317 = vcmp.ge.f32.partialorder %v183, %v305
        %vm318 = vcmp.ge.f32.partialorder %v184, %v305
        %vm319 = vcmp.ge.f32.partialorder %v185, %v305
        %vm320 = vcmp.ge.f32.partialorder %v186, %v305
        %vm321 = vcmp.ge.f32.partialorder %v187, %v305
        %v322 = vlaneseq
        %v323 = vshrl.u32 %v322, 7
        %v324 = vsub.s32 1, %v323
        %v325 = vrot.slane %v188, %v324
        %vm326 = vcmp.lt.f32.partialorder %v172, %v325
        %vm327 = vcmp.lt.f32.partialorder %v173, %v325
        %vm328 = vcmp.lt.f32.partialorder %v174, %v325
        %vm329 = vcmp.lt.f32.partialorder %v175, %v325
        %vm330 = vcmp.lt.f32.partialorder %v176, %v325
        %vm331 = vcmp.lt.f32.partialorder %v177, %v325
        %vm332 = vcmp.lt.f32.partialorder %v178, %v325
        %vm333 = vcmp.lt.f32.partialorder %v179, %v325
        %vm334 = vcmp.lt.f32.partialorder %v180, %v325
        %vm335 = vcmp.lt.f32.partialorder %v181, %v325
        %vm336 = vcmp.lt.f32.partialorder %v182, %v325
        %vm337 = vcmp.lt.f32.partialorder %v183, %v325
        %vm338 = vcmp.lt.f32.partialorder %v184, %v325
        %vm339 = vcmp.lt.f32.partialorder %v185, %v325
        %vm340 = vcmp.lt.f32.partialorder %v186, %v325
        %vm341 = vcmp.lt.f32.partialorder %v187, %v325
        %vm342 = vmand %vm306, %vm326
        %vm343 = vmand %vm307, %vm327
        %vm344 = vmand %vm308, %vm328
        %vm345 = vmand %vm309, %vm329
        %vm346 = vmand %vm310, %vm330
        %vm347 = vmand %vm311, %vm331
        %vm348 = vmand %vm312, %vm332
        %vm349 = vmand %vm313, %vm333
        %vm350 = vmand %vm314, %vm334
        %vm351 = vmand %vm315, %vm335
        %vm352 = vmand %vm316, %vm336
        %vm353 = vmand %vm317, %vm337
        %vm354 = vmand %vm318, %vm338
        %vm355 = vmand %vm319, %vm339
        %vm356 = vmand %vm320, %vm340
        %vm357 = vmand %vm321, %vm341
        %v358 = vsel %vm342, 1, 0
        %v359 = vsel %vm343, 1, 0
        %v360 = vsel %vm344, 1, 0
        %v361 = vsel %vm345, 1, 0
        %v362 = vsel %vm346, 1, 0
        %v363 = vsel %vm347, 1, 0
        %v364 = vsel %vm348, 1, 0
        %v365 = vsel %vm349, 1, 0
        %v366 = vsel %vm350, 1, 0
        %v367 = vsel %vm351, 1, 0
        %v368 = vsel %vm352, 1, 0
        %v369 = vsel %vm353, 1, 0
        %v370 = vsel %vm354, 1, 0
        %v371 = vsel %vm355, 1, 0
        %v372 = vsel %vm356, 1, 0
        %v373 = vsel %vm357, 1, 0
        %v374 = vcvt.s32.f32 %v358
        %v375 = vcvt.s32.f32 %v359
        %v376 = vcvt.s32.f32 %v360
        %v377 = vcvt.s32.f32 %v361
        %v378 = vcvt.s32.f32 %v362
        %v379 = vcvt.s32.f32 %v363
        %v380 = vcvt.s32.f32 %v364
        %v381 = vcvt.s32.f32 %v365
        %v382 = vcvt.s32.f32 %v366
        %v383 = vcvt.s32.f32 %v367
        %v384 = vcvt.s32.f32 %v368
        %v385 = vcvt.s32.f32 %v369
        %v386 = vcvt.s32.f32 %v370
        %v387 = vcvt.s32.f32 %v371
        %v388 = vcvt.s32.f32 %v372
        %v389 = vcvt.s32.f32 %v373
        %vm390 = vcmp.ge.f32.partialorder %v172, %v325
        %vm391 = vcmp.ge.f32.partialorder %v173, %v325
        %vm392 = vcmp.ge.f32.partialorder %v174, %v325
        %vm393 = vcmp.ge.f32.partialorder %v175, %v325
        %vm394 = vcmp.ge.f32.partialorder %v176, %v325
        %vm395 = vcmp.ge.f32.partialorder %v177, %v325
        %vm396 = vcmp.ge.f32.partialorder %v178, %v325
        %vm397 = vcmp.ge.f32.partialorder %v179, %v325
        %vm398 = vcmp.ge.f32.partialorder %v180, %v325
        %vm399 = vcmp.ge.f32.partialorder %v181, %v325
        %vm400 = vcmp.ge.f32.partialorder %v182, %v325
        %vm401 = vcmp.ge.f32.partialorder %v183, %v325
        %vm402 = vcmp.ge.f32.partialorder %v184, %v325
        %vm403 = vcmp.ge.f32.partialorder %v185, %v325
        %vm404 = vcmp.ge.f32.partialorder %v186, %v325
        %vm405 = vcmp.ge.f32.partialorder %v187, %v325
        %v406 = vlaneseq
        %v407 = vshrl.u32 %v406, 7
        %v408 = vsub.s32 2, %v407
        %v409 = vrot.slane %v188, %v408
        %vm410 = vcmp.lt.f32.partialorder %v172, %v409
        %vm411 = vcmp.lt.f32.partialorder %v173, %v409
        %vm412 = vcmp.lt.f32.partialorder %v174, %v409
        %vm413 = vcmp.lt.f32.partialorder %v175, %v409
        %vm414 = vcmp.lt.f32.partialorder %v176, %v409
        %vm415 = vcmp.lt.f32.partialorder %v177, %v409
        %vm416 = vcmp.lt.f32.partialorder %v178, %v409
        %vm417 = vcmp.lt.f32.partialorder %v179, %v409
        %vm418 = vcmp.lt.f32.partialorder %v180, %v409
        %vm419 = vcmp.lt.f32.partialorder %v181, %v409
        %vm420 = vcmp.lt.f32.partialorder %v182, %v409
        %vm421 = vcmp.lt.f32.partialorder %v183, %v409
        %vm422 = vcmp.lt.f32.partialorder %v184, %v409
        %vm423 = vcmp.lt.f32.partialorder %v185, %v409
        %vm424 = vcmp.lt.f32.partialorder %v186, %v409
        %vm425 = vcmp.lt.f32.partialorder %v187, %v409
        %vm426 = vmand %vm390, %vm410
        %vm427 = vmand %vm391, %vm411
        %vm428 = vmand %vm392, %vm412
        %vm429 = vmand %vm393, %vm413
        %vm430 = vmand %vm394, %vm414
        %vm431 = vmand %vm395, %vm415
        %vm432 = vmand %vm396, %vm416
        %vm433 = vmand %vm397, %vm417
        %vm434 = vmand %vm398, %vm418
        %vm435 = vmand %vm399, %vm419
        %vm436 = vmand %vm400, %vm420
        %vm437 = vmand %vm401, %vm421
        %vm438 = vmand %vm402, %vm422
        %vm439 = vmand %vm403, %vm423
        %vm440 = vmand %vm404, %vm424
        %vm441 = vmand %vm405, %vm425
        %v442 = vsel %vm426, 1, 0
        %v443 = vsel %vm427, 1, 0
        %v444 = vsel %vm428, 1, 0
        %v445 = vsel %vm429, 1, 0
        %v446 = vsel %vm430, 1, 0
        %v447 = vsel %vm431, 1, 0
        %v448 = vsel %vm432, 1, 0
        %v449 = vsel %vm433, 1, 0
        %v450 = vsel %vm434, 1, 0
        %v451 = vsel %vm435, 1, 0
        %v452 = vsel %vm436, 1, 0
        %v453 = vsel %vm437, 1, 0
        %v454 = vsel %vm438, 1, 0
        %v455 = vsel %vm439, 1, 0
        %v456 = vsel %vm440, 1, 0
        %v457 = vsel %vm441, 1, 0
        %v458 = vcvt.s32.f32 %v442
        %v459 = vcvt.s32.f32 %v443
        %v460 = vcvt.s32.f32 %v444
        %v461 = vcvt.s32.f32 %v445
        %v462 = vcvt.s32.f32 %v446
        %v463 = vcvt.s32.f32 %v447
        %v464 = vcvt.s32.f32 %v448
        %v465 = vcvt.s32.f32 %v449
        %v466 = vcvt.s32.f32 %v450
        %v467 = vcvt.s32.f32 %v451
        %v468 = vcvt.s32.f32 %v452
        %v469 = vcvt.s32.f32 %v453
        %v470 = vcvt.s32.f32 %v454
        %v471 = vcvt.s32.f32 %v455
        %v472 = vcvt.s32.f32 %v456
        %v473 = vcvt.s32.f32 %v457
        %vm474 = vcmp.ge.f32.partialorder %v172, %v409
        %vm475 = vcmp.ge.f32.partialorder %v173, %v409
        %vm476 = vcmp.ge.f32.partialorder %v174, %v409
        %vm477 = vcmp.ge.f32.partialorder %v175, %v409
        %vm478 = vcmp.ge.f32.partialorder %v176, %v409
        %vm479 = vcmp.ge.f32.partialorder %v177, %v409
        %vm480 = vcmp.ge.f32.partialorder %v178, %v409
        %vm481 = vcmp.ge.f32.partialorder %v179, %v409
        %vm482 = vcmp.ge.f32.partialorder %v180, %v409
        %vm483 = vcmp.ge.f32.partialorder %v181, %v409
        %vm484 = vcmp.ge.f32.partialorder %v182, %v409
        %vm485 = vcmp.ge.f32.partialorder %v183, %v409
        %vm486 = vcmp.ge.f32.partialorder %v184, %v409
        %vm487 = vcmp.ge.f32.partialorder %v185, %v409
        %vm488 = vcmp.ge.f32.partialorder %v186, %v409
        %vm489 = vcmp.ge.f32.partialorder %v187, %v409
        %v490 = vlaneseq
        %v491 = vshrl.u32 %v490, 7
        %v492 = vsub.s32 3, %v491
        %v493 = vrot.slane %v188, %v492
        %vm494 = vcmp.lt.f32.partialorder %v172, %v493
        %vm495 = vcmp.lt.f32.partialorder %v173, %v493
        %vm496 = vcmp.lt.f32.partialorder %v174, %v493
        %vm497 = vcmp.lt.f32.partialorder %v175, %v493
        %vm498 = vcmp.lt.f32.partialorder %v176, %v493
        %vm499 = vcmp.lt.f32.partialorder %v177, %v493
        %vm500 = vcmp.lt.f32.partialorder %v178, %v493
        %vm501 = vcmp.lt.f32.partialorder %v179, %v493
        %vm502 = vcmp.lt.f32.partialorder %v180, %v493
        %vm503 = vcmp.lt.f32.partialorder %v181, %v493
        %vm504 = vcmp.lt.f32.partialorder %v182, %v493
        %vm505 = vcmp.lt.f32.partialorder %v183, %v493
        %vm506 = vcmp.lt.f32.partialorder %v184, %v493
        %vm507 = vcmp.lt.f32.partialorder %v185, %v493
        %vm508 = vcmp.lt.f32.partialorder %v186, %v493
        %vm509 = vcmp.lt.f32.partialorder %v187, %v493
        %vm510 = vmand %vm474, %vm494
        %vm511 = vmand %vm475, %vm495
        %vm512 = vmand %vm476, %vm496
        %vm513 = vmand %vm477, %vm497
        %vm514 = vmand %vm478, %vm498
        %vm515 = vmand %vm479, %vm499
        %vm516 = vmand %vm480, %vm500
        %vm517 = vmand %vm481, %vm501
        %vm518 = vmand %vm482, %vm502
        %vm519 = vmand %vm483, %vm503
        %vm520 = vmand %vm484, %vm504
        %vm521 = vmand %vm485, %vm505
        %vm522 = vmand %vm486, %vm506
        %vm523 = vmand %vm487, %vm507
        %vm524 = vmand %vm488, %vm508
        %vm525 = vmand %vm489, %vm509
        %v526 = vsel %vm510, 1, 0
        %v527 = vsel %vm511, 1, 0
        %v528 = vsel %vm512, 1, 0
        %v529 = vsel %vm513, 1, 0
        %v530 = vsel %vm514, 1, 0
        %v531 = vsel %vm515, 1, 0
        %v532 = vsel %vm516, 1, 0
        %v533 = vsel %vm517, 1, 0
        %v534 = vsel %vm518, 1, 0
        %v535 = vsel %vm519, 1, 0
        %v536 = vsel %vm520, 1, 0
        %v537 = vsel %vm521, 1, 0
        %v538 = vsel %vm522, 1, 0
        %v539 = vsel %vm523, 1, 0
        %v540 = vsel %vm524, 1, 0
        %v541 = vsel %vm525, 1, 0
        %v542 = vcvt.s32.f32 %v526
        %v543 = vcvt.s32.f32 %v527
        %v544 = vcvt.s32.f32 %v528
        %v545 = vcvt.s32.f32 %v529
        %v546 = vcvt.s32.f32 %v530
        %v547 = vcvt.s32.f32 %v531
        %v548 = vcvt.s32.f32 %v532
        %v549 = vcvt.s32.f32 %v533
        %v550 = vcvt.s32.f32 %v534
        %v551 = vcvt.s32.f32 %v535
        %v552 = vcvt.s32.f32 %v536
        %v553 = vcvt.s32.f32 %v537
        %v554 = vcvt.s32.f32 %v538
        %v555 = vcvt.s32.f32 %v539
        %v556 = vcvt.s32.f32 %v540
        %v557 = vcvt.s32.f32 %v541
        %vm558 = vcmp.ge.f32.partialorder %v172, %v493
        %vm559 = vcmp.ge.f32.partialorder %v173, %v493
        %vm560 = vcmp.ge.f32.partialorder %v174, %v493
        %vm561 = vcmp.ge.f32.partialorder %v175, %v493
        %vm562 = vcmp.ge.f32.partialorder %v176, %v493
        %vm563 = vcmp.ge.f32.partialorder %v177, %v493
        %vm564 = vcmp.ge.f32.partialorder %v178, %v493
        %vm565 = vcmp.ge.f32.partialorder %v179, %v493
        %vm566 = vcmp.ge.f32.partialorder %v180, %v493
        %vm567 = vcmp.ge.f32.partialorder %v181, %v493
        %vm568 = vcmp.ge.f32.partialorder %v182, %v493
        %vm569 = vcmp.ge.f32.partialorder %v183, %v493
        %vm570 = vcmp.ge.f32.partialorder %v184, %v493
        %vm571 = vcmp.ge.f32.partialorder %v185, %v493
        %vm572 = vcmp.ge.f32.partialorder %v186, %v493
        %vm573 = vcmp.ge.f32.partialorder %v187, %v493
        %v574 = vlaneseq
        %v575 = vshrl.u32 %v574, 7
        %v576 = vsub.s32 4, %v575
        %v577 = vrot.slane %v188, %v576
        %vm578 = vcmp.lt.f32.partialorder %v172, %v577
        %vm579 = vcmp.lt.f32.partialorder %v173, %v577
        %vm580 = vcmp.lt.f32.partialorder %v174, %v577
        %vm581 = vcmp.lt.f32.partialorder %v175, %v577
        %vm582 = vcmp.lt.f32.partialorder %v176, %v577
        %vm583 = vcmp.lt.f32.partialorder %v177, %v577
        %vm584 = vcmp.lt.f32.partialorder %v178, %v577
        %vm585 = vcmp.lt.f32.partialorder %v179, %v577
        %vm586 = vcmp.lt.f32.partialorder %v180, %v577
        %vm587 = vcmp.lt.f32.partialorder %v181, %v577
        %vm588 = vcmp.lt.f32.partialorder %v182, %v577
        %vm589 = vcmp.lt.f32.partialorder %v183, %v577
        %vm590 = vcmp.lt.f32.partialorder %v184, %v577
        %vm591 = vcmp.lt.f32.partialorder %v185, %v577
        %vm592 = vcmp.lt.f32.partialorder %v186, %v577
        %vm593 = vcmp.lt.f32.partialorder %v187, %v577
        %vm594 = vmand %vm558, %vm578
        %vm595 = vmand %vm559, %vm579
        %vm596 = vmand %vm560, %vm580
        %vm597 = vmand %vm561, %vm581
        %vm598 = vmand %vm562, %vm582
        %vm599 = vmand %vm563, %vm583
        %vm600 = vmand %vm564, %vm584
        %vm601 = vmand %vm565, %vm585
        %vm602 = vmand %vm566, %vm586
        %vm603 = vmand %vm567, %vm587
        %vm604 = vmand %vm568, %vm588
        %vm605 = vmand %vm569, %vm589
        %vm606 = vmand %vm570, %vm590
        %vm607 = vmand %vm571, %vm591
        %vm608 = vmand %vm572, %vm592
        %vm609 = vmand %vm573, %vm593
        %v610 = vsel %vm594, 1, 0
        %v611 = vsel %vm595, 1, 0
        %v612 = vsel %vm596, 1, 0
        %v613 = vsel %vm597, 1, 0
        %v614 = vsel %vm598, 1, 0
        %v615 = vsel %vm599, 1, 0
        %v616 = vsel %vm600, 1, 0
        %v617 = vsel %vm601, 1, 0
        %v618 = vsel %vm602, 1, 0
        %v619 = vsel %vm603, 1, 0
        %v620 = vsel %vm604, 1, 0
        %v621 = vsel %vm605, 1, 0
        %v622 = vsel %vm606, 1, 0
        %v623 = vsel %vm607, 1, 0
        %v624 = vsel %vm608, 1, 0
        %v625 = vsel %vm609, 1, 0
        %v626 = vcvt.s32.f32 %v610
        %v627 = vcvt.s32.f32 %v611
        %v628 = vcvt.s32.f32 %v612
        %v629 = vcvt.s32.f32 %v613
        %v630 = vcvt.s32.f32 %v614
        %v631 = vcvt.s32.f32 %v615
        %v632 = vcvt.s32.f32 %v616
        %v633 = vcvt.s32.f32 %v617
        %v634 = vcvt.s32.f32 %v618
        %v635 = vcvt.s32.f32 %v619
        %v636 = vcvt.s32.f32 %v620
        %v637 = vcvt.s32.f32 %v621
        %v638 = vcvt.s32.f32 %v622
        %v639 = vcvt.s32.f32 %v623
        %v640 = vcvt.s32.f32 %v624
        %v641 = vcvt.s32.f32 %v625
        %vm642 = vcmp.ge.f32.partialorder %v172, %v577
        %vm643 = vcmp.ge.f32.partialorder %v173, %v577
        %vm644 = vcmp.ge.f32.partialorder %v174, %v577
        %vm645 = vcmp.ge.f32.partialorder %v175, %v577
        %vm646 = vcmp.ge.f32.partialorder %v176, %v577
        %vm647 = vcmp.ge.f32.partialorder %v177, %v577
        %vm648 = vcmp.ge.f32.partialorder %v178, %v577
        %vm649 = vcmp.ge.f32.partialorder %v179, %v577
        %vm650 = vcmp.ge.f32.partialorder %v180, %v577
        %vm651 = vcmp.ge.f32.partialorder %v181, %v577
        %vm652 = vcmp.ge.f32.partialorder %v182, %v577
        %vm653 = vcmp.ge.f32.partialorder %v183, %v577
        %vm654 = vcmp.ge.f32.partialorder %v184, %v577
        %vm655 = vcmp.ge.f32.partialorder %v185, %v577
        %vm656 = vcmp.ge.f32.partialorder %v186, %v577
        %vm657 = vcmp.ge.f32.partialorder %v187, %v577
        %v658 = vlaneseq
        %v659 = vshrl.u32 %v658, 7
        %v660 = vsub.s32 5, %v659
        %v661 = vrot.slane %v188, %v660
        %vm662 = vcmp.lt.f32.partialorder %v172, %v661
        %vm663 = vcmp.lt.f32.partialorder %v173, %v661
        %vm664 = vcmp.lt.f32.partialorder %v174, %v661
        %vm665 = vcmp.lt.f32.partialorder %v175, %v661
        %vm666 = vcmp.lt.f32.partialorder %v176, %v661
        %vm667 = vcmp.lt.f32.partialorder %v177, %v661
        %vm668 = vcmp.lt.f32.partialorder %v178, %v661
        %vm669 = vcmp.lt.f32.partialorder %v179, %v661
        %vm670 = vcmp.lt.f32.partialorder %v180, %v661
        %vm671 = vcmp.lt.f32.partialorder %v181, %v661
        %vm672 = vcmp.lt.f32.partialorder %v182, %v661
        %vm673 = vcmp.lt.f32.partialorder %v183, %v661
        %vm674 = vcmp.lt.f32.partialorder %v184, %v661
        %vm675 = vcmp.lt.f32.partialorder %v185, %v661
        %vm676 = vcmp.lt.f32.partialorder %v186, %v661
        %vm677 = vcmp.lt.f32.partialorder %v187, %v661
        %vm678 = vmand %vm642, %vm662
        %vm679 = vmand %vm643, %vm663
        %vm680 = vmand %vm644, %vm664
        %vm681 = vmand %vm645, %vm665
        %vm682 = vmand %vm646, %vm666
        %vm683 = vmand %vm647, %vm667
        %vm684 = vmand %vm648, %vm668
        %vm685 = vmand %vm649, %vm669
        %vm686 = vmand %vm650, %vm670
        %vm687 = vmand %vm651, %vm671
        %vm688 = vmand %vm652, %vm672
        %vm689 = vmand %vm653, %vm673
        %vm690 = vmand %vm654, %vm674
        %vm691 = vmand %vm655, %vm675
        %vm692 = vmand %vm656, %vm676
        %vm693 = vmand %vm657, %vm677
        %v694 = vsel %vm678, 1, 0
        %v695 = vsel %vm679, 1, 0
        %v696 = vsel %vm680, 1, 0
        %v697 = vsel %vm681, 1, 0
        %v698 = vsel %vm682, 1, 0
        %v699 = vsel %vm683, 1, 0
        %v700 = vsel %vm684, 1, 0
        %v701 = vsel %vm685, 1, 0
        %v702 = vsel %vm686, 1, 0
        %v703 = vsel %vm687, 1, 0
        %v704 = vsel %vm688, 1, 0
        %v705 = vsel %vm689, 1, 0
        %v706 = vsel %vm690, 1, 0
        %v707 = vsel %vm691, 1, 0
        %v708 = vsel %vm692, 1, 0
        %v709 = vsel %vm693, 1, 0
        %v710 = vcvt.s32.f32 %v694
        %v711 = vcvt.s32.f32 %v695
        %v712 = vcvt.s32.f32 %v696
        %v713 = vcvt.s32.f32 %v697
        %v714 = vcvt.s32.f32 %v698
        %v715 = vcvt.s32.f32 %v699
        %v716 = vcvt.s32.f32 %v700
        %v717 = vcvt.s32.f32 %v701
        %v718 = vcvt.s32.f32 %v702
        %v719 = vcvt.s32.f32 %v703
        %v720 = vcvt.s32.f32 %v704
        %v721 = vcvt.s32.f32 %v705
        %v722 = vcvt.s32.f32 %v706
        %v723 = vcvt.s32.f32 %v707
        %v724 = vcvt.s32.f32 %v708
        %v725 = vcvt.s32.f32 %v709
        %vm726 = vcmp.ge.f32.partialorder %v172, %v661
        %vm727 = vcmp.ge.f32.partialorder %v173, %v661
        %vm728 = vcmp.ge.f32.partialorder %v174, %v661
        %vm729 = vcmp.ge.f32.partialorder %v175, %v661
        %vm730 = vcmp.ge.f32.partialorder %v176, %v661
        %vm731 = vcmp.ge.f32.partialorder %v177, %v661
        %vm732 = vcmp.ge.f32.partialorder %v178, %v661
        %vm733 = vcmp.ge.f32.partialorder %v179, %v661
        %vm734 = vcmp.ge.f32.partialorder %v180, %v661
        %vm735 = vcmp.ge.f32.partialorder %v181, %v661
        %vm736 = vcmp.ge.f32.partialorder %v182, %v661
        %vm737 = vcmp.ge.f32.partialorder %v183, %v661
        %vm738 = vcmp.ge.f32.partialorder %v184, %v661
        %vm739 = vcmp.ge.f32.partialorder %v185, %v661
        %vm740 = vcmp.ge.f32.partialorder %v186, %v661
        %vm741 = vcmp.ge.f32.partialorder %v187, %v661
        %v742 = vlaneseq
        %v743 = vshrl.u32 %v742, 7
        %v744 = vsub.s32 6, %v743
        %v745 = vrot.slane %v188, %v744
        %vm746 = vcmp.lt.f32.partialorder %v172, %v745
        %vm747 = vcmp.lt.f32.partialorder %v173, %v745
        %vm748 = vcmp.lt.f32.partialorder %v174, %v745
        %vm749 = vcmp.lt.f32.partialorder %v175, %v745
        %vm750 = vcmp.lt.f32.partialorder %v176, %v745
        %vm751 = vcmp.lt.f32.partialorder %v177, %v745
        %vm752 = vcmp.lt.f32.partialorder %v178, %v745
        %vm753 = vcmp.lt.f32.partialorder %v179, %v745
        %vm754 = vcmp.lt.f32.partialorder %v180, %v745
        %vm755 = vcmp.lt.f32.partialorder %v181, %v745
        %vm756 = vcmp.lt.f32.partialorder %v182, %v745
        %vm757 = vcmp.lt.f32.partialorder %v183, %v745
        %vm758 = vcmp.lt.f32.partialorder %v184, %v745
        %vm759 = vcmp.lt.f32.partialorder %v185, %v745
        %vm760 = vcmp.lt.f32.partialorder %v186, %v745
        %vm761 = vcmp.lt.f32.partialorder %v187, %v745
        %vm762 = vmand %vm726, %vm746
        %vm763 = vmand %vm727, %vm747
        %vm764 = vmand %vm728, %vm748
        %vm765 = vmand %vm729, %vm749
        %vm766 = vmand %vm730, %vm750
        %vm767 = vmand %vm731, %vm751
        %vm768 = vmand %vm732, %vm752
        %vm769 = vmand %vm733, %vm753
        %vm770 = vmand %vm734, %vm754
        %vm771 = vmand %vm735, %vm755
        %vm772 = vmand %vm736, %vm756
        %vm773 = vmand %vm737, %vm757
        %vm774 = vmand %vm738, %vm758
        %vm775 = vmand %vm739, %vm759
        %vm776 = vmand %vm740, %vm760
        %vm777 = vmand %vm741, %vm761
        %v778 = vsel %vm762, 1, 0
        %v779 = vsel %vm763, 1, 0
        %v780 = vsel %vm764, 1, 0
        %v781 = vsel %vm765, 1, 0
        %v782 = vsel %vm766, 1, 0
        %v783 = vsel %vm767, 1, 0
        %v784 = vsel %vm768, 1, 0
        %v785 = vsel %vm769, 1, 0
        %v786 = vsel %vm770, 1, 0
        %v787 = vsel %vm771, 1, 0
        %v788 = vsel %vm772, 1, 0
        %v789 = vsel %vm773, 1, 0
        %v790 = vsel %vm774, 1, 0
        %v791 = vsel %vm775, 1, 0
        %v792 = vsel %vm776, 1, 0
        %v793 = vsel %vm777, 1, 0
        %v794 = vcvt.s32.f32 %v778
        %v795 = vcvt.s32.f32 %v779
        %v796 = vcvt.s32.f32 %v780
        %v797 = vcvt.s32.f32 %v781
        %v798 = vcvt.s32.f32 %v782
        %v799 = vcvt.s32.f32 %v783
        %v800 = vcvt.s32.f32 %v784
        %v801 = vcvt.s32.f32 %v785
        %v802 = vcvt.s32.f32 %v786
        %v803 = vcvt.s32.f32 %v787
        %v804 = vcvt.s32.f32 %v788
        %v805 = vcvt.s32.f32 %v789
        %v806 = vcvt.s32.f32 %v790
        %v807 = vcvt.s32.f32 %v791
        %v808 = vcvt.s32.f32 %v792
        %v809 = vcvt.s32.f32 %v793
        %vm810 = vcmp.ge.f32.partialorder %v172, %v745
        %vm811 = vcmp.ge.f32.partialorder %v173, %v745
        %vm812 = vcmp.ge.f32.partialorder %v174, %v745
        %vm813 = vcmp.ge.f32.partialorder %v175, %v745
        %vm814 = vcmp.ge.f32.partialorder %v176, %v745
        %vm815 = vcmp.ge.f32.partialorder %v177, %v745
        %vm816 = vcmp.ge.f32.partialorder %v178, %v745
        %vm817 = vcmp.ge.f32.partialorder %v179, %v745
        %vm818 = vcmp.ge.f32.partialorder %v180, %v745
        %vm819 = vcmp.ge.f32.partialorder %v181, %v745
        %vm820 = vcmp.ge.f32.partialorder %v182, %v745
        %vm821 = vcmp.ge.f32.partialorder %v183, %v745
        %vm822 = vcmp.ge.f32.partialorder %v184, %v745
        %vm823 = vcmp.ge.f32.partialorder %v185, %v745
        %vm824 = vcmp.ge.f32.partialorder %v186, %v745
        %vm825 = vcmp.ge.f32.partialorder %v187, %v745
        %v826 = vlaneseq
        %v827 = vshrl.u32 %v826, 7
        %v828 = vsub.s32 7, %v827
        %v829 = vrot.slane %v188, %v828
        %vm830 = vcmp.lt.f32.partialorder %v172, %v829
        %vm831 = vcmp.lt.f32.partialorder %v173, %v829
        %vm832 = vcmp.lt.f32.partialorder %v174, %v829
        %vm833 = vcmp.lt.f32.partialorder %v175, %v829
        %vm834 = vcmp.lt.f32.partialorder %v176, %v829
        %vm835 = vcmp.lt.f32.partialorder %v177, %v829
        %vm836 = vcmp.lt.f32.partialorder %v178, %v829
        %vm837 = vcmp.lt.f32.partialorder %v179, %v829
        %vm838 = vcmp.lt.f32.partialorder %v180, %v829
        %vm839 = vcmp.lt.f32.partialorder %v181, %v829
        %vm840 = vcmp.lt.f32.partialorder %v182, %v829
        %vm841 = vcmp.lt.f32.partialorder %v183, %v829
        %vm842 = vcmp.lt.f32.partialorder %v184, %v829
        %vm843 = vcmp.lt.f32.partialorder %v185, %v829
        %vm844 = vcmp.lt.f32.partialorder %v186, %v829
        %vm845 = vcmp.lt.f32.partialorder %v187, %v829
        %vm846 = vmand %vm810, %vm830
        %vm847 = vmand %vm811, %vm831
        %vm848 = vmand %vm812, %vm832
        %vm849 = vmand %vm813, %vm833
        %vm850 = vmand %vm814, %vm834
        %vm851 = vmand %vm815, %vm835
        %vm852 = vmand %vm816, %vm836
        %vm853 = vmand %vm817, %vm837
        %vm854 = vmand %vm818, %vm838
        %vm855 = vmand %vm819, %vm839
        %vm856 = vmand %vm820, %vm840
        %vm857 = vmand %vm821, %vm841
        %vm858 = vmand %vm822, %vm842
        %vm859 = vmand %vm823, %vm843
        %vm860 = vmand %vm824, %vm844
        %vm861 = vmand %vm825, %vm845
        %v862 = vsel %vm846, 1, 0
        %v863 = vsel %vm847, 1, 0
        %v864 = vsel %vm848, 1, 0
        %v865 = vsel %vm849, 1, 0
        %v866 = vsel %vm850, 1, 0
        %v867 = vsel %vm851, 1, 0
        %v868 = vsel %vm852, 1, 0
        %v869 = vsel %vm853, 1, 0
        %v870 = vsel %vm854, 1, 0
        %v871 = vsel %vm855, 1, 0
        %v872 = vsel %vm856, 1, 0
        %v873 = vsel %vm857, 1, 0
        %v874 = vsel %vm858, 1, 0
        %v875 = vsel %vm859, 1, 0
        %v876 = vsel %vm860, 1, 0
        %v877 = vsel %vm861, 1, 0
        %v878 = vcvt.s32.f32 %v862
        %v879 = vcvt.s32.f32 %v863
        %v880 = vcvt.s32.f32 %v864
        %v881 = vcvt.s32.f32 %v865
        %v882 = vcvt.s32.f32 %v866
        %v883 = vcvt.s32.f32 %v867
        %v884 = vcvt.s32.f32 %v868
        %v885 = vcvt.s32.f32 %v869
        %v886 = vcvt.s32.f32 %v870
        %v887 = vcvt.s32.f32 %v871
        %v888 = vcvt.s32.f32 %v872
        %v889 = vcvt.s32.f32 %v873
        %v890 = vcvt.s32.f32 %v874
        %v891 = vcvt.s32.f32 %v875
        %v892 = vcvt.s32.f32 %v876
        %v893 = vcvt.s32.f32 %v877
        %vm894 = vcmp.ge.f32.partialorder %v172, %v829
        %vm895 = vcmp.ge.f32.partialorder %v173, %v829
        %vm896 = vcmp.ge.f32.partialorder %v174, %v829
        %vm897 = vcmp.ge.f32.partialorder %v175, %v829
        %vm898 = vcmp.ge.f32.partialorder %v176, %v829
        %vm899 = vcmp.ge.f32.partialorder %v177, %v829
        %vm900 = vcmp.ge.f32.partialorder %v178, %v829
        %vm901 = vcmp.ge.f32.partialorder %v179, %v829
        %vm902 = vcmp.ge.f32.partialorder %v180, %v829
        %vm903 = vcmp.ge.f32.partialorder %v181, %v829
        %vm904 = vcmp.ge.f32.partialorder %v182, %v829
        %vm905 = vcmp.ge.f32.partialorder %v183, %v829
        %vm906 = vcmp.ge.f32.partialorder %v184, %v829
        %vm907 = vcmp.ge.f32.partialorder %v185, %v829
        %vm908 = vcmp.ge.f32.partialorder %v186, %v829
        %vm909 = vcmp.ge.f32.partialorder %v187, %v829
        %v910 = vlaneseq
        %v911 = vshrl.u32 %v910, 7
        %v912 = vsub.s32 0, %v911
        %v913 = vrot.slane %v189, %v912
        %vm914 = vcmp.lt.f32.partialorder %v172, %v913
        %vm915 = vcmp.lt.f32.partialorder %v173, %v913
        %vm916 = vcmp.lt.f32.partialorder %v174, %v913
        %vm917 = vcmp.lt.f32.partialorder %v175, %v913
        %vm918 = vcmp.lt.f32.partialorder %v176, %v913
        %vm919 = vcmp.lt.f32.partialorder %v177, %v913
        %vm920 = vcmp.lt.f32.partialorder %v178, %v913
        %vm921 = vcmp.lt.f32.partialorder %v179, %v913
        %vm922 = vcmp.lt.f32.partialorder %v180, %v913
        %vm923 = vcmp.lt.f32.partialorder %v181, %v913
        %vm924 = vcmp.lt.f32.partialorder %v182, %v913
        %vm925 = vcmp.lt.f32.partialorder %v183, %v913
        %vm926 = vcmp.lt.f32.partialorder %v184, %v913
        %vm927 = vcmp.lt.f32.partialorder %v185, %v913
        %vm928 = vcmp.lt.f32.partialorder %v186, %v913
        %vm929 = vcmp.lt.f32.partialorder %v187, %v913
        %vm930 = vmand %vm894, %vm914
        %vm931 = vmand %vm895, %vm915
        %vm932 = vmand %vm896, %vm916
        %vm933 = vmand %vm897, %vm917
        %vm934 = vmand %vm898, %vm918
        %vm935 = vmand %vm899, %vm919
        %vm936 = vmand %vm900, %vm920
        %vm937 = vmand %vm901, %vm921
        %vm938 = vmand %vm902, %vm922
        %vm939 = vmand %vm903, %vm923
        %vm940 = vmand %vm904, %vm924
        %vm941 = vmand %vm905, %vm925
        %vm942 = vmand %vm906, %vm926
        %vm943 = vmand %vm907, %vm927
        %vm944 = vmand %vm908, %vm928
        %vm945 = vmand %vm909, %vm929
        %v946 = vsel %vm930, 1, 0
        %v947 = vsel %vm931, 1, 0
        %v948 = vsel %vm932, 1, 0
        %v949 = vsel %vm933, 1, 0
        %v950 = vsel %vm934, 1, 0
        %v951 = vsel %vm935, 1, 0
        %v952 = vsel %vm936, 1, 0
        %v953 = vsel %vm937, 1, 0
        %v954 = vsel %vm938, 1, 0
        %v955 = vsel %vm939, 1, 0
        %v956 = vsel %vm940, 1, 0
        %v957 = vsel %vm941, 1, 0
        %v958 = vsel %vm942, 1, 0
        %v959 = vsel %vm943, 1, 0
        %v960 = vsel %vm944, 1, 0
        %v961 = vsel %vm945, 1, 0
        %v962 = vcvt.s32.f32 %v946
        %v963 = vcvt.s32.f32 %v947
        %v964 = vcvt.s32.f32 %v948
        %v965 = vcvt.s32.f32 %v949
        %v966 = vcvt.s32.f32 %v950
        %v967 = vcvt.s32.f32 %v951
        %v968 = vcvt.s32.f32 %v952
        %v969 = vcvt.s32.f32 %v953
        %v970 = vcvt.s32.f32 %v954
        %v971 = vcvt.s32.f32 %v955
        %v972 = vcvt.s32.f32 %v956
        %v973 = vcvt.s32.f32 %v957
        %v974 = vcvt.s32.f32 %v958
        %v975 = vcvt.s32.f32 %v959
        %v976 = vcvt.s32.f32 %v960
        %v977 = vcvt.s32.f32 %v961
        %vm978 = vcmp.ge.f32.partialorder %v172, %v913
        %vm979 = vcmp.ge.f32.partialorder %v173, %v913
        %vm980 = vcmp.ge.f32.partialorder %v174, %v913
        %vm981 = vcmp.ge.f32.partialorder %v175, %v913
        %vm982 = vcmp.ge.f32.partialorder %v176, %v913
        %vm983 = vcmp.ge.f32.partialorder %v177, %v913
        %vm984 = vcmp.ge.f32.partialorder %v178, %v913
        %vm985 = vcmp.ge.f32.partialorder %v179, %v913
        %vm986 = vcmp.ge.f32.partialorder %v180, %v913
        %vm987 = vcmp.ge.f32.partialorder %v181, %v913
        %vm988 = vcmp.ge.f32.partialorder %v182, %v913
        %vm989 = vcmp.ge.f32.partialorder %v183, %v913
        %vm990 = vcmp.ge.f32.partialorder %v184, %v913
        %vm991 = vcmp.ge.f32.partialorder %v185, %v913
        %vm992 = vcmp.ge.f32.partialorder %v186, %v913
        %vm993 = vcmp.ge.f32.partialorder %v187, %v913
        %v994 = vlaneseq
        %v995 = vshrl.u32 %v994, 7
        %v996 = vsub.s32 1, %v995
        %v997 = vrot.slane %v189, %v996
        %vm998 = vcmp.lt.f32.partialorder %v172, %v997
        %vm999 = vcmp.lt.f32.partialorder %v173, %v997
        %vm1000 = vcmp.lt.f32.partialorder %v174, %v997
        %vm1001 = vcmp.lt.f32.partialorder %v175, %v997
        %vm1002 = vcmp.lt.f32.partialorder %v176, %v997
        %vm1003 = vcmp.lt.f32.partialorder %v177, %v997
        %vm1004 = vcmp.lt.f32.partialorder %v178, %v997
        %vm1005 = vcmp.lt.f32.partialorder %v179, %v997
        %vm1006 = vcmp.lt.f32.partialorder %v180, %v997
        %vm1007 = vcmp.lt.f32.partialorder %v181, %v997
        %vm1008 = vcmp.lt.f32.partialorder %v182, %v997
        %vm1009 = vcmp.lt.f32.partialorder %v183, %v997
        %vm1010 = vcmp.lt.f32.partialorder %v184, %v997
        %vm1011 = vcmp.lt.f32.partialorder %v185, %v997
        %vm1012 = vcmp.lt.f32.partialorder %v186, %v997
        %vm1013 = vcmp.lt.f32.partialorder %v187, %v997
        %vm1014 = vmand %vm978, %vm998
        %vm1015 = vmand %vm979, %vm999
        %vm1016 = vmand %vm980, %vm1000
        %vm1017 = vmand %vm981, %vm1001
        %vm1018 = vmand %vm982, %vm1002
        %vm1019 = vmand %vm983, %vm1003
        %vm1020 = vmand %vm984, %vm1004
        %vm1021 = vmand %vm985, %vm1005
        %vm1022 = vmand %vm986, %vm1006
        %vm1023 = vmand %vm987, %vm1007
        %vm1024 = vmand %vm988, %vm1008
        %vm1025 = vmand %vm989, %vm1009
        %vm1026 = vmand %vm990, %vm1010
        %vm1027 = vmand %vm991, %vm1011
        %vm1028 = vmand %vm992, %vm1012
        %vm1029 = vmand %vm993, %vm1013
        %v1030 = vsel %vm1014, 1, 0
        %v1031 = vsel %vm1015, 1, 0
        %v1032 = vsel %vm1016, 1, 0
        %v1033 = vsel %vm1017, 1, 0
        %v1034 = vsel %vm1018, 1, 0
        %v1035 = vsel %vm1019, 1, 0
        %v1036 = vsel %vm1020, 1, 0
        %v1037 = vsel %vm1021, 1, 0
        %v1038 = vsel %vm1022, 1, 0
        %v1039 = vsel %vm1023, 1, 0
        %v1040 = vsel %vm1024, 1, 0
        %v1041 = vsel %vm1025, 1, 0
        %v1042 = vsel %vm1026, 1, 0
        %v1043 = vsel %vm1027, 1, 0
        %v1044 = vsel %vm1028, 1, 0
        %v1045 = vsel %vm1029, 1, 0
        %v1046 = vcvt.s32.f32 %v1030
        %v1047 = vcvt.s32.f32 %v1031
        %v1048 = vcvt.s32.f32 %v1032
        %v1049 = vcvt.s32.f32 %v1033
        %v1050 = vcvt.s32.f32 %v1034
        %v1051 = vcvt.s32.f32 %v1035
        %v1052 = vcvt.s32.f32 %v1036
        %v1053 = vcvt.s32.f32 %v1037
        %v1054 = vcvt.s32.f32 %v1038
        %v1055 = vcvt.s32.f32 %v1039
        %v1056 = vcvt.s32.f32 %v1040
        %v1057 = vcvt.s32.f32 %v1041
        %v1058 = vcvt.s32.f32 %v1042
        %v1059 = vcvt.s32.f32 %v1043
        %v1060 = vcvt.s32.f32 %v1044
        %v1061 = vcvt.s32.f32 %v1045
        %vm1062 = vcmp.ge.f32.partialorder %v172, %v997
        %vm1063 = vcmp.ge.f32.partialorder %v173, %v997
        %vm1064 = vcmp.ge.f32.partialorder %v174, %v997
        %vm1065 = vcmp.ge.f32.partialorder %v175, %v997
        %vm1066 = vcmp.ge.f32.partialorder %v176, %v997
        %vm1067 = vcmp.ge.f32.partialorder %v177, %v997
        %vm1068 = vcmp.ge.f32.partialorder %v178, %v997
        %vm1069 = vcmp.ge.f32.partialorder %v179, %v997
        %vm1070 = vcmp.ge.f32.partialorder %v180, %v997
        %vm1071 = vcmp.ge.f32.partialorder %v181, %v997
        %vm1072 = vcmp.ge.f32.partialorder %v182, %v997
        %vm1073 = vcmp.ge.f32.partialorder %v183, %v997
        %vm1074 = vcmp.ge.f32.partialorder %v184, %v997
        %vm1075 = vcmp.ge.f32.partialorder %v185, %v997
        %vm1076 = vcmp.ge.f32.partialorder %v186, %v997
        %vm1077 = vcmp.ge.f32.partialorder %v187, %v997
        %v1078 = vlaneseq
        %v1079 = vshrl.u32 %v1078, 7
        %v1080 = vsub.s32 2, %v1079
        %v1081 = vrot.slane %v189, %v1080
        %vm1082 = vcmp.lt.f32.partialorder %v172, %v1081
        %vm1083 = vcmp.lt.f32.partialorder %v173, %v1081
        %vm1084 = vcmp.lt.f32.partialorder %v174, %v1081
        %vm1085 = vcmp.lt.f32.partialorder %v175, %v1081
        %vm1086 = vcmp.lt.f32.partialorder %v176, %v1081
        %vm1087 = vcmp.lt.f32.partialorder %v177, %v1081
        %vm1088 = vcmp.lt.f32.partialorder %v178, %v1081
        %vm1089 = vcmp.lt.f32.partialorder %v179, %v1081
        %vm1090 = vcmp.lt.f32.partialorder %v180, %v1081
        %vm1091 = vcmp.lt.f32.partialorder %v181, %v1081
        %vm1092 = vcmp.lt.f32.partialorder %v182, %v1081
        %vm1093 = vcmp.lt.f32.partialorder %v183, %v1081
        %vm1094 = vcmp.lt.f32.partialorder %v184, %v1081
        %vm1095 = vcmp.lt.f32.partialorder %v185, %v1081
        %vm1096 = vcmp.lt.f32.partialorder %v186, %v1081
        %vm1097 = vcmp.lt.f32.partialorder %v187, %v1081
        %vm1098 = vmand %vm1062, %vm1082
        %vm1099 = vmand %vm1063, %vm1083
        %vm1100 = vmand %vm1064, %vm1084
        %vm1101 = vmand %vm1065, %vm1085
        %vm1102 = vmand %vm1066, %vm1086
        %vm1103 = vmand %vm1067, %vm1087
        %vm1104 = vmand %vm1068, %vm1088
        %vm1105 = vmand %vm1069, %vm1089
        %vm1106 = vmand %vm1070, %vm1090
        %vm1107 = vmand %vm1071, %vm1091
        %vm1108 = vmand %vm1072, %vm1092
        %vm1109 = vmand %vm1073, %vm1093
        %vm1110 = vmand %vm1074, %vm1094
        %vm1111 = vmand %vm1075, %vm1095
        %vm1112 = vmand %vm1076, %vm1096
        %vm1113 = vmand %vm1077, %vm1097
        %v1114 = vsel %vm1098, 1, 0
        %v1115 = vsel %vm1099, 1, 0
        %v1116 = vsel %vm1100, 1, 0
        %v1117 = vsel %vm1101, 1, 0
        %v1118 = vsel %vm1102, 1, 0
        %v1119 = vsel %vm1103, 1, 0
        %v1120 = vsel %vm1104, 1, 0
        %v1121 = vsel %vm1105, 1, 0
        %v1122 = vsel %vm1106, 1, 0
        %v1123 = vsel %vm1107, 1, 0
        %v1124 = vsel %vm1108, 1, 0
        %v1125 = vsel %vm1109, 1, 0
        %v1126 = vsel %vm1110, 1, 0
        %v1127 = vsel %vm1111, 1, 0
        %v1128 = vsel %vm1112, 1, 0
        %v1129 = vsel %vm1113, 1, 0
        %v1130 = vcvt.s32.f32 %v1114
        %v1131 = vcvt.s32.f32 %v1115
        %v1132 = vcvt.s32.f32 %v1116
        %v1133 = vcvt.s32.f32 %v1117
        %v1134 = vcvt.s32.f32 %v1118
        %v1135 = vcvt.s32.f32 %v1119
        %v1136 = vcvt.s32.f32 %v1120
        %v1137 = vcvt.s32.f32 %v1121
        %v1138 = vcvt.s32.f32 %v1122
        %v1139 = vcvt.s32.f32 %v1123
        %v1140 = vcvt.s32.f32 %v1124
        %v1141 = vcvt.s32.f32 %v1125
        %v1142 = vcvt.s32.f32 %v1126
        %v1143 = vcvt.s32.f32 %v1127
        %v1144 = vcvt.s32.f32 %v1128
        %v1145 = vcvt.s32.f32 %v1129
        %vm1146 = vcmp.ge.f32.partialorder %v172, %v1081
        %vm1147 = vcmp.ge.f32.partialorder %v173, %v1081
        %vm1148 = vcmp.ge.f32.partialorder %v174, %v1081
        %vm1149 = vcmp.ge.f32.partialorder %v175, %v1081
        %vm1150 = vcmp.ge.f32.partialorder %v176, %v1081
        %vm1151 = vcmp.ge.f32.partialorder %v177, %v1081
        %vm1152 = vcmp.ge.f32.partialorder %v178, %v1081
        %vm1153 = vcmp.ge.f32.partialorder %v179, %v1081
        %vm1154 = vcmp.ge.f32.partialorder %v180, %v1081
        %vm1155 = vcmp.ge.f32.partialorder %v181, %v1081
        %vm1156 = vcmp.ge.f32.partialorder %v182, %v1081
        %vm1157 = vcmp.ge.f32.partialorder %v183, %v1081
        %vm1158 = vcmp.ge.f32.partialorder %v184, %v1081
        %vm1159 = vcmp.ge.f32.partialorder %v185, %v1081
        %vm1160 = vcmp.ge.f32.partialorder %v186, %v1081
        %vm1161 = vcmp.ge.f32.partialorder %v187, %v1081
        %v1162 = vlaneseq
        %v1163 = vshrl.u32 %v1162, 7
        %v1164 = vsub.s32 3, %v1163
        %v1165 = vrot.slane %v189, %v1164
        %vm1166 = vcmp.lt.f32.partialorder %v172, %v1165
        %vm1167 = vcmp.lt.f32.partialorder %v173, %v1165
        %vm1168 = vcmp.lt.f32.partialorder %v174, %v1165
        %vm1169 = vcmp.lt.f32.partialorder %v175, %v1165
        %vm1170 = vcmp.lt.f32.partialorder %v176, %v1165
        %vm1171 = vcmp.lt.f32.partialorder %v177, %v1165
        %vm1172 = vcmp.lt.f32.partialorder %v178, %v1165
        %vm1173 = vcmp.lt.f32.partialorder %v179, %v1165
        %vm1174 = vcmp.lt.f32.partialorder %v180, %v1165
        %vm1175 = vcmp.lt.f32.partialorder %v181, %v1165
        %vm1176 = vcmp.lt.f32.partialorder %v182, %v1165
        %vm1177 = vcmp.lt.f32.partialorder %v183, %v1165
        %vm1178 = vcmp.lt.f32.partialorder %v184, %v1165
        %vm1179 = vcmp.lt.f32.partialorder %v185, %v1165
        %vm1180 = vcmp.lt.f32.partialorder %v186, %v1165
        %vm1181 = vcmp.lt.f32.partialorder %v187, %v1165
        %vm1182 = vmand %vm1146, %vm1166
        %vm1183 = vmand %vm1147, %vm1167
        %vm1184 = vmand %vm1148, %vm1168
        %vm1185 = vmand %vm1149, %vm1169
        %vm1186 = vmand %vm1150, %vm1170
        %vm1187 = vmand %vm1151, %vm1171
        %vm1188 = vmand %vm1152, %vm1172
        %vm1189 = vmand %vm1153, %vm1173
        %vm1190 = vmand %vm1154, %vm1174
        %vm1191 = vmand %vm1155, %vm1175
        %vm1192 = vmand %vm1156, %vm1176
        %vm1193 = vmand %vm1157, %vm1177
        %vm1194 = vmand %vm1158, %vm1178
        %vm1195 = vmand %vm1159, %vm1179
        %vm1196 = vmand %vm1160, %vm1180
        %vm1197 = vmand %vm1161, %vm1181
        %v1198 = vsel %vm1182, 1, 0
        %v1199 = vsel %vm1183, 1, 0
        %v1200 = vsel %vm1184, 1, 0
        %v1201 = vsel %vm1185, 1, 0
        %v1202 = vsel %vm1186, 1, 0
        %v1203 = vsel %vm1187, 1, 0
        %v1204 = vsel %vm1188, 1, 0
        %v1205 = vsel %vm1189, 1, 0
        %v1206 = vsel %vm1190, 1, 0
        %v1207 = vsel %vm1191, 1, 0
        %v1208 = vsel %vm1192, 1, 0
        %v1209 = vsel %vm1193, 1, 0
        %v1210 = vsel %vm1194, 1, 0
        %v1211 = vsel %vm1195, 1, 0
        %v1212 = vsel %vm1196, 1, 0
        %v1213 = vsel %vm1197, 1, 0
        %v1214 = vcvt.s32.f32 %v1198
        %v1215 = vcvt.s32.f32 %v1199
        %v1216 = vcvt.s32.f32 %v1200
        %v1217 = vcvt.s32.f32 %v1201
        %v1218 = vcvt.s32.f32 %v1202
        %v1219 = vcvt.s32.f32 %v1203
        %v1220 = vcvt.s32.f32 %v1204
        %v1221 = vcvt.s32.f32 %v1205
        %v1222 = vcvt.s32.f32 %v1206
        %v1223 = vcvt.s32.f32 %v1207
        %v1224 = vcvt.s32.f32 %v1208
        %v1225 = vcvt.s32.f32 %v1209
        %v1226 = vcvt.s32.f32 %v1210
        %v1227 = vcvt.s32.f32 %v1211
        %v1228 = vcvt.s32.f32 %v1212
        %v1229 = vcvt.s32.f32 %v1213
        %v1231 = vrot.slane %v188, 7
        %v1233 = vsub.f32 %v188, %v1231
        %v1234 = vrcp.pop %v1233
        %v1235 = vmul.f32 1.0, %v1234
        %v1236 = vsub.f32 %v172, %v305
        %v1237 = vsub.f32 %v173, %v305
        %v1238 = vsub.f32 %v174, %v305
        %v1239 = vsub.f32 %v175, %v305
        %v1240 = vsub.f32 %v176, %v305
        %v1241 = vsub.f32 %v177, %v305
        %v1242 = vsub.f32 %v178, %v305
        %v1243 = vsub.f32 %v179, %v305
        %v1244 = vsub.f32 %v180, %v305
        %v1245 = vsub.f32 %v181, %v305
        %v1246 = vsub.f32 %v182, %v305
        %v1247 = vsub.f32 %v183, %v305
        %v1248 = vsub.f32 %v184, %v305
        %v1249 = vsub.f32 %v185, %v305
        %v1250 = vsub.f32 %v186, %v305
        %v1251 = vsub.f32 %v187, %v305
        %v1252 = vlaneseq
        %v1253 = vshrl.u32 %v1252, 7
        %v1254 = vsub.s32 1, %v1253
        %v1255 = vrot.slane %v1235, %v1254
        %v1256 = vmul.f32 %v1236, %v1255
        %v1257 = vmul.f32 %v1237, %v1255
        %v1258 = vmul.f32 %v1238, %v1255
        %v1259 = vmul.f32 %v1239, %v1255
        %v1260 = vmul.f32 %v1240, %v1255
        %v1261 = vmul.f32 %v1241, %v1255
        %v1262 = vmul.f32 %v1242, %v1255
        %v1263 = vmul.f32 %v1243, %v1255
        %v1264 = vmul.f32 %v1244, %v1255
        %v1265 = vmul.f32 %v1245, %v1255
        %v1266 = vmul.f32 %v1246, %v1255
        %v1267 = vmul.f32 %v1247, %v1255
        %v1268 = vmul.f32 %v1248, %v1255
        %v1269 = vmul.f32 %v1249, %v1255
        %v1270 = vmul.f32 %v1250, %v1255
        %v1271 = vmul.f32 %v1251, %v1255
        %v1272 = vsub.f32 %v409, %v172
        %v1273 = vsub.f32 %v409, %v173
        %v1274 = vsub.f32 %v409, %v174
        %v1275 = vsub.f32 %v409, %v175
        %v1276 = vsub.f32 %v409, %v176
        %v1277 = vsub.f32 %v409, %v177
        %v1278 = vsub.f32 %v409, %v178
        %v1279 = vsub.f32 %v409, %v179
        %v1280 = vsub.f32 %v409, %v180
        %v1281 = vsub.f32 %v409, %v181
        %v1282 = vsub.f32 %v409, %v182
        %v1283 = vsub.f32 %v409, %v183
        %v1284 = vsub.f32 %v409, %v184
        %v1285 = vsub.f32 %v409, %v185
        %v1286 = vsub.f32 %v409, %v186
        %v1287 = vsub.f32 %v409, %v187
        %v1288 = vlaneseq
        %v1289 = vshrl.u32 %v1288, 7
        %v1290 = vsub.s32 2, %v1289
        %v1291 = vrot.slane %v1235, %v1290
        %v1292 = vmul.f32 %v1272, %v1291
        %v1293 = vmul.f32 %v1273, %v1291
        %v1294 = vmul.f32 %v1274, %v1291
        %v1295 = vmul.f32 %v1275, %v1291
        %v1296 = vmul.f32 %v1276, %v1291
        %v1297 = vmul.f32 %v1277, %v1291
        %v1298 = vmul.f32 %v1278, %v1291
        %v1299 = vmul.f32 %v1279, %v1291
        %v1300 = vmul.f32 %v1280, %v1291
        %v1301 = vmul.f32 %v1281, %v1291
        %v1302 = vmul.f32 %v1282, %v1291
        %v1303 = vmul.f32 %v1283, %v1291
        %v1304 = vmul.f32 %v1284, %v1291
        %v1305 = vmul.f32 %v1285, %v1291
        %v1306 = vmul.f32 %v1286, %v1291
        %v1307 = vmul.f32 %v1287, %v1291
        %v1308 = vmul.f32 %v1256, %v374
        %v1309 = vmul.f32 %v1257, %v375
        %v1310 = vmul.f32 %v1258, %v376
        %v1311 = vmul.f32 %v1259, %v377
        %v1312 = vmul.f32 %v1260, %v378
        %v1313 = vmul.f32 %v1261, %v379
        %v1314 = vmul.f32 %v1262, %v380
        %v1315 = vmul.f32 %v1263, %v381
        %v1316 = vmul.f32 %v1264, %v382
        %v1317 = vmul.f32 %v1265, %v383
        %v1318 = vmul.f32 %v1266, %v384
        %v1319 = vmul.f32 %v1267, %v385
        %v1320 = vmul.f32 %v1268, %v386
        %v1321 = vmul.f32 %v1269, %v387
        %v1322 = vmul.f32 %v1270, %v388
        %v1323 = vmul.f32 %v1271, %v389
        %v1324 = vmul.f32 %v1292, %v458
        %v1325 = vmul.f32 %v1293, %v459
        %v1326 = vmul.f32 %v1294, %v460
        %v1327 = vmul.f32 %v1295, %v461
        %v1328 = vmul.f32 %v1296, %v462
        %v1329 = vmul.f32 %v1297, %v463
        %v1330 = vmul.f32 %v1298, %v464
        %v1331 = vmul.f32 %v1299, %v465
        %v1332 = vmul.f32 %v1300, %v466
        %v1333 = vmul.f32 %v1301, %v467
        %v1334 = vmul.f32 %v1302, %v468
        %v1335 = vmul.f32 %v1303, %v469
        %v1336 = vmul.f32 %v1304, %v470
        %v1337 = vmul.f32 %v1305, %v471
        %v1338 = vmul.f32 %v1306, %v472
        %v1339 = vmul.f32 %v1307, %v473
        %v1340 = vadd.f32 %v1308, %v1324
        %v1341 = vadd.f32 %v1309, %v1325
        %v1342 = vadd.f32 %v1310, %v1326
        %v1343 = vadd.f32 %v1311, %v1327
        %v1344 = vadd.f32 %v1312, %v1328
        %v1345 = vadd.f32 %v1313, %v1329
        %v1346 = vadd.f32 %v1314, %v1330
        %v1347 = vadd.f32 %v1315, %v1331
        %v1348 = vadd.f32 %v1316, %v1332
        %v1349 = vadd.f32 %v1317, %v1333
        %v1350 = vadd.f32 %v1318, %v1334
        %v1351 = vadd.f32 %v1319, %v1335
        %v1352 = vadd.f32 %v1320, %v1336
        %v1353 = vadd.f32 %v1321, %v1337
        %v1354 = vadd.f32 %v1322, %v1338
        %v1355 = vadd.f32 %v1323, %v1339
        %v1356 = vsub.f32 %v172, %v325
        %v1357 = vsub.f32 %v173, %v325
        %v1358 = vsub.f32 %v174, %v325
        %v1359 = vsub.f32 %v175, %v325
        %v1360 = vsub.f32 %v176, %v325
        %v1361 = vsub.f32 %v177, %v325
        %v1362 = vsub.f32 %v178, %v325
        %v1363 = vsub.f32 %v179, %v325
        %v1364 = vsub.f32 %v180, %v325
        %v1365 = vsub.f32 %v181, %v325
        %v1366 = vsub.f32 %v182, %v325
        %v1367 = vsub.f32 %v183, %v325
        %v1368 = vsub.f32 %v184, %v325
        %v1369 = vsub.f32 %v185, %v325
        %v1370 = vsub.f32 %v186, %v325
        %v1371 = vsub.f32 %v187, %v325
        %v1372 = vmul.f32 %v1356, %v1291
        %v1373 = vmul.f32 %v1357, %v1291
        %v1374 = vmul.f32 %v1358, %v1291
        %v1375 = vmul.f32 %v1359, %v1291
        %v1376 = vmul.f32 %v1360, %v1291
        %v1377 = vmul.f32 %v1361, %v1291
        %v1378 = vmul.f32 %v1362, %v1291
        %v1379 = vmul.f32 %v1363, %v1291
        %v1380 = vmul.f32 %v1364, %v1291
        %v1381 = vmul.f32 %v1365, %v1291
        %v1382 = vmul.f32 %v1366, %v1291
        %v1383 = vmul.f32 %v1367, %v1291
        %v1384 = vmul.f32 %v1368, %v1291
        %v1385 = vmul.f32 %v1369, %v1291
        %v1386 = vmul.f32 %v1370, %v1291
        %v1387 = vmul.f32 %v1371, %v1291
        %v1388 = vsub.f32 %v493, %v172
        %v1389 = vsub.f32 %v493, %v173
        %v1390 = vsub.f32 %v493, %v174
        %v1391 = vsub.f32 %v493, %v175
        %v1392 = vsub.f32 %v493, %v176
        %v1393 = vsub.f32 %v493, %v177
        %v1394 = vsub.f32 %v493, %v178
        %v1395 = vsub.f32 %v493, %v179
        %v1396 = vsub.f32 %v493, %v180
        %v1397 = vsub.f32 %v493, %v181
        %v1398 = vsub.f32 %v493, %v182
        %v1399 = vsub.f32 %v493, %v183
        %v1400 = vsub.f32 %v493, %v184
        %v1401 = vsub.f32 %v493, %v185
        %v1402 = vsub.f32 %v493, %v186
        %v1403 = vsub.f32 %v493, %v187
        %v1404 = vlaneseq
        %v1405 = vshrl.u32 %v1404, 7
        %v1406 = vsub.s32 3, %v1405
        %v1407 = vrot.slane %v1235, %v1406
        %v1408 = vmul.f32 %v1388, %v1407
        %v1409 = vmul.f32 %v1389, %v1407
        %v1410 = vmul.f32 %v1390, %v1407
        %v1411 = vmul.f32 %v1391, %v1407
        %v1412 = vmul.f32 %v1392, %v1407
        %v1413 = vmul.f32 %v1393, %v1407
        %v1414 = vmul.f32 %v1394, %v1407
        %v1415 = vmul.f32 %v1395, %v1407
        %v1416 = vmul.f32 %v1396, %v1407
        %v1417 = vmul.f32 %v1397, %v1407
        %v1418 = vmul.f32 %v1398, %v1407
        %v1419 = vmul.f32 %v1399, %v1407
        %v1420 = vmul.f32 %v1400, %v1407
        %v1421 = vmul.f32 %v1401, %v1407
        %v1422 = vmul.f32 %v1402, %v1407
        %v1423 = vmul.f32 %v1403, %v1407
        %v1424 = vmul.f32 %v1372, %v458
        %v1425 = vmul.f32 %v1373, %v459
        %v1426 = vmul.f32 %v1374, %v460
        %v1427 = vmul.f32 %v1375, %v461
        %v1428 = vmul.f32 %v1376, %v462
        %v1429 = vmul.f32 %v1377, %v463
        %v1430 = vmul.f32 %v1378, %v464
        %v1431 = vmul.f32 %v1379, %v465
        %v1432 = vmul.f32 %v1380, %v466
        %v1433 = vmul.f32 %v1381, %v467
        %v1434 = vmul.f32 %v1382, %v468
        %v1435 = vmul.f32 %v1383, %v469
        %v1436 = vmul.f32 %v1384, %v470
        %v1437 = vmul.f32 %v1385, %v471
        %v1438 = vmul.f32 %v1386, %v472
        %v1439 = vmul.f32 %v1387, %v473
        %v1440 = vmul.f32 %v1408, %v542
        %v1441 = vmul.f32 %v1409, %v543
        %v1442 = vmul.f32 %v1410, %v544
        %v1443 = vmul.f32 %v1411, %v545
        %v1444 = vmul.f32 %v1412, %v546
        %v1445 = vmul.f32 %v1413, %v547
        %v1446 = vmul.f32 %v1414, %v548
        %v1447 = vmul.f32 %v1415, %v549
        %v1448 = vmul.f32 %v1416, %v550
        %v1449 = vmul.f32 %v1417, %v551
        %v1450 = vmul.f32 %v1418, %v552
        %v1451 = vmul.f32 %v1419, %v553
        %v1452 = vmul.f32 %v1420, %v554
        %v1453 = vmul.f32 %v1421, %v555
        %v1454 = vmul.f32 %v1422, %v556
        %v1455 = vmul.f32 %v1423, %v557
        %v1456 = vadd.f32 %v1424, %v1440
        %v1457 = vadd.f32 %v1425, %v1441
        %v1458 = vadd.f32 %v1426, %v1442
        %v1459 = vadd.f32 %v1427, %v1443
        %v1460 = vadd.f32 %v1428, %v1444
        %v1461 = vadd.f32 %v1429, %v1445
        %v1462 = vadd.f32 %v1430, %v1446
        %v1463 = vadd.f32 %v1431, %v1447
        %v1464 = vadd.f32 %v1432, %v1448
        %v1465 = vadd.f32 %v1433, %v1449
        %v1466 = vadd.f32 %v1434, %v1450
        %v1467 = vadd.f32 %v1435, %v1451
        %v1468 = vadd.f32 %v1436, %v1452
        %v1469 = vadd.f32 %v1437, %v1453
        %v1470 = vadd.f32 %v1438, %v1454
        %v1471 = vadd.f32 %v1439, %v1455
        %v1472 = vsub.f32 %v172, %v409
        %v1473 = vsub.f32 %v173, %v409
        %v1474 = vsub.f32 %v174, %v409
        %v1475 = vsub.f32 %v175, %v409
        %v1476 = vsub.f32 %v176, %v409
        %v1477 = vsub.f32 %v177, %v409
        %v1478 = vsub.f32 %v178, %v409
        %v1479 = vsub.f32 %v179, %v409
        %v1480 = vsub.f32 %v180, %v409
        %v1481 = vsub.f32 %v181, %v409
        %v1482 = vsub.f32 %v182, %v409
        %v1483 = vsub.f32 %v183, %v409
        %v1484 = vsub.f32 %v184, %v409
        %v1485 = vsub.f32 %v185, %v409
        %v1486 = vsub.f32 %v186, %v409
        %v1487 = vsub.f32 %v187, %v409
        %v1488 = vmul.f32 %v1472, %v1407
        %v1489 = vmul.f32 %v1473, %v1407
        %v1490 = vmul.f32 %v1474, %v1407
        %v1491 = vmul.f32 %v1475, %v1407
        %v1492 = vmul.f32 %v1476, %v1407
        %v1493 = vmul.f32 %v1477, %v1407
        %v1494 = vmul.f32 %v1478, %v1407
        %v1495 = vmul.f32 %v1479, %v1407
        %v1496 = vmul.f32 %v1480, %v1407
        %v1497 = vmul.f32 %v1481, %v1407
        %v1498 = vmul.f32 %v1482, %v1407
        %v1499 = vmul.f32 %v1483, %v1407
        %v1500 = vmul.f32 %v1484, %v1407
        %v1501 = vmul.f32 %v1485, %v1407
        %v1502 = vmul.f32 %v1486, %v1407
        %v1503 = vmul.f32 %v1487, %v1407
        %v1504 = vsub.f32 %v577, %v172
        %v1505 = vsub.f32 %v577, %v173
        %v1506 = vsub.f32 %v577, %v174
        %v1507 = vsub.f32 %v577, %v175
        %v1508 = vsub.f32 %v577, %v176
        %v1509 = vsub.f32 %v577, %v177
        %v1510 = vsub.f32 %v577, %v178
        %v1511 = vsub.f32 %v577, %v179
        %v1512 = vsub.f32 %v577, %v180
        %v1513 = vsub.f32 %v577, %v181
        %v1514 = vsub.f32 %v577, %v182
        %v1515 = vsub.f32 %v577, %v183
        %v1516 = vsub.f32 %v577, %v184
        %v1517 = vsub.f32 %v577, %v185
        %v1518 = vsub.f32 %v577, %v186
        %v1519 = vsub.f32 %v577, %v187
        %v1520 = vlaneseq
        %v1521 = vshrl.u32 %v1520, 7
        %v1522 = vsub.s32 4, %v1521
        %v1523 = vrot.slane %v1235, %v1522
        %v1524 = vmul.f32 %v1504, %v1523
        %v1525 = vmul.f32 %v1505, %v1523
        %v1526 = vmul.f32 %v1506, %v1523
        %v1527 = vmul.f32 %v1507, %v1523
        %v1528 = vmul.f32 %v1508, %v1523
        %v1529 = vmul.f32 %v1509, %v1523
        %v1530 = vmul.f32 %v1510, %v1523
        %v1531 = vmul.f32 %v1511, %v1523
        %v1532 = vmul.f32 %v1512, %v1523
        %v1533 = vmul.f32 %v1513, %v1523
        %v1534 = vmul.f32 %v1514, %v1523
        %v1535 = vmul.f32 %v1515, %v1523
        %v1536 = vmul.f32 %v1516, %v1523
        %v1537 = vmul.f32 %v1517, %v1523
        %v1538 = vmul.f32 %v1518, %v1523
        %v1539 = vmul.f32 %v1519, %v1523
        %v1540 = vmul.f32 %v1488, %v542
        %v1541 = vmul.f32 %v1489, %v543
        %v1542 = vmul.f32 %v1490, %v544
        %v1543 = vmul.f32 %v1491, %v545
        %v1544 = vmul.f32 %v1492, %v546
        %v1545 = vmul.f32 %v1493, %v547
        %v1546 = vmul.f32 %v1494, %v548
        %v1547 = vmul.f32 %v1495, %v549
        %v1548 = vmul.f32 %v1496, %v550
        %v1549 = vmul.f32 %v1497, %v551
        %v1550 = vmul.f32 %v1498, %v552
        %v1551 = vmul.f32 %v1499, %v553
        %v1552 = vmul.f32 %v1500, %v554
        %v1553 = vmul.f32 %v1501, %v555
        %v1554 = vmul.f32 %v1502, %v556
        %v1555 = vmul.f32 %v1503, %v557
        %v1556 = vmul.f32 %v1524, %v626
        %v1557 = vmul.f32 %v1525, %v627
        %v1558 = vmul.f32 %v1526, %v628
        %v1559 = vmul.f32 %v1527, %v629
        %v1560 = vmul.f32 %v1528, %v630
        %v1561 = vmul.f32 %v1529, %v631
        %v1562 = vmul.f32 %v1530, %v632
        %v1563 = vmul.f32 %v1531, %v633
        %v1564 = vmul.f32 %v1532, %v634
        %v1565 = vmul.f32 %v1533, %v635
        %v1566 = vmul.f32 %v1534, %v636
        %v1567 = vmul.f32 %v1535, %v637
        %v1568 = vmul.f32 %v1536, %v638
        %v1569 = vmul.f32 %v1537, %v639
        %v1570 = vmul.f32 %v1538, %v640
        %v1571 = vmul.f32 %v1539, %v641
        %v1572 = vadd.f32 %v1540, %v1556
        %v1573 = vadd.f32 %v1541, %v1557
        %v1574 = vadd.f32 %v1542, %v1558
        %v1575 = vadd.f32 %v1543, %v1559
        %v1576 = vadd.f32 %v1544, %v1560
        %v1577 = vadd.f32 %v1545, %v1561
        %v1578 = vadd.f32 %v1546, %v1562
        %v1579 = vadd.f32 %v1547, %v1563
        %v1580 = vadd.f32 %v1548, %v1564
        %v1581 = vadd.f32 %v1549, %v1565
        %v1582 = vadd.f32 %v1550, %v1566
        %v1583 = vadd.f32 %v1551, %v1567
        %v1584 = vadd.f32 %v1552, %v1568
        %v1585 = vadd.f32 %v1553, %v1569
        %v1586 = vadd.f32 %v1554, %v1570
        %v1587 = vadd.f32 %v1555, %v1571
        %v1588 = vsub.f32 %v172, %v493
        %v1589 = vsub.f32 %v173, %v493
        %v1590 = vsub.f32 %v174, %v493
        %v1591 = vsub.f32 %v175, %v493
        %v1592 = vsub.f32 %v176, %v493
        %v1593 = vsub.f32 %v177, %v493
        %v1594 = vsub.f32 %v178, %v493
        %v1595 = vsub.f32 %v179, %v493
        %v1596 = vsub.f32 %v180, %v493
        %v1597 = vsub.f32 %v181, %v493
        %v1598 = vsub.f32 %v182, %v493
        %v1599 = vsub.f32 %v183, %v493
        %v1600 = vsub.f32 %v184, %v493
        %v1601 = vsub.f32 %v185, %v493
        %v1602 = vsub.f32 %v186, %v493
        %v1603 = vsub.f32 %v187, %v493
        %v1604 = vmul.f32 %v1588, %v1523
        %v1605 = vmul.f32 %v1589, %v1523
        %v1606 = vmul.f32 %v1590, %v1523
        %v1607 = vmul.f32 %v1591, %v1523
        %v1608 = vmul.f32 %v1592, %v1523
        %v1609 = vmul.f32 %v1593, %v1523
        %v1610 = vmul.f32 %v1594, %v1523
        %v1611 = vmul.f32 %v1595, %v1523
        %v1612 = vmul.f32 %v1596, %v1523
        %v1613 = vmul.f32 %v1597, %v1523
        %v1614 = vmul.f32 %v1598, %v1523
        %v1615 = vmul.f32 %v1599, %v1523
        %v1616 = vmul.f32 %v1600, %v1523
        %v1617 = vmul.f32 %v1601, %v1523
        %v1618 = vmul.f32 %v1602, %v1523
        %v1619 = vmul.f32 %v1603, %v1523
        %v1620 = vsub.f32 %v661, %v172
        %v1621 = vsub.f32 %v661, %v173
        %v1622 = vsub.f32 %v661, %v174
        %v1623 = vsub.f32 %v661, %v175
        %v1624 = vsub.f32 %v661, %v176
        %v1625 = vsub.f32 %v661, %v177
        %v1626 = vsub.f32 %v661, %v178
        %v1627 = vsub.f32 %v661, %v179
        %v1628 = vsub.f32 %v661, %v180
        %v1629 = vsub.f32 %v661, %v181
        %v1630 = vsub.f32 %v661, %v182
        %v1631 = vsub.f32 %v661, %v183
        %v1632 = vsub.f32 %v661, %v184
        %v1633 = vsub.f32 %v661, %v185
        %v1634 = vsub.f32 %v661, %v186
        %v1635 = vsub.f32 %v661, %v187
        %v1636 = vlaneseq
        %v1637 = vshrl.u32 %v1636, 7
        %v1638 = vsub.s32 5, %v1637
        %v1639 = vrot.slane %v1235, %v1638
        %v1640 = vmul.f32 %v1620, %v1639
        %v1641 = vmul.f32 %v1621, %v1639
        %v1642 = vmul.f32 %v1622, %v1639
        %v1643 = vmul.f32 %v1623, %v1639
        %v1644 = vmul.f32 %v1624, %v1639
        %v1645 = vmul.f32 %v1625, %v1639
        %v1646 = vmul.f32 %v1626, %v1639
        %v1647 = vmul.f32 %v1627, %v1639
        %v1648 = vmul.f32 %v1628, %v1639
        %v1649 = vmul.f32 %v1629, %v1639
        %v1650 = vmul.f32 %v1630, %v1639
        %v1651 = vmul.f32 %v1631, %v1639
        %v1652 = vmul.f32 %v1632, %v1639
        %v1653 = vmul.f32 %v1633, %v1639
        %v1654 = vmul.f32 %v1634, %v1639
        %v1655 = vmul.f32 %v1635, %v1639
        %v1656 = vmul.f32 %v1604, %v626
        %v1657 = vmul.f32 %v1605, %v627
        %v1658 = vmul.f32 %v1606, %v628
        %v1659 = vmul.f32 %v1607, %v629
        %v1660 = vmul.f32 %v1608, %v630
        %v1661 = vmul.f32 %v1609, %v631
        %v1662 = vmul.f32 %v1610, %v632
        %v1663 = vmul.f32 %v1611, %v633
        %v1664 = vmul.f32 %v1612, %v634
        %v1665 = vmul.f32 %v1613, %v635
        %v1666 = vmul.f32 %v1614, %v636
        %v1667 = vmul.f32 %v1615, %v637
        %v1668 = vmul.f32 %v1616, %v638
        %v1669 = vmul.f32 %v1617, %v639
        %v1670 = vmul.f32 %v1618, %v640
        %v1671 = vmul.f32 %v1619, %v641
        %v1672 = vmul.f32 %v1640, %v710
        %v1673 = vmul.f32 %v1641, %v711
        %v1674 = vmul.f32 %v1642, %v712
        %v1675 = vmul.f32 %v1643, %v713
        %v1676 = vmul.f32 %v1644, %v714
        %v1677 = vmul.f32 %v1645, %v715
        %v1678 = vmul.f32 %v1646, %v716
        %v1679 = vmul.f32 %v1647, %v717
        %v1680 = vmul.f32 %v1648, %v718
        %v1681 = vmul.f32 %v1649, %v719
        %v1682 = vmul.f32 %v1650, %v720
        %v1683 = vmul.f32 %v1651, %v721
        %v1684 = vmul.f32 %v1652, %v722
        %v1685 = vmul.f32 %v1653, %v723
        %v1686 = vmul.f32 %v1654, %v724
        %v1687 = vmul.f32 %v1655, %v725
        %v1688 = vadd.f32 %v1656, %v1672
        %v1689 = vadd.f32 %v1657, %v1673
        %v1690 = vadd.f32 %v1658, %v1674
        %v1691 = vadd.f32 %v1659, %v1675
        %v1692 = vadd.f32 %v1660, %v1676
        %v1693 = vadd.f32 %v1661, %v1677
        %v1694 = vadd.f32 %v1662, %v1678
        %v1695 = vadd.f32 %v1663, %v1679
        %v1696 = vadd.f32 %v1664, %v1680
        %v1697 = vadd.f32 %v1665, %v1681
        %v1698 = vadd.f32 %v1666, %v1682
        %v1699 = vadd.f32 %v1667, %v1683
        %v1700 = vadd.f32 %v1668, %v1684
        %v1701 = vadd.f32 %v1669, %v1685
        %v1702 = vadd.f32 %v1670, %v1686
        %v1703 = vadd.f32 %v1671, %v1687
        %v1704 = vsub.f32 %v172, %v577
        %v1705 = vsub.f32 %v173, %v577
        %v1706 = vsub.f32 %v174, %v577
        %v1707 = vsub.f32 %v175, %v577
        %v1708 = vsub.f32 %v176, %v577
        %v1709 = vsub.f32 %v177, %v577
        %v1710 = vsub.f32 %v178, %v577
        %v1711 = vsub.f32 %v179, %v577
        %v1712 = vsub.f32 %v180, %v577
        %v1713 = vsub.f32 %v181, %v577
        %v1714 = vsub.f32 %v182, %v577
        %v1715 = vsub.f32 %v183, %v577
        %v1716 = vsub.f32 %v184, %v577
        %v1717 = vsub.f32 %v185, %v577
        %v1718 = vsub.f32 %v186, %v577
        %v1719 = vsub.f32 %v187, %v577
        %v1720 = vmul.f32 %v1704, %v1639
        %v1721 = vmul.f32 %v1705, %v1639
        %v1722 = vmul.f32 %v1706, %v1639
        %v1723 = vmul.f32 %v1707, %v1639
        %v1724 = vmul.f32 %v1708, %v1639
        %v1725 = vmul.f32 %v1709, %v1639
        %v1726 = vmul.f32 %v1710, %v1639
        %v1727 = vmul.f32 %v1711, %v1639
        %v1728 = vmul.f32 %v1712, %v1639
        %v1729 = vmul.f32 %v1713, %v1639
        %v1730 = vmul.f32 %v1714, %v1639
        %v1731 = vmul.f32 %v1715, %v1639
        %v1732 = vmul.f32 %v1716, %v1639
        %v1733 = vmul.f32 %v1717, %v1639
        %v1734 = vmul.f32 %v1718, %v1639
        %v1735 = vmul.f32 %v1719, %v1639
        %v1736 = vsub.f32 %v745, %v172
        %v1737 = vsub.f32 %v745, %v173
        %v1738 = vsub.f32 %v745, %v174
        %v1739 = vsub.f32 %v745, %v175
        %v1740 = vsub.f32 %v745, %v176
        %v1741 = vsub.f32 %v745, %v177
        %v1742 = vsub.f32 %v745, %v178
        %v1743 = vsub.f32 %v745, %v179
        %v1744 = vsub.f32 %v745, %v180
        %v1745 = vsub.f32 %v745, %v181
        %v1746 = vsub.f32 %v745, %v182
        %v1747 = vsub.f32 %v745, %v183
        %v1748 = vsub.f32 %v745, %v184
        %v1749 = vsub.f32 %v745, %v185
        %v1750 = vsub.f32 %v745, %v186
        %v1751 = vsub.f32 %v745, %v187
        %v1752 = vlaneseq
        %v1753 = vshrl.u32 %v1752, 7
        %v1754 = vsub.s32 6, %v1753
        %v1755 = vrot.slane %v1235, %v1754
        %v1756 = vmul.f32 %v1736, %v1755
        %v1757 = vmul.f32 %v1737, %v1755
        %v1758 = vmul.f32 %v1738, %v1755
        %v1759 = vmul.f32 %v1739, %v1755
        %v1760 = vmul.f32 %v1740, %v1755
        %v1761 = vmul.f32 %v1741, %v1755
        %v1762 = vmul.f32 %v1742, %v1755
        %v1763 = vmul.f32 %v1743, %v1755
        %v1764 = vmul.f32 %v1744, %v1755
        %v1765 = vmul.f32 %v1745, %v1755
        %v1766 = vmul.f32 %v1746, %v1755
        %v1767 = vmul.f32 %v1747, %v1755
        %v1768 = vmul.f32 %v1748, %v1755
        %v1769 = vmul.f32 %v1749, %v1755
        %v1770 = vmul.f32 %v1750, %v1755
        %v1771 = vmul.f32 %v1751, %v1755
        %v1772 = vmul.f32 %v1720, %v710
        %v1773 = vmul.f32 %v1721, %v711
        %v1774 = vmul.f32 %v1722, %v712
        %v1775 = vmul.f32 %v1723, %v713
        %v1776 = vmul.f32 %v1724, %v714
        %v1777 = vmul.f32 %v1725, %v715
        %v1778 = vmul.f32 %v1726, %v716
        %v1779 = vmul.f32 %v1727, %v717
        %v1780 = vmul.f32 %v1728, %v718
        %v1781 = vmul.f32 %v1729, %v719
        %v1782 = vmul.f32 %v1730, %v720
        %v1783 = vmul.f32 %v1731, %v721
        %v1784 = vmul.f32 %v1732, %v722
        %v1785 = vmul.f32 %v1733, %v723
        %v1786 = vmul.f32 %v1734, %v724
        %v1787 = vmul.f32 %v1735, %v725
        %v1788 = vmul.f32 %v1756, %v794
        %v1789 = vmul.f32 %v1757, %v795
        %v1790 = vmul.f32 %v1758, %v796
        %v1791 = vmul.f32 %v1759, %v797
        %v1792 = vmul.f32 %v1760, %v798
        %v1793 = vmul.f32 %v1761, %v799
        %v1794 = vmul.f32 %v1762, %v800
        %v1795 = vmul.f32 %v1763, %v801
        %v1796 = vmul.f32 %v1764, %v802
        %v1797 = vmul.f32 %v1765, %v803
        %v1798 = vmul.f32 %v1766, %v804
        %v1799 = vmul.f32 %v1767, %v805
        %v1800 = vmul.f32 %v1768, %v806
        %v1801 = vmul.f32 %v1769, %v807
        %v1802 = vmul.f32 %v1770, %v808
        %v1803 = vmul.f32 %v1771, %v809
        %v1804 = vadd.f32 %v1772, %v1788
        %v1805 = vadd.f32 %v1773, %v1789
        %v1806 = vadd.f32 %v1774, %v1790
        %v1807 = vadd.f32 %v1775, %v1791
        %v1808 = vadd.f32 %v1776, %v1792
        %v1809 = vadd.f32 %v1777, %v1793
        %v1810 = vadd.f32 %v1778, %v1794
        %v1811 = vadd.f32 %v1779, %v1795
        %v1812 = vadd.f32 %v1780, %v1796
        %v1813 = vadd.f32 %v1781, %v1797
        %v1814 = vadd.f32 %v1782, %v1798
        %v1815 = vadd.f32 %v1783, %v1799
        %v1816 = vadd.f32 %v1784, %v1800
        %v1817 = vadd.f32 %v1785, %v1801
        %v1818 = vadd.f32 %v1786, %v1802
        %v1819 = vadd.f32 %v1787, %v1803
        %v1820 = vsub.f32 %v172, %v661
        %v1821 = vsub.f32 %v173, %v661
        %v1822 = vsub.f32 %v174, %v661
        %v1823 = vsub.f32 %v175, %v661
        %v1824 = vsub.f32 %v176, %v661
        %v1825 = vsub.f32 %v177, %v661
        %v1826 = vsub.f32 %v178, %v661
        %v1827 = vsub.f32 %v179, %v661
        %v1828 = vsub.f32 %v180, %v661
        %v1829 = vsub.f32 %v181, %v661
        %v1830 = vsub.f32 %v182, %v661
        %v1831 = vsub.f32 %v183, %v661
        %v1832 = vsub.f32 %v184, %v661
        %v1833 = vsub.f32 %v185, %v661
        %v1834 = vsub.f32 %v186, %v661
        %v1835 = vsub.f32 %v187, %v661
        %v1836 = vmul.f32 %v1820, %v1755
        %v1837 = vmul.f32 %v1821, %v1755
        %v1838 = vmul.f32 %v1822, %v1755
        %v1839 = vmul.f32 %v1823, %v1755
        %v1840 = vmul.f32 %v1824, %v1755
        %v1841 = vmul.f32 %v1825, %v1755
        %v1842 = vmul.f32 %v1826, %v1755
        %v1843 = vmul.f32 %v1827, %v1755
        %v1844 = vmul.f32 %v1828, %v1755
        %v1845 = vmul.f32 %v1829, %v1755
        %v1846 = vmul.f32 %v1830, %v1755
        %v1847 = vmul.f32 %v1831, %v1755
        %v1848 = vmul.f32 %v1832, %v1755
        %v1849 = vmul.f32 %v1833, %v1755
        %v1850 = vmul.f32 %v1834, %v1755
        %v1851 = vmul.f32 %v1835, %v1755
        %v1852 = vsub.f32 %v829, %v172
        %v1853 = vsub.f32 %v829, %v173
        %v1854 = vsub.f32 %v829, %v174
        %v1855 = vsub.f32 %v829, %v175
        %v1856 = vsub.f32 %v829, %v176
        %v1857 = vsub.f32 %v829, %v177
        %v1858 = vsub.f32 %v829, %v178
        %v1859 = vsub.f32 %v829, %v179
        %v1860 = vsub.f32 %v829, %v180
        %v1861 = vsub.f32 %v829, %v181
        %v1862 = vsub.f32 %v829, %v182
        %v1863 = vsub.f32 %v829, %v183
        %v1864 = vsub.f32 %v829, %v184
        %v1865 = vsub.f32 %v829, %v185
        %v1866 = vsub.f32 %v829, %v186
        %v1867 = vsub.f32 %v829, %v187
        %v1868 = vlaneseq
        %v1869 = vshrl.u32 %v1868, 7
        %v1870 = vsub.s32 7, %v1869
        %v1871 = vrot.slane %v1235, %v1870
        %v1872 = vmul.f32 %v1852, %v1871
        %v1873 = vmul.f32 %v1853, %v1871
        %v1874 = vmul.f32 %v1854, %v1871
        %v1875 = vmul.f32 %v1855, %v1871
        %v1876 = vmul.f32 %v1856, %v1871
        %v1877 = vmul.f32 %v1857, %v1871
        %v1878 = vmul.f32 %v1858, %v1871
        %v1879 = vmul.f32 %v1859, %v1871
        %v1880 = vmul.f32 %v1860, %v1871
        %v1881 = vmul.f32 %v1861, %v1871
        %v1882 = vmul.f32 %v1862, %v1871
        %v1883 = vmul.f32 %v1863, %v1871
        %v1884 = vmul.f32 %v1864, %v1871
        %v1885 = vmul.f32 %v1865, %v1871
        %v1886 = vmul.f32 %v1866, %v1871
        %v1887 = vmul.f32 %v1867, %v1871
        %v1888 = vmul.f32 %v1836, %v794
        %v1889 = vmul.f32 %v1837, %v795
        %v1890 = vmul.f32 %v1838, %v796
        %v1891 = vmul.f32 %v1839, %v797
        %v1892 = vmul.f32 %v1840, %v798
        %v1893 = vmul.f32 %v1841, %v799
        %v1894 = vmul.f32 %v1842, %v800
        %v1895 = vmul.f32 %v1843, %v801
        %v1896 = vmul.f32 %v1844, %v802
        %v1897 = vmul.f32 %v1845, %v803
        %v1898 = vmul.f32 %v1846, %v804
        %v1899 = vmul.f32 %v1847, %v805
        %v1900 = vmul.f32 %v1848, %v806
        %v1901 = vmul.f32 %v1849, %v807
        %v1902 = vmul.f32 %v1850, %v808
        %v1903 = vmul.f32 %v1851, %v809
        %v1904 = vmul.f32 %v1872, %v878
        %v1905 = vmul.f32 %v1873, %v879
        %v1906 = vmul.f32 %v1874, %v880
        %v1907 = vmul.f32 %v1875, %v881
        %v1908 = vmul.f32 %v1876, %v882
        %v1909 = vmul.f32 %v1877, %v883
        %v1910 = vmul.f32 %v1878, %v884
        %v1911 = vmul.f32 %v1879, %v885
        %v1912 = vmul.f32 %v1880, %v886
        %v1913 = vmul.f32 %v1881, %v887
        %v1914 = vmul.f32 %v1882, %v888
        %v1915 = vmul.f32 %v1883, %v889
        %v1916 = vmul.f32 %v1884, %v890
        %v1917 = vmul.f32 %v1885, %v891
        %v1918 = vmul.f32 %v1886, %v892
        %v1919 = vmul.f32 %v1887, %v893
        %v1920 = vadd.f32 %v1888, %v1904
        %v1921 = vadd.f32 %v1889, %v1905
        %v1922 = vadd.f32 %v1890, %v1906
        %v1923 = vadd.f32 %v1891, %v1907
        %v1924 = vadd.f32 %v1892, %v1908
        %v1925 = vadd.f32 %v1893, %v1909
        %v1926 = vadd.f32 %v1894, %v1910
        %v1927 = vadd.f32 %v1895, %v1911
        %v1928 = vadd.f32 %v1896, %v1912
        %v1929 = vadd.f32 %v1897, %v1913
        %v1930 = vadd.f32 %v1898, %v1914
        %v1931 = vadd.f32 %v1899, %v1915
        %v1932 = vadd.f32 %v1900, %v1916
        %v1933 = vadd.f32 %v1901, %v1917
        %v1934 = vadd.f32 %v1902, %v1918
        %v1935 = vadd.f32 %v1903, %v1919
        %v1936 = vsub.f32 %v189, %v1231
        %v1937 = vrcp.pop %v1936
        %v1938 = vmul.f32 1.0, %v1937
        %v1939 = vsub.f32 %v172, %v745
        %v1940 = vsub.f32 %v173, %v745
        %v1941 = vsub.f32 %v174, %v745
        %v1942 = vsub.f32 %v175, %v745
        %v1943 = vsub.f32 %v176, %v745
        %v1944 = vsub.f32 %v177, %v745
        %v1945 = vsub.f32 %v178, %v745
        %v1946 = vsub.f32 %v179, %v745
        %v1947 = vsub.f32 %v180, %v745
        %v1948 = vsub.f32 %v181, %v745
        %v1949 = vsub.f32 %v182, %v745
        %v1950 = vsub.f32 %v183, %v745
        %v1951 = vsub.f32 %v184, %v745
        %v1952 = vsub.f32 %v185, %v745
        %v1953 = vsub.f32 %v186, %v745
        %v1954 = vsub.f32 %v187, %v745
        %v1955 = vmul.f32 %v1939, %v1871
        %v1956 = vmul.f32 %v1940, %v1871
        %v1957 = vmul.f32 %v1941, %v1871
        %v1958 = vmul.f32 %v1942, %v1871
        %v1959 = vmul.f32 %v1943, %v1871
        %v1960 = vmul.f32 %v1944, %v1871
        %v1961 = vmul.f32 %v1945, %v1871
        %v1962 = vmul.f32 %v1946, %v1871
        %v1963 = vmul.f32 %v1947, %v1871
        %v1964 = vmul.f32 %v1948, %v1871
        %v1965 = vmul.f32 %v1949, %v1871
        %v1966 = vmul.f32 %v1950, %v1871
        %v1967 = vmul.f32 %v1951, %v1871
        %v1968 = vmul.f32 %v1952, %v1871
        %v1969 = vmul.f32 %v1953, %v1871
        %v1970 = vmul.f32 %v1954, %v1871
        %v1971 = vsub.f32 %v913, %v172
        %v1972 = vsub.f32 %v913, %v173
        %v1973 = vsub.f32 %v913, %v174
        %v1974 = vsub.f32 %v913, %v175
        %v1975 = vsub.f32 %v913, %v176
        %v1976 = vsub.f32 %v913, %v177
        %v1977 = vsub.f32 %v913, %v178
        %v1978 = vsub.f32 %v913, %v179
        %v1979 = vsub.f32 %v913, %v180
        %v1980 = vsub.f32 %v913, %v181
        %v1981 = vsub.f32 %v913, %v182
        %v1982 = vsub.f32 %v913, %v183
        %v1983 = vsub.f32 %v913, %v184
        %v1984 = vsub.f32 %v913, %v185
        %v1985 = vsub.f32 %v913, %v186
        %v1986 = vsub.f32 %v913, %v187
        %v1987 = vlaneseq
        %v1988 = vshrl.u32 %v1987, 7
        %v1989 = vsub.s32 0, %v1988
        %v1990 = vrot.slane %v1938, %v1989
        %v1991 = vmul.f32 %v1971, %v1990
        %v1992 = vmul.f32 %v1972, %v1990
        %v1993 = vmul.f32 %v1973, %v1990
        %v1994 = vmul.f32 %v1974, %v1990
        %v1995 = vmul.f32 %v1975, %v1990
        %v1996 = vmul.f32 %v1976, %v1990
        %v1997 = vmul.f32 %v1977, %v1990
        %v1998 = vmul.f32 %v1978, %v1990
        %v1999 = vmul.f32 %v1979, %v1990
        %v2000 = vmul.f32 %v1980, %v1990
        %v2001 = vmul.f32 %v1981, %v1990
        %v2002 = vmul.f32 %v1982, %v1990
        %v2003 = vmul.f32 %v1983, %v1990
        %v2004 = vmul.f32 %v1984, %v1990
        %v2005 = vmul.f32 %v1985, %v1990
        %v2006 = vmul.f32 %v1986, %v1990
        %v2007 = vmul.f32 %v1955, %v878
        %v2008 = vmul.f32 %v1956, %v879
        %v2009 = vmul.f32 %v1957, %v880
        %v2010 = vmul.f32 %v1958, %v881
        %v2011 = vmul.f32 %v1959, %v882
        %v2012 = vmul.f32 %v1960, %v883
        %v2013 = vmul.f32 %v1961, %v884
        %v2014 = vmul.f32 %v1962, %v885
        %v2015 = vmul.f32 %v1963, %v886
        %v2016 = vmul.f32 %v1964, %v887
        %v2017 = vmul.f32 %v1965, %v888
        %v2018 = vmul.f32 %v1966, %v889
        %v2019 = vmul.f32 %v1967, %v890
        %v2020 = vmul.f32 %v1968, %v891
        %v2021 = vmul.f32 %v1969, %v892
        %v2022 = vmul.f32 %v1970, %v893
        %v2023 = vmul.f32 %v1991, %v962
        %v2024 = vmul.f32 %v1992, %v963
        %v2025 = vmul.f32 %v1993, %v964
        %v2026 = vmul.f32 %v1994, %v965
        %v2027 = vmul.f32 %v1995, %v966
        %v2028 = vmul.f32 %v1996, %v967
        %v2029 = vmul.f32 %v1997, %v968
        %v2030 = vmul.f32 %v1998, %v969
        %v2031 = vmul.f32 %v1999, %v970
        %v2032 = vmul.f32 %v2000, %v971
        %v2033 = vmul.f32 %v2001, %v972
        %v2034 = vmul.f32 %v2002, %v973
        %v2035 = vmul.f32 %v2003, %v974
        %v2036 = vmul.f32 %v2004, %v975
        %v2037 = vmul.f32 %v2005, %v976
        %v2038 = vmul.f32 %v2006, %v977
        %v2039 = vadd.f32 %v2007, %v2023
        %v2040 = vadd.f32 %v2008, %v2024
        %v2041 = vadd.f32 %v2009, %v2025
        %v2042 = vadd.f32 %v2010, %v2026
        %v2043 = vadd.f32 %v2011, %v2027
        %v2044 = vadd.f32 %v2012, %v2028
        %v2045 = vadd.f32 %v2013, %v2029
        %v2046 = vadd.f32 %v2014, %v2030
        %v2047 = vadd.f32 %v2015, %v2031
        %v2048 = vadd.f32 %v2016, %v2032
        %v2049 = vadd.f32 %v2017, %v2033
        %v2050 = vadd.f32 %v2018, %v2034
        %v2051 = vadd.f32 %v2019, %v2035
        %v2052 = vadd.f32 %v2020, %v2036
        %v2053 = vadd.f32 %v2021, %v2037
        %v2054 = vadd.f32 %v2022, %v2038
        %v2056 = vrot.slane %v189, 7
        %v2058 = vsub.f32 %v189, %v2056
        %v2059 = vrcp.pop %v2058
        %v2060 = vmul.f32 1.0, %v2059
        %v2061 = vsub.f32 %v172, %v829
        %v2062 = vsub.f32 %v173, %v829
        %v2063 = vsub.f32 %v174, %v829
        %v2064 = vsub.f32 %v175, %v829
        %v2065 = vsub.f32 %v176, %v829
        %v2066 = vsub.f32 %v177, %v829
        %v2067 = vsub.f32 %v178, %v829
        %v2068 = vsub.f32 %v179, %v829
        %v2069 = vsub.f32 %v180, %v829
        %v2070 = vsub.f32 %v181, %v829
        %v2071 = vsub.f32 %v182, %v829
        %v2072 = vsub.f32 %v183, %v829
        %v2073 = vsub.f32 %v184, %v829
        %v2074 = vsub.f32 %v185, %v829
        %v2075 = vsub.f32 %v186, %v829
        %v2076 = vsub.f32 %v187, %v829
        %v2077 = vmul.f32 %v2061, %v1990
        %v2078 = vmul.f32 %v2062, %v1990
        %v2079 = vmul.f32 %v2063, %v1990
        %v2080 = vmul.f32 %v2064, %v1990
        %v2081 = vmul.f32 %v2065, %v1990
        %v2082 = vmul.f32 %v2066, %v1990
        %v2083 = vmul.f32 %v2067, %v1990
        %v2084 = vmul.f32 %v2068, %v1990
        %v2085 = vmul.f32 %v2069, %v1990
        %v2086 = vmul.f32 %v2070, %v1990
        %v2087 = vmul.f32 %v2071, %v1990
        %v2088 = vmul.f32 %v2072, %v1990
        %v2089 = vmul.f32 %v2073, %v1990
        %v2090 = vmul.f32 %v2074, %v1990
        %v2091 = vmul.f32 %v2075, %v1990
        %v2092 = vmul.f32 %v2076, %v1990
        %v2093 = vsub.f32 %v997, %v172
        %v2094 = vsub.f32 %v997, %v173
        %v2095 = vsub.f32 %v997, %v174
        %v2096 = vsub.f32 %v997, %v175
        %v2097 = vsub.f32 %v997, %v176
        %v2098 = vsub.f32 %v997, %v177
        %v2099 = vsub.f32 %v997, %v178
        %v2100 = vsub.f32 %v997, %v179
        %v2101 = vsub.f32 %v997, %v180
        %v2102 = vsub.f32 %v997, %v181
        %v2103 = vsub.f32 %v997, %v182
        %v2104 = vsub.f32 %v997, %v183
        %v2105 = vsub.f32 %v997, %v184
        %v2106 = vsub.f32 %v997, %v185
        %v2107 = vsub.f32 %v997, %v186
        %v2108 = vsub.f32 %v997, %v187
        %v2109 = vlaneseq
        %v2110 = vshrl.u32 %v2109, 7
        %v2111 = vsub.s32 1, %v2110
        %v2112 = vrot.slane %v2060, %v2111
        %v2113 = vmul.f32 %v2093, %v2112
        %v2114 = vmul.f32 %v2094, %v2112
        %v2115 = vmul.f32 %v2095, %v2112
        %v2116 = vmul.f32 %v2096, %v2112
        %v2117 = vmul.f32 %v2097, %v2112
        %v2118 = vmul.f32 %v2098, %v2112
        %v2119 = vmul.f32 %v2099, %v2112
        %v2120 = vmul.f32 %v2100, %v2112
        %v2121 = vmul.f32 %v2101, %v2112
        %v2122 = vmul.f32 %v2102, %v2112
        %v2123 = vmul.f32 %v2103, %v2112
        %v2124 = vmul.f32 %v2104, %v2112
        %v2125 = vmul.f32 %v2105, %v2112
        %v2126 = vmul.f32 %v2106, %v2112
        %v2127 = vmul.f32 %v2107, %v2112
        %v2128 = vmul.f32 %v2108, %v2112
        %v2129 = vmul.f32 %v2077, %v962
        %v2130 = vmul.f32 %v2078, %v963
        %v2131 = vmul.f32 %v2079, %v964
        %v2132 = vmul.f32 %v2080, %v965
        %v2133 = vmul.f32 %v2081, %v966
        %v2134 = vmul.f32 %v2082, %v967
        %v2135 = vmul.f32 %v2083, %v968
        %v2136 = vmul.f32 %v2084, %v969
        %v2137 = vmul.f32 %v2085, %v970
        %v2138 = vmul.f32 %v2086, %v971
        %v2139 = vmul.f32 %v2087, %v972
        %v2140 = vmul.f32 %v2088, %v973
        %v2141 = vmul.f32 %v2089, %v974
        %v2142 = vmul.f32 %v2090, %v975
        %v2143 = vmul.f32 %v2091, %v976
        %v2144 = vmul.f32 %v2092, %v977
        %v2145 = vmul.f32 %v2113, %v1046
        %v2146 = vmul.f32 %v2114, %v1047
        %v2147 = vmul.f32 %v2115, %v1048
        %v2148 = vmul.f32 %v2116, %v1049
        %v2149 = vmul.f32 %v2117, %v1050
        %v2150 = vmul.f32 %v2118, %v1051
        %v2151 = vmul.f32 %v2119, %v1052
        %v2152 = vmul.f32 %v2120, %v1053
        %v2153 = vmul.f32 %v2121, %v1054
        %v2154 = vmul.f32 %v2122, %v1055
        %v2155 = vmul.f32 %v2123, %v1056
        %v2156 = vmul.f32 %v2124, %v1057
        %v2157 = vmul.f32 %v2125, %v1058
        %v2158 = vmul.f32 %v2126, %v1059
        %v2159 = vmul.f32 %v2127, %v1060
        %v2160 = vmul.f32 %v2128, %v1061
        %v2161 = vadd.f32 %v2129, %v2145
        %v2162 = vadd.f32 %v2130, %v2146
        %v2163 = vadd.f32 %v2131, %v2147
        %v2164 = vadd.f32 %v2132, %v2148
        %v2165 = vadd.f32 %v2133, %v2149
        %v2166 = vadd.f32 %v2134, %v2150
        %v2167 = vadd.f32 %v2135, %v2151
        %v2168 = vadd.f32 %v2136, %v2152
        %v2169 = vadd.f32 %v2137, %v2153
        %v2170 = vadd.f32 %v2138, %v2154
        %v2171 = vadd.f32 %v2139, %v2155
        %v2172 = vadd.f32 %v2140, %v2156
        %v2173 = vadd.f32 %v2141, %v2157
        %v2174 = vadd.f32 %v2142, %v2158
        %v2175 = vadd.f32 %v2143, %v2159
        %v2176 = vadd.f32 %v2144, %v2160
        %v2177 = vsub.f32 %v172, %v913
        %v2178 = vsub.f32 %v173, %v913
        %v2179 = vsub.f32 %v174, %v913
        %v2180 = vsub.f32 %v175, %v913
        %v2181 = vsub.f32 %v176, %v913
        %v2182 = vsub.f32 %v177, %v913
        %v2183 = vsub.f32 %v178, %v913
        %v2184 = vsub.f32 %v179, %v913
        %v2185 = vsub.f32 %v180, %v913
        %v2186 = vsub.f32 %v181, %v913
        %v2187 = vsub.f32 %v182, %v913
        %v2188 = vsub.f32 %v183, %v913
        %v2189 = vsub.f32 %v184, %v913
        %v2190 = vsub.f32 %v185, %v913
        %v2191 = vsub.f32 %v186, %v913
        %v2192 = vsub.f32 %v187, %v913
        %v2193 = vmul.f32 %v2177, %v2112
        %v2194 = vmul.f32 %v2178, %v2112
        %v2195 = vmul.f32 %v2179, %v2112
        %v2196 = vmul.f32 %v2180, %v2112
        %v2197 = vmul.f32 %v2181, %v2112
        %v2198 = vmul.f32 %v2182, %v2112
        %v2199 = vmul.f32 %v2183, %v2112
        %v2200 = vmul.f32 %v2184, %v2112
        %v2201 = vmul.f32 %v2185, %v2112
        %v2202 = vmul.f32 %v2186, %v2112
        %v2203 = vmul.f32 %v2187, %v2112
        %v2204 = vmul.f32 %v2188, %v2112
        %v2205 = vmul.f32 %v2189, %v2112
        %v2206 = vmul.f32 %v2190, %v2112
        %v2207 = vmul.f32 %v2191, %v2112
        %v2208 = vmul.f32 %v2192, %v2112
        %v2209 = vsub.f32 %v1081, %v172
        %v2210 = vsub.f32 %v1081, %v173
        %v2211 = vsub.f32 %v1081, %v174
        %v2212 = vsub.f32 %v1081, %v175
        %v2213 = vsub.f32 %v1081, %v176
        %v2214 = vsub.f32 %v1081, %v177
        %v2215 = vsub.f32 %v1081, %v178
        %v2216 = vsub.f32 %v1081, %v179
        %v2217 = vsub.f32 %v1081, %v180
        %v2218 = vsub.f32 %v1081, %v181
        %v2219 = vsub.f32 %v1081, %v182
        %v2220 = vsub.f32 %v1081, %v183
        %v2221 = vsub.f32 %v1081, %v184
        %v2222 = vsub.f32 %v1081, %v185
        %v2223 = vsub.f32 %v1081, %v186
        %v2224 = vsub.f32 %v1081, %v187
        %v2225 = vlaneseq
        %v2226 = vshrl.u32 %v2225, 7
        %v2227 = vsub.s32 2, %v2226
        %v2228 = vrot.slane %v2060, %v2227
        %v2229 = vmul.f32 %v2209, %v2228
        %v2230 = vmul.f32 %v2210, %v2228
        %v2231 = vmul.f32 %v2211, %v2228
        %v2232 = vmul.f32 %v2212, %v2228
        %v2233 = vmul.f32 %v2213, %v2228
        %v2234 = vmul.f32 %v2214, %v2228
        %v2235 = vmul.f32 %v2215, %v2228
        %v2236 = vmul.f32 %v2216, %v2228
        %v2237 = vmul.f32 %v2217, %v2228
        %v2238 = vmul.f32 %v2218, %v2228
        %v2239 = vmul.f32 %v2219, %v2228
        %v2240 = vmul.f32 %v2220, %v2228
        %v2241 = vmul.f32 %v2221, %v2228
        %v2242 = vmul.f32 %v2222, %v2228
        %v2243 = vmul.f32 %v2223, %v2228
        %v2244 = vmul.f32 %v2224, %v2228
        %v2245 = vmul.f32 %v2193, %v1046
        %v2246 = vmul.f32 %v2194, %v1047
        %v2247 = vmul.f32 %v2195, %v1048
        %v2248 = vmul.f32 %v2196, %v1049
        %v2249 = vmul.f32 %v2197, %v1050
        %v2250 = vmul.f32 %v2198, %v1051
        %v2251 = vmul.f32 %v2199, %v1052
        %v2252 = vmul.f32 %v2200, %v1053
        %v2253 = vmul.f32 %v2201, %v1054
        %v2254 = vmul.f32 %v2202, %v1055
        %v2255 = vmul.f32 %v2203, %v1056
        %v2256 = vmul.f32 %v2204, %v1057
        %v2257 = vmul.f32 %v2205, %v1058
        %v2258 = vmul.f32 %v2206, %v1059
        %v2259 = vmul.f32 %v2207, %v1060
        %v2260 = vmul.f32 %v2208, %v1061
        %v2261 = vmul.f32 %v2229, %v1130
        %v2262 = vmul.f32 %v2230, %v1131
        %v2263 = vmul.f32 %v2231, %v1132
        %v2264 = vmul.f32 %v2232, %v1133
        %v2265 = vmul.f32 %v2233, %v1134
        %v2266 = vmul.f32 %v2234, %v1135
        %v2267 = vmul.f32 %v2235, %v1136
        %v2268 = vmul.f32 %v2236, %v1137
        %v2269 = vmul.f32 %v2237, %v1138
        %v2270 = vmul.f32 %v2238, %v1139
        %v2271 = vmul.f32 %v2239, %v1140
        %v2272 = vmul.f32 %v2240, %v1141
        %v2273 = vmul.f32 %v2241, %v1142
        %v2274 = vmul.f32 %v2242, %v1143
        %v2275 = vmul.f32 %v2243, %v1144
        %v2276 = vmul.f32 %v2244, %v1145
        %v2277 = vadd.f32 %v2245, %v2261
        %v2278 = vadd.f32 %v2246, %v2262
        %v2279 = vadd.f32 %v2247, %v2263
        %v2280 = vadd.f32 %v2248, %v2264
        %v2281 = vadd.f32 %v2249, %v2265
        %v2282 = vadd.f32 %v2250, %v2266
        %v2283 = vadd.f32 %v2251, %v2267
        %v2284 = vadd.f32 %v2252, %v2268
        %v2285 = vadd.f32 %v2253, %v2269
        %v2286 = vadd.f32 %v2254, %v2270
        %v2287 = vadd.f32 %v2255, %v2271
        %v2288 = vadd.f32 %v2256, %v2272
        %v2289 = vadd.f32 %v2257, %v2273
        %v2290 = vadd.f32 %v2258, %v2274
        %v2291 = vadd.f32 %v2259, %v2275
        %v2292 = vadd.f32 %v2260, %v2276
        %v2293 = vsub.f32 %v172, %v997
        %v2294 = vsub.f32 %v173, %v997
        %v2295 = vsub.f32 %v174, %v997
        %v2296 = vsub.f32 %v175, %v997
        %v2297 = vsub.f32 %v176, %v997
        %v2298 = vsub.f32 %v177, %v997
        %v2299 = vsub.f32 %v178, %v997
        %v2300 = vsub.f32 %v179, %v997
        %v2301 = vsub.f32 %v180, %v997
        %v2302 = vsub.f32 %v181, %v997
        %v2303 = vsub.f32 %v182, %v997
        %v2304 = vsub.f32 %v183, %v997
        %v2305 = vsub.f32 %v184, %v997
        %v2306 = vsub.f32 %v185, %v997
        %v2307 = vsub.f32 %v186, %v997
        %v2308 = vsub.f32 %v187, %v997
        %v2309 = vmul.f32 %v2293, %v2228
        %v2310 = vmul.f32 %v2294, %v2228
        %v2311 = vmul.f32 %v2295, %v2228
        %v2312 = vmul.f32 %v2296, %v2228
        %v2313 = vmul.f32 %v2297, %v2228
        %v2314 = vmul.f32 %v2298, %v2228
        %v2315 = vmul.f32 %v2299, %v2228
        %v2316 = vmul.f32 %v2300, %v2228
        %v2317 = vmul.f32 %v2301, %v2228
        %v2318 = vmul.f32 %v2302, %v2228
        %v2319 = vmul.f32 %v2303, %v2228
        %v2320 = vmul.f32 %v2304, %v2228
        %v2321 = vmul.f32 %v2305, %v2228
        %v2322 = vmul.f32 %v2306, %v2228
        %v2323 = vmul.f32 %v2307, %v2228
        %v2324 = vmul.f32 %v2308, %v2228
        %v2325 = vsub.f32 %v1165, %v172
        %v2326 = vsub.f32 %v1165, %v173
        %v2327 = vsub.f32 %v1165, %v174
        %v2328 = vsub.f32 %v1165, %v175
        %v2329 = vsub.f32 %v1165, %v176
        %v2330 = vsub.f32 %v1165, %v177
        %v2331 = vsub.f32 %v1165, %v178
        %v2332 = vsub.f32 %v1165, %v179
        %v2333 = vsub.f32 %v1165, %v180
        %v2334 = vsub.f32 %v1165, %v181
        %v2335 = vsub.f32 %v1165, %v182
        %v2336 = vsub.f32 %v1165, %v183
        %v2337 = vsub.f32 %v1165, %v184
        %v2338 = vsub.f32 %v1165, %v185
        %v2339 = vsub.f32 %v1165, %v186
        %v2340 = vsub.f32 %v1165, %v187
        %v2341 = vlaneseq
        %v2342 = vshrl.u32 %v2341, 7
        %v2343 = vsub.s32 3, %v2342
        %v2344 = vrot.slane %v2060, %v2343
        %v2345 = vmul.f32 %v2325, %v2344
        %v2346 = vmul.f32 %v2326, %v2344
        %v2347 = vmul.f32 %v2327, %v2344
        %v2348 = vmul.f32 %v2328, %v2344
        %v2349 = vmul.f32 %v2329, %v2344
        %v2350 = vmul.f32 %v2330, %v2344
        %v2351 = vmul.f32 %v2331, %v2344
        %v2352 = vmul.f32 %v2332, %v2344
        %v2353 = vmul.f32 %v2333, %v2344
        %v2354 = vmul.f32 %v2334, %v2344
        %v2355 = vmul.f32 %v2335, %v2344
        %v2356 = vmul.f32 %v2336, %v2344
        %v2357 = vmul.f32 %v2337, %v2344
        %v2358 = vmul.f32 %v2338, %v2344
        %v2359 = vmul.f32 %v2339, %v2344
        %v2360 = vmul.f32 %v2340, %v2344
        %v2361 = vmul.f32 %v2309, %v1130
        %v2362 = vmul.f32 %v2310, %v1131
        %v2363 = vmul.f32 %v2311, %v1132
        %v2364 = vmul.f32 %v2312, %v1133
        %v2365 = vmul.f32 %v2313, %v1134
        %v2366 = vmul.f32 %v2314, %v1135
        %v2367 = vmul.f32 %v2315, %v1136
        %v2368 = vmul.f32 %v2316, %v1137
        %v2369 = vmul.f32 %v2317, %v1138
        %v2370 = vmul.f32 %v2318, %v1139
        %v2371 = vmul.f32 %v2319, %v1140
        %v2372 = vmul.f32 %v2320, %v1141
        %v2373 = vmul.f32 %v2321, %v1142
        %v2374 = vmul.f32 %v2322, %v1143
        %v2375 = vmul.f32 %v2323, %v1144
        %v2376 = vmul.f32 %v2324, %v1145
        %v2377 = vmul.f32 %v2345, %v1214
        %v2378 = vmul.f32 %v2346, %v1215
        %v2379 = vmul.f32 %v2347, %v1216
        %v2380 = vmul.f32 %v2348, %v1217
        %v2381 = vmul.f32 %v2349, %v1218
        %v2382 = vmul.f32 %v2350, %v1219
        %v2383 = vmul.f32 %v2351, %v1220
        %v2384 = vmul.f32 %v2352, %v1221
        %v2385 = vmul.f32 %v2353, %v1222
        %v2386 = vmul.f32 %v2354, %v1223
        %v2387 = vmul.f32 %v2355, %v1224
        %v2388 = vmul.f32 %v2356, %v1225
        %v2389 = vmul.f32 %v2357, %v1226
        %v2390 = vmul.f32 %v2358, %v1227
        %v2391 = vmul.f32 %v2359, %v1228
        %v2392 = vmul.f32 %v2360, %v1229
        %v2393 = vadd.f32 %v2361, %v2377
        %v2394 = vadd.f32 %v2362, %v2378
        %v2395 = vadd.f32 %v2363, %v2379
        %v2396 = vadd.f32 %v2364, %v2380
        %v2397 = vadd.f32 %v2365, %v2381
        %v2398 = vadd.f32 %v2366, %v2382
        %v2399 = vadd.f32 %v2367, %v2383
        %v2400 = vadd.f32 %v2368, %v2384
        %v2401 = vadd.f32 %v2369, %v2385
        %v2402 = vadd.f32 %v2370, %v2386
        %v2403 = vadd.f32 %v2371, %v2387
        %v2404 = vadd.f32 %v2372, %v2388
        %v2405 = vadd.f32 %v2373, %v2389
        %v2406 = vadd.f32 %v2374, %v2390
        %v2407 = vadd.f32 %v2375, %v2391
        %v2408 = vadd.f32 %v2376, %v2392
        %v2409 = vrot.slane %v188, 6
        %v2411 = vsub.f32 %v188, %v2409
        %v2412 = vrcp.pop %v2411
        %v2413 = vmul.f32 1.0, %v2412
        %v2414 = vlaneseq
        %v2415 = vshrl.u32 %v2414, 7
        %v2416 = vsub.s32 2, %v2415
        %v2417 = vrot.slane %v2413, %v2416
        %v2418 = vmul.f32 %v1236, %v2417
        %v2419 = vmul.f32 %v1237, %v2417
        %v2420 = vmul.f32 %v1238, %v2417
        %v2421 = vmul.f32 %v1239, %v2417
        %v2422 = vmul.f32 %v1240, %v2417
        %v2423 = vmul.f32 %v1241, %v2417
        %v2424 = vmul.f32 %v1242, %v2417
        %v2425 = vmul.f32 %v1243, %v2417
        %v2426 = vmul.f32 %v1244, %v2417
        %v2427 = vmul.f32 %v1245, %v2417
        %v2428 = vmul.f32 %v1246, %v2417
        %v2429 = vmul.f32 %v1247, %v2417
        %v2430 = vmul.f32 %v1248, %v2417
        %v2431 = vmul.f32 %v1249, %v2417
        %v2432 = vmul.f32 %v1250, %v2417
        %v2433 = vmul.f32 %v1251, %v2417
        %v2434 = vlaneseq
        %v2435 = vshrl.u32 %v2434, 7
        %v2436 = vsub.s32 3, %v2435
        %v2437 = vrot.slane %v2413, %v2436
        %v2438 = vmul.f32 %v1388, %v2437
        %v2439 = vmul.f32 %v1389, %v2437
        %v2440 = vmul.f32 %v1390, %v2437
        %v2441 = vmul.f32 %v1391, %v2437
        %v2442 = vmul.f32 %v1392, %v2437
        %v2443 = vmul.f32 %v1393, %v2437
        %v2444 = vmul.f32 %v1394, %v2437
        %v2445 = vmul.f32 %v1395, %v2437
        %v2446 = vmul.f32 %v1396, %v2437
        %v2447 = vmul.f32 %v1397, %v2437
        %v2448 = vmul.f32 %v1398, %v2437
        %v2449 = vmul.f32 %v1399, %v2437
        %v2450 = vmul.f32 %v1400, %v2437
        %v2451 = vmul.f32 %v1401, %v2437
        %v2452 = vmul.f32 %v1402, %v2437
        %v2453 = vmul.f32 %v1403, %v2437
        %v2454 = vmul.f32 %v2418, %v1340
        %v2455 = vmul.f32 %v2419, %v1341
        %v2456 = vmul.f32 %v2420, %v1342
        %v2457 = vmul.f32 %v2421, %v1343
        %v2458 = vmul.f32 %v2422, %v1344
        %v2459 = vmul.f32 %v2423, %v1345
        %v2460 = vmul.f32 %v2424, %v1346
        %v2461 = vmul.f32 %v2425, %v1347
        %v2462 = vmul.f32 %v2426, %v1348
        %v2463 = vmul.f32 %v2427, %v1349
        %v2464 = vmul.f32 %v2428, %v1350
        %v2465 = vmul.f32 %v2429, %v1351
        %v2466 = vmul.f32 %v2430, %v1352
        %v2467 = vmul.f32 %v2431, %v1353
        %v2468 = vmul.f32 %v2432, %v1354
        %v2469 = vmul.f32 %v2433, %v1355
        %v2470 = vmul.f32 %v2438, %v1456
        %v2471 = vmul.f32 %v2439, %v1457
        %v2472 = vmul.f32 %v2440, %v1458
        %v2473 = vmul.f32 %v2441, %v1459
        %v2474 = vmul.f32 %v2442, %v1460
        %v2475 = vmul.f32 %v2443, %v1461
        %v2476 = vmul.f32 %v2444, %v1462
        %v2477 = vmul.f32 %v2445, %v1463
        %v2478 = vmul.f32 %v2446, %v1464
        %v2479 = vmul.f32 %v2447, %v1465
        %v2480 = vmul.f32 %v2448, %v1466
        %v2481 = vmul.f32 %v2449, %v1467
        %v2482 = vmul.f32 %v2450, %v1468
        %v2483 = vmul.f32 %v2451, %v1469
        %v2484 = vmul.f32 %v2452, %v1470
        %v2485 = vmul.f32 %v2453, %v1471
        %v2486 = vadd.f32 %v2454, %v2470
        %v2487 = vadd.f32 %v2455, %v2471
        %v2488 = vadd.f32 %v2456, %v2472
        %v2489 = vadd.f32 %v2457, %v2473
        %v2490 = vadd.f32 %v2458, %v2474
        %v2491 = vadd.f32 %v2459, %v2475
        %v2492 = vadd.f32 %v2460, %v2476
        %v2493 = vadd.f32 %v2461, %v2477
        %v2494 = vadd.f32 %v2462, %v2478
        %v2495 = vadd.f32 %v2463, %v2479
        %v2496 = vadd.f32 %v2464, %v2480
        %v2497 = vadd.f32 %v2465, %v2481
        %v2498 = vadd.f32 %v2466, %v2482
        %v2499 = vadd.f32 %v2467, %v2483
        %v2500 = vadd.f32 %v2468, %v2484
        %v2501 = vadd.f32 %v2469, %v2485
        %v2502 = vmul.f32 %v1356, %v2437
        %v2503 = vmul.f32 %v1357, %v2437
        %v2504 = vmul.f32 %v1358, %v2437
        %v2505 = vmul.f32 %v1359, %v2437
        %v2506 = vmul.f32 %v1360, %v2437
        %v2507 = vmul.f32 %v1361, %v2437
        %v2508 = vmul.f32 %v1362, %v2437
        %v2509 = vmul.f32 %v1363, %v2437
        %v2510 = vmul.f32 %v1364, %v2437
        %v2511 = vmul.f32 %v1365, %v2437
        %v2512 = vmul.f32 %v1366, %v2437
        %v2513 = vmul.f32 %v1367, %v2437
        %v2514 = vmul.f32 %v1368, %v2437
        %v2515 = vmul.f32 %v1369, %v2437
        %v2516 = vmul.f32 %v1370, %v2437
        %v2517 = vmul.f32 %v1371, %v2437
        %v2518 = vlaneseq
        %v2519 = vshrl.u32 %v2518, 7
        %v2520 = vsub.s32 4, %v2519
        %v2521 = vrot.slane %v2413, %v2520
        %v2522 = vmul.f32 %v1504, %v2521
        %v2523 = vmul.f32 %v1505, %v2521
        %v2524 = vmul.f32 %v1506, %v2521
        %v2525 = vmul.f32 %v1507, %v2521
        %v2526 = vmul.f32 %v1508, %v2521
        %v2527 = vmul.f32 %v1509, %v2521
        %v2528 = vmul.f32 %v1510, %v2521
        %v2529 = vmul.f32 %v1511, %v2521
        %v2530 = vmul.f32 %v1512, %v2521
        %v2531 = vmul.f32 %v1513, %v2521
        %v2532 = vmul.f32 %v1514, %v2521
        %v2533 = vmul.f32 %v1515, %v2521
        %v2534 = vmul.f32 %v1516, %v2521
        %v2535 = vmul.f32 %v1517, %v2521
        %v2536 = vmul.f32 %v1518, %v2521
        %v2537 = vmul.f32 %v1519, %v2521
        %v2538 = vmul.f32 %v2502, %v1456
        %v2539 = vmul.f32 %v2503, %v1457
        %v2540 = vmul.f32 %v2504, %v1458
        %v2541 = vmul.f32 %v2505, %v1459
        %v2542 = vmul.f32 %v2506, %v1460
        %v2543 = vmul.f32 %v2507, %v1461
        %v2544 = vmul.f32 %v2508, %v1462
        %v2545 = vmul.f32 %v2509, %v1463
        %v2546 = vmul.f32 %v2510, %v1464
        %v2547 = vmul.f32 %v2511, %v1465
        %v2548 = vmul.f32 %v2512, %v1466
        %v2549 = vmul.f32 %v2513, %v1467
        %v2550 = vmul.f32 %v2514, %v1468
        %v2551 = vmul.f32 %v2515, %v1469
        %v2552 = vmul.f32 %v2516, %v1470
        %v2553 = vmul.f32 %v2517, %v1471
        %v2554 = vmul.f32 %v2522, %v1572
        %v2555 = vmul.f32 %v2523, %v1573
        %v2556 = vmul.f32 %v2524, %v1574
        %v2557 = vmul.f32 %v2525, %v1575
        %v2558 = vmul.f32 %v2526, %v1576
        %v2559 = vmul.f32 %v2527, %v1577
        %v2560 = vmul.f32 %v2528, %v1578
        %v2561 = vmul.f32 %v2529, %v1579
        %v2562 = vmul.f32 %v2530, %v1580
        %v2563 = vmul.f32 %v2531, %v1581
        %v2564 = vmul.f32 %v2532, %v1582
        %v2565 = vmul.f32 %v2533, %v1583
        %v2566 = vmul.f32 %v2534, %v1584
        %v2567 = vmul.f32 %v2535, %v1585
        %v2568 = vmul.f32 %v2536, %v1586
        %v2569 = vmul.f32 %v2537, %v1587
        %v2570 = vadd.f32 %v2538, %v2554
        %v2571 = vadd.f32 %v2539, %v2555
        %v2572 = vadd.f32 %v2540, %v2556
        %v2573 = vadd.f32 %v2541, %v2557
        %v2574 = vadd.f32 %v2542, %v2558
        %v2575 = vadd.f32 %v2543, %v2559
        %v2576 = vadd.f32 %v2544, %v2560
        %v2577 = vadd.f32 %v2545, %v2561
        %v2578 = vadd.f32 %v2546, %v2562
        %v2579 = vadd.f32 %v2547, %v2563
        %v2580 = vadd.f32 %v2548, %v2564
        %v2581 = vadd.f32 %v2549, %v2565
        %v2582 = vadd.f32 %v2550, %v2566
        %v2583 = vadd.f32 %v2551, %v2567
        %v2584 = vadd.f32 %v2552, %v2568
        %v2585 = vadd.f32 %v2553, %v2569
        %v2586 = vmul.f32 %v1472, %v2521
        %v2587 = vmul.f32 %v1473, %v2521
        %v2588 = vmul.f32 %v1474, %v2521
        %v2589 = vmul.f32 %v1475, %v2521
        %v2590 = vmul.f32 %v1476, %v2521
        %v2591 = vmul.f32 %v1477, %v2521
        %v2592 = vmul.f32 %v1478, %v2521
        %v2593 = vmul.f32 %v1479, %v2521
        %v2594 = vmul.f32 %v1480, %v2521
        %v2595 = vmul.f32 %v1481, %v2521
        %v2596 = vmul.f32 %v1482, %v2521
        %v2597 = vmul.f32 %v1483, %v2521
        %v2598 = vmul.f32 %v1484, %v2521
        %v2599 = vmul.f32 %v1485, %v2521
        %v2600 = vmul.f32 %v1486, %v2521
        %v2601 = vmul.f32 %v1487, %v2521
        %v2602 = vlaneseq
        %v2603 = vshrl.u32 %v2602, 7
        %v2604 = vsub.s32 5, %v2603
        %v2605 = vrot.slane %v2413, %v2604
        %v2606 = vmul.f32 %v1620, %v2605
        %v2607 = vmul.f32 %v1621, %v2605
        %v2608 = vmul.f32 %v1622, %v2605
        %v2609 = vmul.f32 %v1623, %v2605
        %v2610 = vmul.f32 %v1624, %v2605
        %v2611 = vmul.f32 %v1625, %v2605
        %v2612 = vmul.f32 %v1626, %v2605
        %v2613 = vmul.f32 %v1627, %v2605
        %v2614 = vmul.f32 %v1628, %v2605
        %v2615 = vmul.f32 %v1629, %v2605
        %v2616 = vmul.f32 %v1630, %v2605
        %v2617 = vmul.f32 %v1631, %v2605
        %v2618 = vmul.f32 %v1632, %v2605
        %v2619 = vmul.f32 %v1633, %v2605
        %v2620 = vmul.f32 %v1634, %v2605
        %v2621 = vmul.f32 %v1635, %v2605
        %v2622 = vmul.f32 %v2586, %v1572
        %v2623 = vmul.f32 %v2587, %v1573
        %v2624 = vmul.f32 %v2588, %v1574
        %v2625 = vmul.f32 %v2589, %v1575
        %v2626 = vmul.f32 %v2590, %v1576
        %v2627 = vmul.f32 %v2591, %v1577
        %v2628 = vmul.f32 %v2592, %v1578
        %v2629 = vmul.f32 %v2593, %v1579
        %v2630 = vmul.f32 %v2594, %v1580
        %v2631 = vmul.f32 %v2595, %v1581
        %v2632 = vmul.f32 %v2596, %v1582
        %v2633 = vmul.f32 %v2597, %v1583
        %v2634 = vmul.f32 %v2598, %v1584
        %v2635 = vmul.f32 %v2599, %v1585
        %v2636 = vmul.f32 %v2600, %v1586
        %v2637 = vmul.f32 %v2601, %v1587
        %v2638 = vmul.f32 %v2606, %v1688
        %v2639 = vmul.f32 %v2607, %v1689
        %v2640 = vmul.f32 %v2608, %v1690
        %v2641 = vmul.f32 %v2609, %v1691
        %v2642 = vmul.f32 %v2610, %v1692
        %v2643 = vmul.f32 %v2611, %v1693
        %v2644 = vmul.f32 %v2612, %v1694
        %v2645 = vmul.f32 %v2613, %v1695
        %v2646 = vmul.f32 %v2614, %v1696
        %v2647 = vmul.f32 %v2615, %v1697
        %v2648 = vmul.f32 %v2616, %v1698
        %v2649 = vmul.f32 %v2617, %v1699
        %v2650 = vmul.f32 %v2618, %v1700
        %v2651 = vmul.f32 %v2619, %v1701
        %v2652 = vmul.f32 %v2620, %v1702
        %v2653 = vmul.f32 %v2621, %v1703
        %v2654 = vadd.f32 %v2622, %v2638
        %v2655 = vadd.f32 %v2623, %v2639
        %v2656 = vadd.f32 %v2624, %v2640
        %v2657 = vadd.f32 %v2625, %v2641
        %v2658 = vadd.f32 %v2626, %v2642
        %v2659 = vadd.f32 %v2627, %v2643
        %v2660 = vadd.f32 %v2628, %v2644
        %v2661 = vadd.f32 %v2629, %v2645
        %v2662 = vadd.f32 %v2630, %v2646
        %v2663 = vadd.f32 %v2631, %v2647
        %v2664 = vadd.f32 %v2632, %v2648
        %v2665 = vadd.f32 %v2633, %v2649
        %v2666 = vadd.f32 %v2634, %v2650
        %v2667 = vadd.f32 %v2635, %v2651
        %v2668 = vadd.f32 %v2636, %v2652
        %v2669 = vadd.f32 %v2637, %v2653
        %v2670 = vmul.f32 %v1588, %v2605
        %v2671 = vmul.f32 %v1589, %v2605
        %v2672 = vmul.f32 %v1590, %v2605
        %v2673 = vmul.f32 %v1591, %v2605
        %v2674 = vmul.f32 %v1592, %v2605
        %v2675 = vmul.f32 %v1593, %v2605
        %v2676 = vmul.f32 %v1594, %v2605
        %v2677 = vmul.f32 %v1595, %v2605
        %v2678 = vmul.f32 %v1596, %v2605
        %v2679 = vmul.f32 %v1597, %v2605
        %v2680 = vmul.f32 %v1598, %v2605
        %v2681 = vmul.f32 %v1599, %v2605
        %v2682 = vmul.f32 %v1600, %v2605
        %v2683 = vmul.f32 %v1601, %v2605
        %v2684 = vmul.f32 %v1602, %v2605
        %v2685 = vmul.f32 %v1603, %v2605
        %v2686 = vlaneseq
        %v2687 = vshrl.u32 %v2686, 7
        %v2688 = vsub.s32 6, %v2687
        %v2689 = vrot.slane %v2413, %v2688
        %v2690 = vmul.f32 %v1736, %v2689
        %v2691 = vmul.f32 %v1737, %v2689
        %v2692 = vmul.f32 %v1738, %v2689
        %v2693 = vmul.f32 %v1739, %v2689
        %v2694 = vmul.f32 %v1740, %v2689
        %v2695 = vmul.f32 %v1741, %v2689
        %v2696 = vmul.f32 %v1742, %v2689
        %v2697 = vmul.f32 %v1743, %v2689
        %v2698 = vmul.f32 %v1744, %v2689
        %v2699 = vmul.f32 %v1745, %v2689
        %v2700 = vmul.f32 %v1746, %v2689
        %v2701 = vmul.f32 %v1747, %v2689
        %v2702 = vmul.f32 %v1748, %v2689
        %v2703 = vmul.f32 %v1749, %v2689
        %v2704 = vmul.f32 %v1750, %v2689
        %v2705 = vmul.f32 %v1751, %v2689
        %v2706 = vmul.f32 %v2670, %v1688
        %v2707 = vmul.f32 %v2671, %v1689
        %v2708 = vmul.f32 %v2672, %v1690
        %v2709 = vmul.f32 %v2673, %v1691
        %v2710 = vmul.f32 %v2674, %v1692
        %v2711 = vmul.f32 %v2675, %v1693
        %v2712 = vmul.f32 %v2676, %v1694
        %v2713 = vmul.f32 %v2677, %v1695
        %v2714 = vmul.f32 %v2678, %v1696
        %v2715 = vmul.f32 %v2679, %v1697
        %v2716 = vmul.f32 %v2680, %v1698
        %v2717 = vmul.f32 %v2681, %v1699
        %v2718 = vmul.f32 %v2682, %v1700
        %v2719 = vmul.f32 %v2683, %v1701
        %v2720 = vmul.f32 %v2684, %v1702
        %v2721 = vmul.f32 %v2685, %v1703
        %v2722 = vmul.f32 %v2690, %v1804
        %v2723 = vmul.f32 %v2691, %v1805
        %v2724 = vmul.f32 %v2692, %v1806
        %v2725 = vmul.f32 %v2693, %v1807
        %v2726 = vmul.f32 %v2694, %v1808
        %v2727 = vmul.f32 %v2695, %v1809
        %v2728 = vmul.f32 %v2696, %v1810
        %v2729 = vmul.f32 %v2697, %v1811
        %v2730 = vmul.f32 %v2698, %v1812
        %v2731 = vmul.f32 %v2699, %v1813
        %v2732 = vmul.f32 %v2700, %v1814
        %v2733 = vmul.f32 %v2701, %v1815
        %v2734 = vmul.f32 %v2702, %v1816
        %v2735 = vmul.f32 %v2703, %v1817
        %v2736 = vmul.f32 %v2704, %v1818
        %v2737 = vmul.f32 %v2705, %v1819
        %v2738 = vadd.f32 %v2706, %v2722
        %v2739 = vadd.f32 %v2707, %v2723
        %v2740 = vadd.f32 %v2708, %v2724
        %v2741 = vadd.f32 %v2709, %v2725
        %v2742 = vadd.f32 %v2710, %v2726
        %v2743 = vadd.f32 %v2711, %v2727
        %v2744 = vadd.f32 %v2712, %v2728
        %v2745 = vadd.f32 %v2713, %v2729
        %v2746 = vadd.f32 %v2714, %v2730
        %v2747 = vadd.f32 %v2715, %v2731
        %v2748 = vadd.f32 %v2716, %v2732
        %v2749 = vadd.f32 %v2717, %v2733
        %v2750 = vadd.f32 %v2718, %v2734
        %v2751 = vadd.f32 %v2719, %v2735
        %v2752 = vadd.f32 %v2720, %v2736
        %v2753 = vadd.f32 %v2721, %v2737
        %v2754 = vmul.f32 %v1704, %v2689
        %v2755 = vmul.f32 %v1705, %v2689
        %v2756 = vmul.f32 %v1706, %v2689
        %v2757 = vmul.f32 %v1707, %v2689
        %v2758 = vmul.f32 %v1708, %v2689
        %v2759 = vmul.f32 %v1709, %v2689
        %v2760 = vmul.f32 %v1710, %v2689
        %v2761 = vmul.f32 %v1711, %v2689
        %v2762 = vmul.f32 %v1712, %v2689
        %v2763 = vmul.f32 %v1713, %v2689
        %v2764 = vmul.f32 %v1714, %v2689
        %v2765 = vmul.f32 %v1715, %v2689
        %v2766 = vmul.f32 %v1716, %v2689
        %v2767 = vmul.f32 %v1717, %v2689
        %v2768 = vmul.f32 %v1718, %v2689
        %v2769 = vmul.f32 %v1719, %v2689
        %v2770 = vlaneseq
        %v2771 = vshrl.u32 %v2770, 7
        %v2772 = vsub.s32 7, %v2771
        %v2773 = vrot.slane %v2413, %v2772
        %v2774 = vmul.f32 %v1852, %v2773
        %v2775 = vmul.f32 %v1853, %v2773
        %v2776 = vmul.f32 %v1854, %v2773
        %v2777 = vmul.f32 %v1855, %v2773
        %v2778 = vmul.f32 %v1856, %v2773
        %v2779 = vmul.f32 %v1857, %v2773
        %v2780 = vmul.f32 %v1858, %v2773
        %v2781 = vmul.f32 %v1859, %v2773
        %v2782 = vmul.f32 %v1860, %v2773
        %v2783 = vmul.f32 %v1861, %v2773
        %v2784 = vmul.f32 %v1862, %v2773
        %v2785 = vmul.f32 %v1863, %v2773
        %v2786 = vmul.f32 %v1864, %v2773
        %v2787 = vmul.f32 %v1865, %v2773
        %v2788 = vmul.f32 %v1866, %v2773
        %v2789 = vmul.f32 %v1867, %v2773
        %v2790 = vmul.f32 %v2754, %v1804
        %v2791 = vmul.f32 %v2755, %v1805
        %v2792 = vmul.f32 %v2756, %v1806
        %v2793 = vmul.f32 %v2757, %v1807
        %v2794 = vmul.f32 %v2758, %v1808
        %v2795 = vmul.f32 %v2759, %v1809
        %v2796 = vmul.f32 %v2760, %v1810
        %v2797 = vmul.f32 %v2761, %v1811
        %v2798 = vmul.f32 %v2762, %v1812
        %v2799 = vmul.f32 %v2763, %v1813
        %v2800 = vmul.f32 %v2764, %v1814
        %v2801 = vmul.f32 %v2765, %v1815
        %v2802 = vmul.f32 %v2766, %v1816
        %v2803 = vmul.f32 %v2767, %v1817
        %v2804 = vmul.f32 %v2768, %v1818
        %v2805 = vmul.f32 %v2769, %v1819
        %v2806 = vmul.f32 %v2774, %v1920
        %v2807 = vmul.f32 %v2775, %v1921
        %v2808 = vmul.f32 %v2776, %v1922
        %v2809 = vmul.f32 %v2777, %v1923
        %v2810 = vmul.f32 %v2778, %v1924
        %v2811 = vmul.f32 %v2779, %v1925
        %v2812 = vmul.f32 %v2780, %v1926
        %v2813 = vmul.f32 %v2781, %v1927
        %v2814 = vmul.f32 %v2782, %v1928
        %v2815 = vmul.f32 %v2783, %v1929
        %v2816 = vmul.f32 %v2784, %v1930
        %v2817 = vmul.f32 %v2785, %v1931
        %v2818 = vmul.f32 %v2786, %v1932
        %v2819 = vmul.f32 %v2787, %v1933
        %v2820 = vmul.f32 %v2788, %v1934
        %v2821 = vmul.f32 %v2789, %v1935
        %v2822 = vadd.f32 %v2790, %v2806
        %v2823 = vadd.f32 %v2791, %v2807
        %v2824 = vadd.f32 %v2792, %v2808
        %v2825 = vadd.f32 %v2793, %v2809
        %v2826 = vadd.f32 %v2794, %v2810
        %v2827 = vadd.f32 %v2795, %v2811
        %v2828 = vadd.f32 %v2796, %v2812
        %v2829 = vadd.f32 %v2797, %v2813
        %v2830 = vadd.f32 %v2798, %v2814
        %v2831 = vadd.f32 %v2799, %v2815
        %v2832 = vadd.f32 %v2800, %v2816
        %v2833 = vadd.f32 %v2801, %v2817
        %v2834 = vadd.f32 %v2802, %v2818
        %v2835 = vadd.f32 %v2803, %v2819
        %v2836 = vadd.f32 %v2804, %v2820
        %v2837 = vadd.f32 %v2805, %v2821
        %v2838 = vsub.f32 %v189, %v2409
        %v2839 = vrcp.pop %v2838
        %v2840 = vmul.f32 1.0, %v2839
        %v2841 = vmul.f32 %v1820, %v2773
        %v2842 = vmul.f32 %v1821, %v2773
        %v2843 = vmul.f32 %v1822, %v2773
        %v2844 = vmul.f32 %v1823, %v2773
        %v2845 = vmul.f32 %v1824, %v2773
        %v2846 = vmul.f32 %v1825, %v2773
        %v2847 = vmul.f32 %v1826, %v2773
        %v2848 = vmul.f32 %v1827, %v2773
        %v2849 = vmul.f32 %v1828, %v2773
        %v2850 = vmul.f32 %v1829, %v2773
        %v2851 = vmul.f32 %v1830, %v2773
        %v2852 = vmul.f32 %v1831, %v2773
        %v2853 = vmul.f32 %v1832, %v2773
        %v2854 = vmul.f32 %v1833, %v2773
        %v2855 = vmul.f32 %v1834, %v2773
        %v2856 = vmul.f32 %v1835, %v2773
        %v2857 = vlaneseq
        %v2858 = vshrl.u32 %v2857, 7
        %v2859 = vsub.s32 0, %v2858
        %v2860 = vrot.slane %v2840, %v2859
        %v2861 = vmul.f32 %v1971, %v2860
        %v2862 = vmul.f32 %v1972, %v2860
        %v2863 = vmul.f32 %v1973, %v2860
        %v2864 = vmul.f32 %v1974, %v2860
        %v2865 = vmul.f32 %v1975, %v2860
        %v2866 = vmul.f32 %v1976, %v2860
        %v2867 = vmul.f32 %v1977, %v2860
        %v2868 = vmul.f32 %v1978, %v2860
        %v2869 = vmul.f32 %v1979, %v2860
        %v2870 = vmul.f32 %v1980, %v2860
        %v2871 = vmul.f32 %v1981, %v2860
        %v2872 = vmul.f32 %v1982, %v2860
        %v2873 = vmul.f32 %v1983, %v2860
        %v2874 = vmul.f32 %v1984, %v2860
        %v2875 = vmul.f32 %v1985, %v2860
        %v2876 = vmul.f32 %v1986, %v2860
        %v2877 = vmul.f32 %v2841, %v1920
        %v2878 = vmul.f32 %v2842, %v1921
        %v2879 = vmul.f32 %v2843, %v1922
        %v2880 = vmul.f32 %v2844, %v1923
        %v2881 = vmul.f32 %v2845, %v1924
        %v2882 = vmul.f32 %v2846, %v1925
        %v2883 = vmul.f32 %v2847, %v1926
        %v2884 = vmul.f32 %v2848, %v1927
        %v2885 = vmul.f32 %v2849, %v1928
        %v2886 = vmul.f32 %v2850, %v1929
        %v2887 = vmul.f32 %v2851, %v1930
        %v2888 = vmul.f32 %v2852, %v1931
        %v2889 = vmul.f32 %v2853, %v1932
        %v2890 = vmul.f32 %v2854, %v1933
        %v2891 = vmul.f32 %v2855, %v1934
        %v2892 = vmul.f32 %v2856, %v1935
        %v2893 = vmul.f32 %v2861, %v2039
        %v2894 = vmul.f32 %v2862, %v2040
        %v2895 = vmul.f32 %v2863, %v2041
        %v2896 = vmul.f32 %v2864, %v2042
        %v2897 = vmul.f32 %v2865, %v2043
        %v2898 = vmul.f32 %v2866, %v2044
        %v2899 = vmul.f32 %v2867, %v2045
        %v2900 = vmul.f32 %v2868, %v2046
        %v2901 = vmul.f32 %v2869, %v2047
        %v2902 = vmul.f32 %v2870, %v2048
        %v2903 = vmul.f32 %v2871, %v2049
        %v2904 = vmul.f32 %v2872, %v2050
        %v2905 = vmul.f32 %v2873, %v2051
        %v2906 = vmul.f32 %v2874, %v2052
        %v2907 = vmul.f32 %v2875, %v2053
        %v2908 = vmul.f32 %v2876, %v2054
        %v2909 = vadd.f32 %v2877, %v2893
        %v2910 = vadd.f32 %v2878, %v2894
        %v2911 = vadd.f32 %v2879, %v2895
        %v2912 = vadd.f32 %v2880, %v2896
        %v2913 = vadd.f32 %v2881, %v2897
        %v2914 = vadd.f32 %v2882, %v2898
        %v2915 = vadd.f32 %v2883, %v2899
        %v2916 = vadd.f32 %v2884, %v2900
        %v2917 = vadd.f32 %v2885, %v2901
        %v2918 = vadd.f32 %v2886, %v2902
        %v2919 = vadd.f32 %v2887, %v2903
        %v2920 = vadd.f32 %v2888, %v2904
        %v2921 = vadd.f32 %v2889, %v2905
        %v2922 = vadd.f32 %v2890, %v2906
        %v2923 = vadd.f32 %v2891, %v2907
        %v2924 = vadd.f32 %v2892, %v2908
        %v2925 = vmul.f32 %v1939, %v2860
        %v2926 = vmul.f32 %v1940, %v2860
        %v2927 = vmul.f32 %v1941, %v2860
        %v2928 = vmul.f32 %v1942, %v2860
        %v2929 = vmul.f32 %v1943, %v2860
        %v2930 = vmul.f32 %v1944, %v2860
        %v2931 = vmul.f32 %v1945, %v2860
        %v2932 = vmul.f32 %v1946, %v2860
        %v2933 = vmul.f32 %v1947, %v2860
        %v2934 = vmul.f32 %v1948, %v2860
        %v2935 = vmul.f32 %v1949, %v2860
        %v2936 = vmul.f32 %v1950, %v2860
        %v2937 = vmul.f32 %v1951, %v2860
        %v2938 = vmul.f32 %v1952, %v2860
        %v2939 = vmul.f32 %v1953, %v2860
        %v2940 = vmul.f32 %v1954, %v2860
        %v2941 = vlaneseq
        %v2942 = vshrl.u32 %v2941, 7
        %v2943 = vsub.s32 1, %v2942
        %v2944 = vrot.slane %v2840, %v2943
        %v2945 = vmul.f32 %v2093, %v2944
        %v2946 = vmul.f32 %v2094, %v2944
        %v2947 = vmul.f32 %v2095, %v2944
        %v2948 = vmul.f32 %v2096, %v2944
        %v2949 = vmul.f32 %v2097, %v2944
        %v2950 = vmul.f32 %v2098, %v2944
        %v2951 = vmul.f32 %v2099, %v2944
        %v2952 = vmul.f32 %v2100, %v2944
        %v2953 = vmul.f32 %v2101, %v2944
        %v2954 = vmul.f32 %v2102, %v2944
        %v2955 = vmul.f32 %v2103, %v2944
        %v2956 = vmul.f32 %v2104, %v2944
        %v2957 = vmul.f32 %v2105, %v2944
        %v2958 = vmul.f32 %v2106, %v2944
        %v2959 = vmul.f32 %v2107, %v2944
        %v2960 = vmul.f32 %v2108, %v2944
        %v2961 = vmul.f32 %v2925, %v2039
        %v2962 = vmul.f32 %v2926, %v2040
        %v2963 = vmul.f32 %v2927, %v2041
        %v2964 = vmul.f32 %v2928, %v2042
        %v2965 = vmul.f32 %v2929, %v2043
        %v2966 = vmul.f32 %v2930, %v2044
        %v2967 = vmul.f32 %v2931, %v2045
        %v2968 = vmul.f32 %v2932, %v2046
        %v2969 = vmul.f32 %v2933, %v2047
        %v2970 = vmul.f32 %v2934, %v2048
        %v2971 = vmul.f32 %v2935, %v2049
        %v2972 = vmul.f32 %v2936, %v2050
        %v2973 = vmul.f32 %v2937, %v2051
        %v2974 = vmul.f32 %v2938, %v2052
        %v2975 = vmul.f32 %v2939, %v2053
        %v2976 = vmul.f32 %v2940, %v2054
        %v2977 = vmul.f32 %v2945, %v2161
        %v2978 = vmul.f32 %v2946, %v2162
        %v2979 = vmul.f32 %v2947, %v2163
        %v2980 = vmul.f32 %v2948, %v2164
        %v2981 = vmul.f32 %v2949, %v2165
        %v2982 = vmul.f32 %v2950, %v2166
        %v2983 = vmul.f32 %v2951, %v2167
        %v2984 = vmul.f32 %v2952, %v2168
        %v2985 = vmul.f32 %v2953, %v2169
        %v2986 = vmul.f32 %v2954, %v2170
        %v2987 = vmul.f32 %v2955, %v2171
        %v2988 = vmul.f32 %v2956, %v2172
        %v2989 = vmul.f32 %v2957, %v2173
        %v2990 = vmul.f32 %v2958, %v2174
        %v2991 = vmul.f32 %v2959, %v2175
        %v2992 = vmul.f32 %v2960, %v2176
        %v2993 = vadd.f32 %v2961, %v2977
        %v2994 = vadd.f32 %v2962, %v2978
        %v2995 = vadd.f32 %v2963, %v2979
        %v2996 = vadd.f32 %v2964, %v2980
        %v2997 = vadd.f32 %v2965, %v2981
        %v2998 = vadd.f32 %v2966, %v2982
        %v2999 = vadd.f32 %v2967, %v2983
        %v3000 = vadd.f32 %v2968, %v2984
        %v3001 = vadd.f32 %v2969, %v2985
        %v3002 = vadd.f32 %v2970, %v2986
        %v3003 = vadd.f32 %v2971, %v2987
        %v3004 = vadd.f32 %v2972, %v2988
        %v3005 = vadd.f32 %v2973, %v2989
        %v3006 = vadd.f32 %v2974, %v2990
        %v3007 = vadd.f32 %v2975, %v2991
        %v3008 = vadd.f32 %v2976, %v2992
        %v3009 = vrot.slane %v189, 6
        %v3011 = vsub.f32 %v189, %v3009
        %v3012 = vrcp.pop %v3011
        %v3013 = vmul.f32 1.0, %v3012
        %v3014 = vmul.f32 %v2061, %v2944
        %v3015 = vmul.f32 %v2062, %v2944
        %v3016 = vmul.f32 %v2063, %v2944
        %v3017 = vmul.f32 %v2064, %v2944
        %v3018 = vmul.f32 %v2065, %v2944
        %v3019 = vmul.f32 %v2066, %v2944
        %v3020 = vmul.f32 %v2067, %v2944
        %v3021 = vmul.f32 %v2068, %v2944
        %v3022 = vmul.f32 %v2069, %v2944
        %v3023 = vmul.f32 %v2070, %v2944
        %v3024 = vmul.f32 %v2071, %v2944
        %v3025 = vmul.f32 %v2072, %v2944
        %v3026 = vmul.f32 %v2073, %v2944
        %v3027 = vmul.f32 %v2074, %v2944
        %v3028 = vmul.f32 %v2075, %v2944
        %v3029 = vmul.f32 %v2076, %v2944
        %v3030 = vlaneseq
        %v3031 = vshrl.u32 %v3030, 7
        %v3032 = vsub.s32 2, %v3031
        %v3033 = vrot.slane %v3013, %v3032
        %v3034 = vmul.f32 %v2209, %v3033
        %v3035 = vmul.f32 %v2210, %v3033
        %v3036 = vmul.f32 %v2211, %v3033
        %v3037 = vmul.f32 %v2212, %v3033
        %v3038 = vmul.f32 %v2213, %v3033
        %v3039 = vmul.f32 %v2214, %v3033
        %v3040 = vmul.f32 %v2215, %v3033
        %v3041 = vmul.f32 %v2216, %v3033
        %v3042 = vmul.f32 %v2217, %v3033
        %v3043 = vmul.f32 %v2218, %v3033
        %v3044 = vmul.f32 %v2219, %v3033
        %v3045 = vmul.f32 %v2220, %v3033
        %v3046 = vmul.f32 %v2221, %v3033
        %v3047 = vmul.f32 %v2222, %v3033
        %v3048 = vmul.f32 %v2223, %v3033
        %v3049 = vmul.f32 %v2224, %v3033
        %v3050 = vmul.f32 %v3014, %v2161
        %v3051 = vmul.f32 %v3015, %v2162
        %v3052 = vmul.f32 %v3016, %v2163
        %v3053 = vmul.f32 %v3017, %v2164
        %v3054 = vmul.f32 %v3018, %v2165
        %v3055 = vmul.f32 %v3019, %v2166
        %v3056 = vmul.f32 %v3020, %v2167
        %v3057 = vmul.f32 %v3021, %v2168
        %v3058 = vmul.f32 %v3022, %v2169
        %v3059 = vmul.f32 %v3023, %v2170
        %v3060 = vmul.f32 %v3024, %v2171
        %v3061 = vmul.f32 %v3025, %v2172
        %v3062 = vmul.f32 %v3026, %v2173
        %v3063 = vmul.f32 %v3027, %v2174
        %v3064 = vmul.f32 %v3028, %v2175
        %v3065 = vmul.f32 %v3029, %v2176
        %v3066 = vmul.f32 %v3034, %v2277
        %v3067 = vmul.f32 %v3035, %v2278
        %v3068 = vmul.f32 %v3036, %v2279
        %v3069 = vmul.f32 %v3037, %v2280
        %v3070 = vmul.f32 %v3038, %v2281
        %v3071 = vmul.f32 %v3039, %v2282
        %v3072 = vmul.f32 %v3040, %v2283
        %v3073 = vmul.f32 %v3041, %v2284
        %v3074 = vmul.f32 %v3042, %v2285
        %v3075 = vmul.f32 %v3043, %v2286
        %v3076 = vmul.f32 %v3044, %v2287
        %v3077 = vmul.f32 %v3045, %v2288
        %v3078 = vmul.f32 %v3046, %v2289
        %v3079 = vmul.f32 %v3047, %v2290
        %v3080 = vmul.f32 %v3048, %v2291
        %v3081 = vmul.f32 %v3049, %v2292
        %v3082 = vadd.f32 %v3050, %v3066
        %v3083 = vadd.f32 %v3051, %v3067
        %v3084 = vadd.f32 %v3052, %v3068
        %v3085 = vadd.f32 %v3053, %v3069
        %v3086 = vadd.f32 %v3054, %v3070
        %v3087 = vadd.f32 %v3055, %v3071
        %v3088 = vadd.f32 %v3056, %v3072
        %v3089 = vadd.f32 %v3057, %v3073
        %v3090 = vadd.f32 %v3058, %v3074
        %v3091 = vadd.f32 %v3059, %v3075
        %v3092 = vadd.f32 %v3060, %v3076
        %v3093 = vadd.f32 %v3061, %v3077
        %v3094 = vadd.f32 %v3062, %v3078
        %v3095 = vadd.f32 %v3063, %v3079
        %v3096 = vadd.f32 %v3064, %v3080
        %v3097 = vadd.f32 %v3065, %v3081
        %v3098 = vmul.f32 %v2177, %v3033
        %v3099 = vmul.f32 %v2178, %v3033
        %v3100 = vmul.f32 %v2179, %v3033
        %v3101 = vmul.f32 %v2180, %v3033
        %v3102 = vmul.f32 %v2181, %v3033
        %v3103 = vmul.f32 %v2182, %v3033
        %v3104 = vmul.f32 %v2183, %v3033
        %v3105 = vmul.f32 %v2184, %v3033
        %v3106 = vmul.f32 %v2185, %v3033
        %v3107 = vmul.f32 %v2186, %v3033
        %v3108 = vmul.f32 %v2187, %v3033
        %v3109 = vmul.f32 %v2188, %v3033
        %v3110 = vmul.f32 %v2189, %v3033
        %v3111 = vmul.f32 %v2190, %v3033
        %v3112 = vmul.f32 %v2191, %v3033
        %v3113 = vmul.f32 %v2192, %v3033
        %v3114 = vlaneseq
        %v3115 = vshrl.u32 %v3114, 7
        %v3116 = vsub.s32 3, %v3115
        %v3117 = vrot.slane %v3013, %v3116
        %v3118 = vmul.f32 %v2325, %v3117
        %v3119 = vmul.f32 %v2326, %v3117
        %v3120 = vmul.f32 %v2327, %v3117
        %v3121 = vmul.f32 %v2328, %v3117
        %v3122 = vmul.f32 %v2329, %v3117
        %v3123 = vmul.f32 %v2330, %v3117
        %v3124 = vmul.f32 %v2331, %v3117
        %v3125 = vmul.f32 %v2332, %v3117
        %v3126 = vmul.f32 %v2333, %v3117
        %v3127 = vmul.f32 %v2334, %v3117
        %v3128 = vmul.f32 %v2335, %v3117
        %v3129 = vmul.f32 %v2336, %v3117
        %v3130 = vmul.f32 %v2337, %v3117
        %v3131 = vmul.f32 %v2338, %v3117
        %v3132 = vmul.f32 %v2339, %v3117
        %v3133 = vmul.f32 %v2340, %v3117
        %v3134 = vmul.f32 %v3098, %v2277
        %v3135 = vmul.f32 %v3099, %v2278
        %v3136 = vmul.f32 %v3100, %v2279
        %v3137 = vmul.f32 %v3101, %v2280
        %v3138 = vmul.f32 %v3102, %v2281
        %v3139 = vmul.f32 %v3103, %v2282
        %v3140 = vmul.f32 %v3104, %v2283
        %v3141 = vmul.f32 %v3105, %v2284
        %v3142 = vmul.f32 %v3106, %v2285
        %v3143 = vmul.f32 %v3107, %v2286
        %v3144 = vmul.f32 %v3108, %v2287
        %v3145 = vmul.f32 %v3109, %v2288
        %v3146 = vmul.f32 %v3110, %v2289
        %v3147 = vmul.f32 %v3111, %v2290
        %v3148 = vmul.f32 %v3112, %v2291
        %v3149 = vmul.f32 %v3113, %v2292
        %v3150 = vmul.f32 %v3118, %v2393
        %v3151 = vmul.f32 %v3119, %v2394
        %v3152 = vmul.f32 %v3120, %v2395
        %v3153 = vmul.f32 %v3121, %v2396
        %v3154 = vmul.f32 %v3122, %v2397
        %v3155 = vmul.f32 %v3123, %v2398
        %v3156 = vmul.f32 %v3124, %v2399
        %v3157 = vmul.f32 %v3125, %v2400
        %v3158 = vmul.f32 %v3126, %v2401
        %v3159 = vmul.f32 %v3127, %v2402
        %v3160 = vmul.f32 %v3128, %v2403
        %v3161 = vmul.f32 %v3129, %v2404
        %v3162 = vmul.f32 %v3130, %v2405
        %v3163 = vmul.f32 %v3131, %v2406
        %v3164 = vmul.f32 %v3132, %v2407
        %v3165 = vmul.f32 %v3133, %v2408
        %v3166 = vadd.f32 %v3134, %v3150
        %v3167 = vadd.f32 %v3135, %v3151
        %v3168 = vadd.f32 %v3136, %v3152
        %v3169 = vadd.f32 %v3137, %v3153
        %v3170 = vadd.f32 %v3138, %v3154
        %v3171 = vadd.f32 %v3139, %v3155
        %v3172 = vadd.f32 %v3140, %v3156
        %v3173 = vadd.f32 %v3141, %v3157
        %v3174 = vadd.f32 %v3142, %v3158
        %v3175 = vadd.f32 %v3143, %v3159
        %v3176 = vadd.f32 %v3144, %v3160
        %v3177 = vadd.f32 %v3145, %v3161
        %v3178 = vadd.f32 %v3146, %v3162
        %v3179 = vadd.f32 %v3147, %v3163
        %v3180 = vadd.f32 %v3148, %v3164
        %v3181 = vadd.f32 %v3149, %v3165
        %v3182 = vrot.slane %v188, 5
        %v3184 = vsub.f32 %v188, %v3182
        %v3185 = vrcp.pop %v3184
        %v3186 = vmul.f32 1.0, %v3185
        %v3187 = vlaneseq
        %v3188 = vshrl.u32 %v3187, 7
        %v3189 = vsub.s32 3, %v3188
        %v3190 = vrot.slane %v3186, %v3189
        %v3191 = vmul.f32 %v1236, %v3190
        %v3192 = vmul.f32 %v1237, %v3190
        %v3193 = vmul.f32 %v1238, %v3190
        %v3194 = vmul.f32 %v1239, %v3190
        %v3195 = vmul.f32 %v1240, %v3190
        %v3196 = vmul.f32 %v1241, %v3190
        %v3197 = vmul.f32 %v1242, %v3190
        %v3198 = vmul.f32 %v1243, %v3190
        %v3199 = vmul.f32 %v1244, %v3190
        %v3200 = vmul.f32 %v1245, %v3190
        %v3201 = vmul.f32 %v1246, %v3190
        %v3202 = vmul.f32 %v1247, %v3190
        %v3203 = vmul.f32 %v1248, %v3190
        %v3204 = vmul.f32 %v1249, %v3190
        %v3205 = vmul.f32 %v1250, %v3190
        %v3206 = vmul.f32 %v1251, %v3190
        %v3207 = vlaneseq
        %v3208 = vshrl.u32 %v3207, 7
        %v3209 = vsub.s32 4, %v3208
        %v3210 = vrot.slane %v3186, %v3209
        %v3211 = vmul.f32 %v1504, %v3210
        %v3212 = vmul.f32 %v1505, %v3210
        %v3213 = vmul.f32 %v1506, %v3210
        %v3214 = vmul.f32 %v1507, %v3210
        %v3215 = vmul.f32 %v1508, %v3210
        %v3216 = vmul.f32 %v1509, %v3210
        %v3217 = vmul.f32 %v1510, %v3210
        %v3218 = vmul.f32 %v1511, %v3210
        %v3219 = vmul.f32 %v1512, %v3210
        %v3220 = vmul.f32 %v1513, %v3210
        %v3221 = vmul.f32 %v1514, %v3210
        %v3222 = vmul.f32 %v1515, %v3210
        %v3223 = vmul.f32 %v1516, %v3210
        %v3224 = vmul.f32 %v1517, %v3210
        %v3225 = vmul.f32 %v1518, %v3210
        %v3226 = vmul.f32 %v1519, %v3210
        %v3227 = vmul.f32 %v3191, %v2486
        %v3228 = vmul.f32 %v3192, %v2487
        %v3229 = vmul.f32 %v3193, %v2488
        %v3230 = vmul.f32 %v3194, %v2489
        %v3231 = vmul.f32 %v3195, %v2490
        %v3232 = vmul.f32 %v3196, %v2491
        %v3233 = vmul.f32 %v3197, %v2492
        %v3234 = vmul.f32 %v3198, %v2493
        %v3235 = vmul.f32 %v3199, %v2494
        %v3236 = vmul.f32 %v3200, %v2495
        %v3237 = vmul.f32 %v3201, %v2496
        %v3238 = vmul.f32 %v3202, %v2497
        %v3239 = vmul.f32 %v3203, %v2498
        %v3240 = vmul.f32 %v3204, %v2499
        %v3241 = vmul.f32 %v3205, %v2500
        %v3242 = vmul.f32 %v3206, %v2501
        %v3243 = vmul.f32 %v3211, %v2570
        %v3244 = vmul.f32 %v3212, %v2571
        %v3245 = vmul.f32 %v3213, %v2572
        %v3246 = vmul.f32 %v3214, %v2573
        %v3247 = vmul.f32 %v3215, %v2574
        %v3248 = vmul.f32 %v3216, %v2575
        %v3249 = vmul.f32 %v3217, %v2576
        %v3250 = vmul.f32 %v3218, %v2577
        %v3251 = vmul.f32 %v3219, %v2578
        %v3252 = vmul.f32 %v3220, %v2579
        %v3253 = vmul.f32 %v3221, %v2580
        %v3254 = vmul.f32 %v3222, %v2581
        %v3255 = vmul.f32 %v3223, %v2582
        %v3256 = vmul.f32 %v3224, %v2583
        %v3257 = vmul.f32 %v3225, %v2584
        %v3258 = vmul.f32 %v3226, %v2585
        %v3259 = vadd.f32 %v3227, %v3243
        %v3260 = vadd.f32 %v3228, %v3244
        %v3261 = vadd.f32 %v3229, %v3245
        %v3262 = vadd.f32 %v3230, %v3246
        %v3263 = vadd.f32 %v3231, %v3247
        %v3264 = vadd.f32 %v3232, %v3248
        %v3265 = vadd.f32 %v3233, %v3249
        %v3266 = vadd.f32 %v3234, %v3250
        %v3267 = vadd.f32 %v3235, %v3251
        %v3268 = vadd.f32 %v3236, %v3252
        %v3269 = vadd.f32 %v3237, %v3253
        %v3270 = vadd.f32 %v3238, %v3254
        %v3271 = vadd.f32 %v3239, %v3255
        %v3272 = vadd.f32 %v3240, %v3256
        %v3273 = vadd.f32 %v3241, %v3257
        %v3274 = vadd.f32 %v3242, %v3258
        %v3275 = vmul.f32 %v1356, %v3210
        %v3276 = vmul.f32 %v1357, %v3210
        %v3277 = vmul.f32 %v1358, %v3210
        %v3278 = vmul.f32 %v1359, %v3210
        %v3279 = vmul.f32 %v1360, %v3210
        %v3280 = vmul.f32 %v1361, %v3210
        %v3281 = vmul.f32 %v1362, %v3210
        %v3282 = vmul.f32 %v1363, %v3210
        %v3283 = vmul.f32 %v1364, %v3210
        %v3284 = vmul.f32 %v1365, %v3210
        %v3285 = vmul.f32 %v1366, %v3210
        %v3286 = vmul.f32 %v1367, %v3210
        %v3287 = vmul.f32 %v1368, %v3210
        %v3288 = vmul.f32 %v1369, %v3210
        %v3289 = vmul.f32 %v1370, %v3210
        %v3290 = vmul.f32 %v1371, %v3210
        %v3291 = vlaneseq
        %v3292 = vshrl.u32 %v3291, 7
        %v3293 = vsub.s32 5, %v3292
        %v3294 = vrot.slane %v3186, %v3293
        %v3295 = vmul.f32 %v1620, %v3294
        %v3296 = vmul.f32 %v1621, %v3294
        %v3297 = vmul.f32 %v1622, %v3294
        %v3298 = vmul.f32 %v1623, %v3294
        %v3299 = vmul.f32 %v1624, %v3294
        %v3300 = vmul.f32 %v1625, %v3294
        %v3301 = vmul.f32 %v1626, %v3294
        %v3302 = vmul.f32 %v1627, %v3294
        %v3303 = vmul.f32 %v1628, %v3294
        %v3304 = vmul.f32 %v1629, %v3294
        %v3305 = vmul.f32 %v1630, %v3294
        %v3306 = vmul.f32 %v1631, %v3294
        %v3307 = vmul.f32 %v1632, %v3294
        %v3308 = vmul.f32 %v1633, %v3294
        %v3309 = vmul.f32 %v1634, %v3294
        %v3310 = vmul.f32 %v1635, %v3294
        %v3311 = vmul.f32 %v3275, %v2570
        %v3312 = vmul.f32 %v3276, %v2571
        %v3313 = vmul.f32 %v3277, %v2572
        %v3314 = vmul.f32 %v3278, %v2573
        %v3315 = vmul.f32 %v3279, %v2574
        %v3316 = vmul.f32 %v3280, %v2575
        %v3317 = vmul.f32 %v3281, %v2576
        %v3318 = vmul.f32 %v3282, %v2577
        %v3319 = vmul.f32 %v3283, %v2578
        %v3320 = vmul.f32 %v3284, %v2579
        %v3321 = vmul.f32 %v3285, %v2580
        %v3322 = vmul.f32 %v3286, %v2581
        %v3323 = vmul.f32 %v3287, %v2582
        %v3324 = vmul.f32 %v3288, %v2583
        %v3325 = vmul.f32 %v3289, %v2584
        %v3326 = vmul.f32 %v3290, %v2585
        %v3327 = vmul.f32 %v3295, %v2654
        %v3328 = vmul.f32 %v3296, %v2655
        %v3329 = vmul.f32 %v3297, %v2656
        %v3330 = vmul.f32 %v3298, %v2657
        %v3331 = vmul.f32 %v3299, %v2658
        %v3332 = vmul.f32 %v3300, %v2659
        %v3333 = vmul.f32 %v3301, %v2660
        %v3334 = vmul.f32 %v3302, %v2661
        %v3335 = vmul.f32 %v3303, %v2662
        %v3336 = vmul.f32 %v3304, %v2663
        %v3337 = vmul.f32 %v3305, %v2664
        %v3338 = vmul.f32 %v3306, %v2665
        %v3339 = vmul.f32 %v3307, %v2666
        %v3340 = vmul.f32 %v3308, %v2667
        %v3341 = vmul.f32 %v3309, %v2668
        %v3342 = vmul.f32 %v3310, %v2669
        %v3343 = vadd.f32 %v3311, %v3327
        %v3344 = vadd.f32 %v3312, %v3328
        %v3345 = vadd.f32 %v3313, %v3329
        %v3346 = vadd.f32 %v3314, %v3330
        %v3347 = vadd.f32 %v3315, %v3331
        %v3348 = vadd.f32 %v3316, %v3332
        %v3349 = vadd.f32 %v3317, %v3333
        %v3350 = vadd.f32 %v3318, %v3334
        %v3351 = vadd.f32 %v3319, %v3335
        %v3352 = vadd.f32 %v3320, %v3336
        %v3353 = vadd.f32 %v3321, %v3337
        %v3354 = vadd.f32 %v3322, %v3338
        %v3355 = vadd.f32 %v3323, %v3339
        %v3356 = vadd.f32 %v3324, %v3340
        %v3357 = vadd.f32 %v3325, %v3341
        %v3358 = vadd.f32 %v3326, %v3342
        %v3359 = vmul.f32 %v1472, %v3294
        %v3360 = vmul.f32 %v1473, %v3294
        %v3361 = vmul.f32 %v1474, %v3294
        %v3362 = vmul.f32 %v1475, %v3294
        %v3363 = vmul.f32 %v1476, %v3294
        %v3364 = vmul.f32 %v1477, %v3294
        %v3365 = vmul.f32 %v1478, %v3294
        %v3366 = vmul.f32 %v1479, %v3294
        %v3367 = vmul.f32 %v1480, %v3294
        %v3368 = vmul.f32 %v1481, %v3294
        %v3369 = vmul.f32 %v1482, %v3294
        %v3370 = vmul.f32 %v1483, %v3294
        %v3371 = vmul.f32 %v1484, %v3294
        %v3372 = vmul.f32 %v1485, %v3294
        %v3373 = vmul.f32 %v1486, %v3294
        %v3374 = vmul.f32 %v1487, %v3294
        %v3375 = vlaneseq
        %v3376 = vshrl.u32 %v3375, 7
        %v3377 = vsub.s32 6, %v3376
        %v3378 = vrot.slane %v3186, %v3377
        %v3379 = vmul.f32 %v1736, %v3378
        %v3380 = vmul.f32 %v1737, %v3378
        %v3381 = vmul.f32 %v1738, %v3378
        %v3382 = vmul.f32 %v1739, %v3378
        %v3383 = vmul.f32 %v1740, %v3378
        %v3384 = vmul.f32 %v1741, %v3378
        %v3385 = vmul.f32 %v1742, %v3378
        %v3386 = vmul.f32 %v1743, %v3378
        %v3387 = vmul.f32 %v1744, %v3378
        %v3388 = vmul.f32 %v1745, %v3378
        %v3389 = vmul.f32 %v1746, %v3378
        %v3390 = vmul.f32 %v1747, %v3378
        %v3391 = vmul.f32 %v1748, %v3378
        %v3392 = vmul.f32 %v1749, %v3378
        %v3393 = vmul.f32 %v1750, %v3378
        %v3394 = vmul.f32 %v1751, %v3378
        %v3395 = vmul.f32 %v3359, %v2654
        %v3396 = vmul.f32 %v3360, %v2655
        %v3397 = vmul.f32 %v3361, %v2656
        %v3398 = vmul.f32 %v3362, %v2657
        %v3399 = vmul.f32 %v3363, %v2658
        %v3400 = vmul.f32 %v3364, %v2659
        %v3401 = vmul.f32 %v3365, %v2660
        %v3402 = vmul.f32 %v3366, %v2661
        %v3403 = vmul.f32 %v3367, %v2662
        %v3404 = vmul.f32 %v3368, %v2663
        %v3405 = vmul.f32 %v3369, %v2664
        %v3406 = vmul.f32 %v3370, %v2665
        %v3407 = vmul.f32 %v3371, %v2666
        %v3408 = vmul.f32 %v3372, %v2667
        %v3409 = vmul.f32 %v3373, %v2668
        %v3410 = vmul.f32 %v3374, %v2669
        %v3411 = vmul.f32 %v3379, %v2738
        %v3412 = vmul.f32 %v3380, %v2739
        %v3413 = vmul.f32 %v3381, %v2740
        %v3414 = vmul.f32 %v3382, %v2741
        %v3415 = vmul.f32 %v3383, %v2742
        %v3416 = vmul.f32 %v3384, %v2743
        %v3417 = vmul.f32 %v3385, %v2744
        %v3418 = vmul.f32 %v3386, %v2745
        %v3419 = vmul.f32 %v3387, %v2746
        %v3420 = vmul.f32 %v3388, %v2747
        %v3421 = vmul.f32 %v3389, %v2748
        %v3422 = vmul.f32 %v3390, %v2749
        %v3423 = vmul.f32 %v3391, %v2750
        %v3424 = vmul.f32 %v3392, %v2751
        %v3425 = vmul.f32 %v3393, %v2752
        %v3426 = vmul.f32 %v3394, %v2753
        %v3427 = vadd.f32 %v3395, %v3411
        %v3428 = vadd.f32 %v3396, %v3412
        %v3429 = vadd.f32 %v3397, %v3413
        %v3430 = vadd.f32 %v3398, %v3414
        %v3431 = vadd.f32 %v3399, %v3415
        %v3432 = vadd.f32 %v3400, %v3416
        %v3433 = vadd.f32 %v3401, %v3417
        %v3434 = vadd.f32 %v3402, %v3418
        %v3435 = vadd.f32 %v3403, %v3419
        %v3436 = vadd.f32 %v3404, %v3420
        %v3437 = vadd.f32 %v3405, %v3421
        %v3438 = vadd.f32 %v3406, %v3422
        %v3439 = vadd.f32 %v3407, %v3423
        %v3440 = vadd.f32 %v3408, %v3424
        %v3441 = vadd.f32 %v3409, %v3425
        %v3442 = vadd.f32 %v3410, %v3426
        %v3443 = vmul.f32 %v1588, %v3378
        %v3444 = vmul.f32 %v1589, %v3378
        %v3445 = vmul.f32 %v1590, %v3378
        %v3446 = vmul.f32 %v1591, %v3378
        %v3447 = vmul.f32 %v1592, %v3378
        %v3448 = vmul.f32 %v1593, %v3378
        %v3449 = vmul.f32 %v1594, %v3378
        %v3450 = vmul.f32 %v1595, %v3378
        %v3451 = vmul.f32 %v1596, %v3378
        %v3452 = vmul.f32 %v1597, %v3378
        %v3453 = vmul.f32 %v1598, %v3378
        %v3454 = vmul.f32 %v1599, %v3378
        %v3455 = vmul.f32 %v1600, %v3378
        %v3456 = vmul.f32 %v1601, %v3378
        %v3457 = vmul.f32 %v1602, %v3378
        %v3458 = vmul.f32 %v1603, %v3378
        %v3459 = vlaneseq
        %v3460 = vshrl.u32 %v3459, 7
        %v3461 = vsub.s32 7, %v3460
        %v3462 = vrot.slane %v3186, %v3461
        %v3463 = vmul.f32 %v1852, %v3462
        %v3464 = vmul.f32 %v1853, %v3462
        %v3465 = vmul.f32 %v1854, %v3462
        %v3466 = vmul.f32 %v1855, %v3462
        %v3467 = vmul.f32 %v1856, %v3462
        %v3468 = vmul.f32 %v1857, %v3462
        %v3469 = vmul.f32 %v1858, %v3462
        %v3470 = vmul.f32 %v1859, %v3462
        %v3471 = vmul.f32 %v1860, %v3462
        %v3472 = vmul.f32 %v1861, %v3462
        %v3473 = vmul.f32 %v1862, %v3462
        %v3474 = vmul.f32 %v1863, %v3462
        %v3475 = vmul.f32 %v1864, %v3462
        %v3476 = vmul.f32 %v1865, %v3462
        %v3477 = vmul.f32 %v1866, %v3462
        %v3478 = vmul.f32 %v1867, %v3462
        %v3479 = vmul.f32 %v3443, %v2738
        %v3480 = vmul.f32 %v3444, %v2739
        %v3481 = vmul.f32 %v3445, %v2740
        %v3482 = vmul.f32 %v3446, %v2741
        %v3483 = vmul.f32 %v3447, %v2742
        %v3484 = vmul.f32 %v3448, %v2743
        %v3485 = vmul.f32 %v3449, %v2744
        %v3486 = vmul.f32 %v3450, %v2745
        %v3487 = vmul.f32 %v3451, %v2746
        %v3488 = vmul.f32 %v3452, %v2747
        %v3489 = vmul.f32 %v3453, %v2748
        %v3490 = vmul.f32 %v3454, %v2749
        %v3491 = vmul.f32 %v3455, %v2750
        %v3492 = vmul.f32 %v3456, %v2751
        %v3493 = vmul.f32 %v3457, %v2752
        %v3494 = vmul.f32 %v3458, %v2753
        %v3495 = vmul.f32 %v3463, %v2822
        %v3496 = vmul.f32 %v3464, %v2823
        %v3497 = vmul.f32 %v3465, %v2824
        %v3498 = vmul.f32 %v3466, %v2825
        %v3499 = vmul.f32 %v3467, %v2826
        %v3500 = vmul.f32 %v3468, %v2827
        %v3501 = vmul.f32 %v3469, %v2828
        %v3502 = vmul.f32 %v3470, %v2829
        %v3503 = vmul.f32 %v3471, %v2830
        %v3504 = vmul.f32 %v3472, %v2831
        %v3505 = vmul.f32 %v3473, %v2832
        %v3506 = vmul.f32 %v3474, %v2833
        %v3507 = vmul.f32 %v3475, %v2834
        %v3508 = vmul.f32 %v3476, %v2835
        %v3509 = vmul.f32 %v3477, %v2836
        %v3510 = vmul.f32 %v3478, %v2837
        %v3511 = vadd.f32 %v3479, %v3495
        %v3512 = vadd.f32 %v3480, %v3496
        %v3513 = vadd.f32 %v3481, %v3497
        %v3514 = vadd.f32 %v3482, %v3498
        %v3515 = vadd.f32 %v3483, %v3499
        %v3516 = vadd.f32 %v3484, %v3500
        %v3517 = vadd.f32 %v3485, %v3501
        %v3518 = vadd.f32 %v3486, %v3502
        %v3519 = vadd.f32 %v3487, %v3503
        %v3520 = vadd.f32 %v3488, %v3504
        %v3521 = vadd.f32 %v3489, %v3505
        %v3522 = vadd.f32 %v3490, %v3506
        %v3523 = vadd.f32 %v3491, %v3507
        %v3524 = vadd.f32 %v3492, %v3508
        %v3525 = vadd.f32 %v3493, %v3509
        %v3526 = vadd.f32 %v3494, %v3510
        %v3527 = vsub.f32 %v189, %v3182
        %v3528 = vrcp.pop %v3527
        %v3529 = vmul.f32 1.0, %v3528
        %v3530 = vmul.f32 %v1704, %v3462
        %v3531 = vmul.f32 %v1705, %v3462
        %v3532 = vmul.f32 %v1706, %v3462
        %v3533 = vmul.f32 %v1707, %v3462
        %v3534 = vmul.f32 %v1708, %v3462
        %v3535 = vmul.f32 %v1709, %v3462
        %v3536 = vmul.f32 %v1710, %v3462
        %v3537 = vmul.f32 %v1711, %v3462
        %v3538 = vmul.f32 %v1712, %v3462
        %v3539 = vmul.f32 %v1713, %v3462
        %v3540 = vmul.f32 %v1714, %v3462
        %v3541 = vmul.f32 %v1715, %v3462
        %v3542 = vmul.f32 %v1716, %v3462
        %v3543 = vmul.f32 %v1717, %v3462
        %v3544 = vmul.f32 %v1718, %v3462
        %v3545 = vmul.f32 %v1719, %v3462
        %v3546 = vlaneseq
        %v3547 = vshrl.u32 %v3546, 7
        %v3548 = vsub.s32 0, %v3547
        %v3549 = vrot.slane %v3529, %v3548
        %v3550 = vmul.f32 %v1971, %v3549
        %v3551 = vmul.f32 %v1972, %v3549
        %v3552 = vmul.f32 %v1973, %v3549
        %v3553 = vmul.f32 %v1974, %v3549
        %v3554 = vmul.f32 %v1975, %v3549
        %v3555 = vmul.f32 %v1976, %v3549
        %v3556 = vmul.f32 %v1977, %v3549
        %v3557 = vmul.f32 %v1978, %v3549
        %v3558 = vmul.f32 %v1979, %v3549
        %v3559 = vmul.f32 %v1980, %v3549
        %v3560 = vmul.f32 %v1981, %v3549
        %v3561 = vmul.f32 %v1982, %v3549
        %v3562 = vmul.f32 %v1983, %v3549
        %v3563 = vmul.f32 %v1984, %v3549
        %v3564 = vmul.f32 %v1985, %v3549
        %v3565 = vmul.f32 %v1986, %v3549
        %v3566 = vmul.f32 %v3530, %v2822
        %v3567 = vmul.f32 %v3531, %v2823
        %v3568 = vmul.f32 %v3532, %v2824
        %v3569 = vmul.f32 %v3533, %v2825
        %v3570 = vmul.f32 %v3534, %v2826
        %v3571 = vmul.f32 %v3535, %v2827
        %v3572 = vmul.f32 %v3536, %v2828
        %v3573 = vmul.f32 %v3537, %v2829
        %v3574 = vmul.f32 %v3538, %v2830
        %v3575 = vmul.f32 %v3539, %v2831
        %v3576 = vmul.f32 %v3540, %v2832
        %v3577 = vmul.f32 %v3541, %v2833
        %v3578 = vmul.f32 %v3542, %v2834
        %v3579 = vmul.f32 %v3543, %v2835
        %v3580 = vmul.f32 %v3544, %v2836
        %v3581 = vmul.f32 %v3545, %v2837
        %v3582 = vmul.f32 %v3550, %v2909
        %v3583 = vmul.f32 %v3551, %v2910
        %v3584 = vmul.f32 %v3552, %v2911
        %v3585 = vmul.f32 %v3553, %v2912
        %v3586 = vmul.f32 %v3554, %v2913
        %v3587 = vmul.f32 %v3555, %v2914
        %v3588 = vmul.f32 %v3556, %v2915
        %v3589 = vmul.f32 %v3557, %v2916
        %v3590 = vmul.f32 %v3558, %v2917
        %v3591 = vmul.f32 %v3559, %v2918
        %v3592 = vmul.f32 %v3560, %v2919
        %v3593 = vmul.f32 %v3561, %v2920
        %v3594 = vmul.f32 %v3562, %v2921
        %v3595 = vmul.f32 %v3563, %v2922
        %v3596 = vmul.f32 %v3564, %v2923
        %v3597 = vmul.f32 %v3565, %v2924
        %v3598 = vadd.f32 %v3566, %v3582
        %v3599 = vadd.f32 %v3567, %v3583
        %v3600 = vadd.f32 %v3568, %v3584
        %v3601 = vadd.f32 %v3569, %v3585
        %v3602 = vadd.f32 %v3570, %v3586
        %v3603 = vadd.f32 %v3571, %v3587
        %v3604 = vadd.f32 %v3572, %v3588
        %v3605 = vadd.f32 %v3573, %v3589
        %v3606 = vadd.f32 %v3574, %v3590
        %v3607 = vadd.f32 %v3575, %v3591
        %v3608 = vadd.f32 %v3576, %v3592
        %v3609 = vadd.f32 %v3577, %v3593
        %v3610 = vadd.f32 %v3578, %v3594
        %v3611 = vadd.f32 %v3579, %v3595
        %v3612 = vadd.f32 %v3580, %v3596
        %v3613 = vadd.f32 %v3581, %v3597
        %v3614 = vmul.f32 %v1820, %v3549
        %v3615 = vmul.f32 %v1821, %v3549
        %v3616 = vmul.f32 %v1822, %v3549
        %v3617 = vmul.f32 %v1823, %v3549
        %v3618 = vmul.f32 %v1824, %v3549
        %v3619 = vmul.f32 %v1825, %v3549
        %v3620 = vmul.f32 %v1826, %v3549
        %v3621 = vmul.f32 %v1827, %v3549
        %v3622 = vmul.f32 %v1828, %v3549
        %v3623 = vmul.f32 %v1829, %v3549
        %v3624 = vmul.f32 %v1830, %v3549
        %v3625 = vmul.f32 %v1831, %v3549
        %v3626 = vmul.f32 %v1832, %v3549
        %v3627 = vmul.f32 %v1833, %v3549
        %v3628 = vmul.f32 %v1834, %v3549
        %v3629 = vmul.f32 %v1835, %v3549
        %v3630 = vlaneseq
        %v3631 = vshrl.u32 %v3630, 7
        %v3632 = vsub.s32 1, %v3631
        %v3633 = vrot.slane %v3529, %v3632
        %v3634 = vmul.f32 %v2093, %v3633
        %v3635 = vmul.f32 %v2094, %v3633
        %v3636 = vmul.f32 %v2095, %v3633
        %v3637 = vmul.f32 %v2096, %v3633
        %v3638 = vmul.f32 %v2097, %v3633
        %v3639 = vmul.f32 %v2098, %v3633
        %v3640 = vmul.f32 %v2099, %v3633
        %v3641 = vmul.f32 %v2100, %v3633
        %v3642 = vmul.f32 %v2101, %v3633
        %v3643 = vmul.f32 %v2102, %v3633
        %v3644 = vmul.f32 %v2103, %v3633
        %v3645 = vmul.f32 %v2104, %v3633
        %v3646 = vmul.f32 %v2105, %v3633
        %v3647 = vmul.f32 %v2106, %v3633
        %v3648 = vmul.f32 %v2107, %v3633
        %v3649 = vmul.f32 %v2108, %v3633
        %v3650 = vmul.f32 %v3614, %v2909
        %v3651 = vmul.f32 %v3615, %v2910
        %v3652 = vmul.f32 %v3616, %v2911
        %v3653 = vmul.f32 %v3617, %v2912
        %v3654 = vmul.f32 %v3618, %v2913
        %v3655 = vmul.f32 %v3619, %v2914
        %v3656 = vmul.f32 %v3620, %v2915
        %v3657 = vmul.f32 %v3621, %v2916
        %v3658 = vmul.f32 %v3622, %v2917
        %v3659 = vmul.f32 %v3623, %v2918
        %v3660 = vmul.f32 %v3624, %v2919
        %v3661 = vmul.f32 %v3625, %v2920
        %v3662 = vmul.f32 %v3626, %v2921
        %v3663 = vmul.f32 %v3627, %v2922
        %v3664 = vmul.f32 %v3628, %v2923
        %v3665 = vmul.f32 %v3629, %v2924
        %v3666 = vmul.f32 %v3634, %v2993
        %v3667 = vmul.f32 %v3635, %v2994
        %v3668 = vmul.f32 %v3636, %v2995
        %v3669 = vmul.f32 %v3637, %v2996
        %v3670 = vmul.f32 %v3638, %v2997
        %v3671 = vmul.f32 %v3639, %v2998
        %v3672 = vmul.f32 %v3640, %v2999
        %v3673 = vmul.f32 %v3641, %v3000
        %v3674 = vmul.f32 %v3642, %v3001
        %v3675 = vmul.f32 %v3643, %v3002
        %v3676 = vmul.f32 %v3644, %v3003
        %v3677 = vmul.f32 %v3645, %v3004
        %v3678 = vmul.f32 %v3646, %v3005
        %v3679 = vmul.f32 %v3647, %v3006
        %v3680 = vmul.f32 %v3648, %v3007
        %v3681 = vmul.f32 %v3649, %v3008
        %v3682 = vadd.f32 %v3650, %v3666
        %v3683 = vadd.f32 %v3651, %v3667
        %v3684 = vadd.f32 %v3652, %v3668
        %v3685 = vadd.f32 %v3653, %v3669
        %v3686 = vadd.f32 %v3654, %v3670
        %v3687 = vadd.f32 %v3655, %v3671
        %v3688 = vadd.f32 %v3656, %v3672
        %v3689 = vadd.f32 %v3657, %v3673
        %v3690 = vadd.f32 %v3658, %v3674
        %v3691 = vadd.f32 %v3659, %v3675
        %v3692 = vadd.f32 %v3660, %v3676
        %v3693 = vadd.f32 %v3661, %v3677
        %v3694 = vadd.f32 %v3662, %v3678
        %v3695 = vadd.f32 %v3663, %v3679
        %v3696 = vadd.f32 %v3664, %v3680
        %v3697 = vadd.f32 %v3665, %v3681
        %v3698 = vmul.f32 %v1939, %v3633
        %v3699 = vmul.f32 %v1940, %v3633
        %v3700 = vmul.f32 %v1941, %v3633
        %v3701 = vmul.f32 %v1942, %v3633
        %v3702 = vmul.f32 %v1943, %v3633
        %v3703 = vmul.f32 %v1944, %v3633
        %v3704 = vmul.f32 %v1945, %v3633
        %v3705 = vmul.f32 %v1946, %v3633
        %v3706 = vmul.f32 %v1947, %v3633
        %v3707 = vmul.f32 %v1948, %v3633
        %v3708 = vmul.f32 %v1949, %v3633
        %v3709 = vmul.f32 %v1950, %v3633
        %v3710 = vmul.f32 %v1951, %v3633
        %v3711 = vmul.f32 %v1952, %v3633
        %v3712 = vmul.f32 %v1953, %v3633
        %v3713 = vmul.f32 %v1954, %v3633
        %v3714 = vlaneseq
        %v3715 = vshrl.u32 %v3714, 7
        %v3716 = vsub.s32 2, %v3715
        %v3717 = vrot.slane %v3529, %v3716
        %v3718 = vmul.f32 %v2209, %v3717
        %v3719 = vmul.f32 %v2210, %v3717
        %v3720 = vmul.f32 %v2211, %v3717
        %v3721 = vmul.f32 %v2212, %v3717
        %v3722 = vmul.f32 %v2213, %v3717
        %v3723 = vmul.f32 %v2214, %v3717
        %v3724 = vmul.f32 %v2215, %v3717
        %v3725 = vmul.f32 %v2216, %v3717
        %v3726 = vmul.f32 %v2217, %v3717
        %v3727 = vmul.f32 %v2218, %v3717
        %v3728 = vmul.f32 %v2219, %v3717
        %v3729 = vmul.f32 %v2220, %v3717
        %v3730 = vmul.f32 %v2221, %v3717
        %v3731 = vmul.f32 %v2222, %v3717
        %v3732 = vmul.f32 %v2223, %v3717
        %v3733 = vmul.f32 %v2224, %v3717
        %v3734 = vmul.f32 %v3698, %v2993
        %v3735 = vmul.f32 %v3699, %v2994
        %v3736 = vmul.f32 %v3700, %v2995
        %v3737 = vmul.f32 %v3701, %v2996
        %v3738 = vmul.f32 %v3702, %v2997
        %v3739 = vmul.f32 %v3703, %v2998
        %v3740 = vmul.f32 %v3704, %v2999
        %v3741 = vmul.f32 %v3705, %v3000
        %v3742 = vmul.f32 %v3706, %v3001
        %v3743 = vmul.f32 %v3707, %v3002
        %v3744 = vmul.f32 %v3708, %v3003
        %v3745 = vmul.f32 %v3709, %v3004
        %v3746 = vmul.f32 %v3710, %v3005
        %v3747 = vmul.f32 %v3711, %v3006
        %v3748 = vmul.f32 %v3712, %v3007
        %v3749 = vmul.f32 %v3713, %v3008
        %v3750 = vmul.f32 %v3718, %v3082
        %v3751 = vmul.f32 %v3719, %v3083
        %v3752 = vmul.f32 %v3720, %v3084
        %v3753 = vmul.f32 %v3721, %v3085
        %v3754 = vmul.f32 %v3722, %v3086
        %v3755 = vmul.f32 %v3723, %v3087
        %v3756 = vmul.f32 %v3724, %v3088
        %v3757 = vmul.f32 %v3725, %v3089
        %v3758 = vmul.f32 %v3726, %v3090
        %v3759 = vmul.f32 %v3727, %v3091
        %v3760 = vmul.f32 %v3728, %v3092
        %v3761 = vmul.f32 %v3729, %v3093
        %v3762 = vmul.f32 %v3730, %v3094
        %v3763 = vmul.f32 %v3731, %v3095
        %v3764 = vmul.f32 %v3732, %v3096
        %v3765 = vmul.f32 %v3733, %v3097
        %v3766 = vadd.f32 %v3734, %v3750
        %v3767 = vadd.f32 %v3735, %v3751
        %v3768 = vadd.f32 %v3736, %v3752
        %v3769 = vadd.f32 %v3737, %v3753
        %v3770 = vadd.f32 %v3738, %v3754
        %v3771 = vadd.f32 %v3739, %v3755
        %v3772 = vadd.f32 %v3740, %v3756
        %v3773 = vadd.f32 %v3741, %v3757
        %v3774 = vadd.f32 %v3742, %v3758
        %v3775 = vadd.f32 %v3743, %v3759
        %v3776 = vadd.f32 %v3744, %v3760
        %v3777 = vadd.f32 %v3745, %v3761
        %v3778 = vadd.f32 %v3746, %v3762
        %v3779 = vadd.f32 %v3747, %v3763
        %v3780 = vadd.f32 %v3748, %v3764
        %v3781 = vadd.f32 %v3749, %v3765
        %v3782 = vrot.slane %v189, 5
        %v3784 = vsub.f32 %v189, %v3782
        %v3785 = vrcp.pop %v3784
        %v3786 = vmul.f32 1.0, %v3785
        %v3787 = vmul.f32 %v2061, %v3717
        %v3788 = vmul.f32 %v2062, %v3717
        %v3789 = vmul.f32 %v2063, %v3717
        %v3790 = vmul.f32 %v2064, %v3717
        %v3791 = vmul.f32 %v2065, %v3717
        %v3792 = vmul.f32 %v2066, %v3717
        %v3793 = vmul.f32 %v2067, %v3717
        %v3794 = vmul.f32 %v2068, %v3717
        %v3795 = vmul.f32 %v2069, %v3717
        %v3796 = vmul.f32 %v2070, %v3717
        %v3797 = vmul.f32 %v2071, %v3717
        %v3798 = vmul.f32 %v2072, %v3717
        %v3799 = vmul.f32 %v2073, %v3717
        %v3800 = vmul.f32 %v2074, %v3717
        %v3801 = vmul.f32 %v2075, %v3717
        %v3802 = vmul.f32 %v2076, %v3717
        %v3803 = vlaneseq
        %v3804 = vshrl.u32 %v3803, 7
        %v3805 = vsub.s32 3, %v3804
        %v3806 = vrot.slane %v3786, %v3805
        %v3807 = vmul.f32 %v2325, %v3806
        %v3808 = vmul.f32 %v2326, %v3806
        %v3809 = vmul.f32 %v2327, %v3806
        %v3810 = vmul.f32 %v2328, %v3806
        %v3811 = vmul.f32 %v2329, %v3806
        %v3812 = vmul.f32 %v2330, %v3806
        %v3813 = vmul.f32 %v2331, %v3806
        %v3814 = vmul.f32 %v2332, %v3806
        %v3815 = vmul.f32 %v2333, %v3806
        %v3816 = vmul.f32 %v2334, %v3806
        %v3817 = vmul.f32 %v2335, %v3806
        %v3818 = vmul.f32 %v2336, %v3806
        %v3819 = vmul.f32 %v2337, %v3806
        %v3820 = vmul.f32 %v2338, %v3806
        %v3821 = vmul.f32 %v2339, %v3806
        %v3822 = vmul.f32 %v2340, %v3806
        %v3823 = vmul.f32 %v3787, %v3082
        %v3824 = vmul.f32 %v3788, %v3083
        %v3825 = vmul.f32 %v3789, %v3084
        %v3826 = vmul.f32 %v3790, %v3085
        %v3827 = vmul.f32 %v3791, %v3086
        %v3828 = vmul.f32 %v3792, %v3087
        %v3829 = vmul.f32 %v3793, %v3088
        %v3830 = vmul.f32 %v3794, %v3089
        %v3831 = vmul.f32 %v3795, %v3090
        %v3832 = vmul.f32 %v3796, %v3091
        %v3833 = vmul.f32 %v3797, %v3092
        %v3834 = vmul.f32 %v3798, %v3093
        %v3835 = vmul.f32 %v3799, %v3094
        %v3836 = vmul.f32 %v3800, %v3095
        %v3837 = vmul.f32 %v3801, %v3096
        %v3838 = vmul.f32 %v3802, %v3097
        %v3839 = vmul.f32 %v3807, %v3166
        %v3840 = vmul.f32 %v3808, %v3167
        %v3841 = vmul.f32 %v3809, %v3168
        %v3842 = vmul.f32 %v3810, %v3169
        %v3843 = vmul.f32 %v3811, %v3170
        %v3844 = vmul.f32 %v3812, %v3171
        %v3845 = vmul.f32 %v3813, %v3172
        %v3846 = vmul.f32 %v3814, %v3173
        %v3847 = vmul.f32 %v3815, %v3174
        %v3848 = vmul.f32 %v3816, %v3175
        %v3849 = vmul.f32 %v3817, %v3176
        %v3850 = vmul.f32 %v3818, %v3177
        %v3851 = vmul.f32 %v3819, %v3178
        %v3852 = vmul.f32 %v3820, %v3179
        %v3853 = vmul.f32 %v3821, %v3180
        %v3854 = vmul.f32 %v3822, %v3181
        %v3855 = vadd.f32 %v3823, %v3839
        %v3856 = vadd.f32 %v3824, %v3840
        %v3857 = vadd.f32 %v3825, %v3841
        %v3858 = vadd.f32 %v3826, %v3842
        %v3859 = vadd.f32 %v3827, %v3843
        %v3860 = vadd.f32 %v3828, %v3844
        %v3861 = vadd.f32 %v3829, %v3845
        %v3862 = vadd.f32 %v3830, %v3846
        %v3863 = vadd.f32 %v3831, %v3847
        %v3864 = vadd.f32 %v3832, %v3848
        %v3865 = vadd.f32 %v3833, %v3849
        %v3866 = vadd.f32 %v3834, %v3850
        %v3867 = vadd.f32 %v3835, %v3851
        %v3868 = vadd.f32 %v3836, %v3852
        %v3869 = vadd.f32 %v3837, %v3853
        %v3870 = vadd.f32 %v3838, %v3854
        %3887 = vrot.lane.b32.xlu0 %v3259, 32
        %v3888 = vpop.permute.xlu0 %3887
        %3889 = vrot.lane.b32.xlu0 %v3260, 32
        %v3890 = vpop.permute.xlu0 %3889
        %3891 = vrot.lane.b32.xlu0 %v3261, 32
        %v3892 = vpop.permute.xlu0 %3891
        %3893 = vrot.lane.b32.xlu0 %v3262, 32
        %v3894 = vpop.permute.xlu0 %3893
        %3895 = vrot.lane.b32.xlu0 %v3263, 32
        %v3896 = vpop.permute.xlu0 %3895
        %3897 = vrot.lane.b32.xlu0 %v3264, 32
        %v3898 = vpop.permute.xlu0 %3897
        %3899 = vrot.lane.b32.xlu0 %v3265, 32
        %v3900 = vpop.permute.xlu0 %3899
        %3901 = vrot.lane.b32.xlu0 %v3266, 32
        %v3902 = vpop.permute.xlu0 %3901
        %3903 = vrot.lane.b32.xlu0 %v3267, 32
        %v3904 = vpop.permute.xlu0 %3903
        %3905 = vrot.lane.b32.xlu0 %v3268, 32
        %v3906 = vpop.permute.xlu0 %3905
        %3907 = vrot.lane.b32.xlu0 %v3269, 32
        %v3908 = vpop.permute.xlu0 %3907
        %3909 = vrot.lane.b32.xlu0 %v3270, 32
        %v3910 = vpop.permute.xlu0 %3909
        %3911 = vrot.lane.b32.xlu0 %v3271, 32
        %v3912 = vpop.permute.xlu0 %3911
        %3913 = vrot.lane.b32.xlu0 %v3272, 32
        %v3914 = vpop.permute.xlu0 %3913
        %3915 = vrot.lane.b32.xlu0 %v3273, 32
        %v3916 = vpop.permute.xlu0 %3915
        %3917 = vrot.lane.b32.xlu0 %v3274, 32
        %v3918 = vpop.permute.xlu0 %3917
        %3951 = vrot.lane.b32.xlu0 %v3343, 64
        %v3952 = vpop.permute.xlu0 %3951
        %3953 = vrot.lane.b32.xlu0 %v3344, 64
        %v3954 = vpop.permute.xlu0 %3953
        %3955 = vrot.lane.b32.xlu0 %v3345, 64
        %v3956 = vpop.permute.xlu0 %3955
        %3957 = vrot.lane.b32.xlu0 %v3346, 64
        %v3958 = vpop.permute.xlu0 %3957
        %3959 = vrot.lane.b32.xlu0 %v3347, 64
        %v3960 = vpop.permute.xlu0 %3959
        %3961 = vrot.lane.b32.xlu0 %v3348, 64
        %v3962 = vpop.permute.xlu0 %3961
        %3963 = vrot.lane.b32.xlu0 %v3349, 64
        %v3964 = vpop.permute.xlu0 %3963
        %3965 = vrot.lane.b32.xlu0 %v3350, 64
        %v3966 = vpop.permute.xlu0 %3965
        %3967 = vrot.lane.b32.xlu0 %v3351, 64
        %v3968 = vpop.permute.xlu0 %3967
        %3969 = vrot.lane.b32.xlu0 %v3352, 64
        %v3970 = vpop.permute.xlu0 %3969
        %3971 = vrot.lane.b32.xlu0 %v3353, 64
        %v3972 = vpop.permute.xlu0 %3971
        %3973 = vrot.lane.b32.xlu0 %v3354, 64
        %v3974 = vpop.permute.xlu0 %3973
        %3975 = vrot.lane.b32.xlu0 %v3355, 64
        %v3976 = vpop.permute.xlu0 %3975
        %3977 = vrot.lane.b32.xlu0 %v3356, 64
        %v3978 = vpop.permute.xlu0 %3977
        %3979 = vrot.lane.b32.xlu0 %v3357, 64
        %v3980 = vpop.permute.xlu0 %3979
        %3981 = vrot.lane.b32.xlu0 %v3358, 64
        %v3982 = vpop.permute.xlu0 %3981
        %4015 = vrot.lane.b32.xlu0 %v3427, 96
        %v4016 = vpop.permute.xlu0 %4015
        %4017 = vrot.lane.b32.xlu0 %v3428, 96
        %v4018 = vpop.permute.xlu0 %4017
        %4019 = vrot.lane.b32.xlu0 %v3429, 96
        %v4020 = vpop.permute.xlu0 %4019
        %4021 = vrot.lane.b32.xlu0 %v3430, 96
        %v4022 = vpop.permute.xlu0 %4021
        %4023 = vrot.lane.b32.xlu0 %v3431, 96
        %v4024 = vpop.permute.xlu0 %4023
        %4025 = vrot.lane.b32.xlu0 %v3432, 96
        %v4026 = vpop.permute.xlu0 %4025
        %4027 = vrot.lane.b32.xlu0 %v3433, 96
        %v4028 = vpop.permute.xlu0 %4027
        %4029 = vrot.lane.b32.xlu0 %v3434, 96
        %v4030 = vpop.permute.xlu0 %4029
        %4031 = vrot.lane.b32.xlu0 %v3435, 96
        %v4032 = vpop.permute.xlu0 %4031
        %4033 = vrot.lane.b32.xlu0 %v3436, 96
        %v4034 = vpop.permute.xlu0 %4033
        %4035 = vrot.lane.b32.xlu0 %v3437, 96
        %v4036 = vpop.permute.xlu0 %4035
        %4037 = vrot.lane.b32.xlu0 %v3438, 96
        %v4038 = vpop.permute.xlu0 %4037
        %4039 = vrot.lane.b32.xlu0 %v3439, 96
        %v4040 = vpop.permute.xlu0 %4039
        %4041 = vrot.lane.b32.xlu0 %v3440, 96
        %v4042 = vpop.permute.xlu0 %4041
        %4043 = vrot.lane.b32.xlu0 %v3441, 96
        %v4044 = vpop.permute.xlu0 %4043
        %4045 = vrot.lane.b32.xlu0 %v3442, 96
        %v4046 = vpop.permute.xlu0 %4045
        %4079 = vrot.lane.b32.xlu0 %v3598, 32
        %v4080 = vpop.permute.xlu0 %4079
        %4081 = vrot.lane.b32.xlu0 %v3599, 32
        %v4082 = vpop.permute.xlu0 %4081
        %4083 = vrot.lane.b32.xlu0 %v3600, 32
        %v4084 = vpop.permute.xlu0 %4083
        %4085 = vrot.lane.b32.xlu0 %v3601, 32
        %v4086 = vpop.permute.xlu0 %4085
        %4087 = vrot.lane.b32.xlu0 %v3602, 32
        %v4088 = vpop.permute.xlu0 %4087
        %4089 = vrot.lane.b32.xlu0 %v3603, 32
        %v4090 = vpop.permute.xlu0 %4089
        %4091 = vrot.lane.b32.xlu0 %v3604, 32
        %v4092 = vpop.permute.xlu0 %4091
        %4093 = vrot.lane.b32.xlu0 %v3605, 32
        %v4094 = vpop.permute.xlu0 %4093
        %4095 = vrot.lane.b32.xlu0 %v3606, 32
        %v4096 = vpop.permute.xlu0 %4095
        %4097 = vrot.lane.b32.xlu0 %v3607, 32
        %v4098 = vpop.permute.xlu0 %4097
        %4099 = vrot.lane.b32.xlu0 %v3608, 32
        %v4100 = vpop.permute.xlu0 %4099
        %4101 = vrot.lane.b32.xlu0 %v3609, 32
        %v4102 = vpop.permute.xlu0 %4101
        %4103 = vrot.lane.b32.xlu0 %v3610, 32
        %v4104 = vpop.permute.xlu0 %4103
        %4105 = vrot.lane.b32.xlu0 %v3611, 32
        %v4106 = vpop.permute.xlu0 %4105
        %4107 = vrot.lane.b32.xlu0 %v3612, 32
        %v4108 = vpop.permute.xlu0 %4107
        %4109 = vrot.lane.b32.xlu0 %v3613, 32
        %v4110 = vpop.permute.xlu0 %4109
        %4143 = vrot.lane.b32.xlu0 %v3682, 64
        %v4144 = vpop.permute.xlu0 %4143
        %4145 = vrot.lane.b32.xlu0 %v3683, 64
        %v4146 = vpop.permute.xlu0 %4145
        %4147 = vrot.lane.b32.xlu0 %v3684, 64
        %v4148 = vpop.permute.xlu0 %4147
        %4149 = vrot.lane.b32.xlu0 %v3685, 64
        %v4150 = vpop.permute.xlu0 %4149
        %4151 = vrot.lane.b32.xlu0 %v3686, 64
        %v4152 = vpop.permute.xlu0 %4151
        %4153 = vrot.lane.b32.xlu0 %v3687, 64
        %v4154 = vpop.permute.xlu0 %4153
        %4155 = vrot.lane.b32.xlu0 %v3688, 64
        %v4156 = vpop.permute.xlu0 %4155
        %4157 = vrot.lane.b32.xlu0 %v3689, 64
        %v4158 = vpop.permute.xlu0 %4157
        %4159 = vrot.lane.b32.xlu0 %v3690, 64
        %v4160 = vpop.permute.xlu0 %4159
        %4161 = vrot.lane.b32.xlu0 %v3691, 64
        %v4162 = vpop.permute.xlu0 %4161
        %4163 = vrot.lane.b32.xlu0 %v3692, 64
        %v4164 = vpop.permute.xlu0 %4163
        %4165 = vrot.lane.b32.xlu0 %v3693, 64
        %v4166 = vpop.permute.xlu0 %4165
        %4167 = vrot.lane.b32.xlu0 %v3694, 64
        %v4168 = vpop.permute.xlu0 %4167
        %4169 = vrot.lane.b32.xlu0 %v3695, 64
        %v4170 = vpop.permute.xlu0 %4169
        %4171 = vrot.lane.b32.xlu0 %v3696, 64
        %v4172 = vpop.permute.xlu0 %4171
        %4173 = vrot.lane.b32.xlu0 %v3697, 64
        %v4174 = vpop.permute.xlu0 %4173
        %4207 = vrot.lane.b32.xlu0 %v3766, 96
        %v4208 = vpop.permute.xlu0 %4207
        %4209 = vrot.lane.b32.xlu0 %v3767, 96
        %v4210 = vpop.permute.xlu0 %4209
        %4211 = vrot.lane.b32.xlu0 %v3768, 96
        %v4212 = vpop.permute.xlu0 %4211
        %4213 = vrot.lane.b32.xlu0 %v3769, 96
        %v4214 = vpop.permute.xlu0 %4213
        %4215 = vrot.lane.b32.xlu0 %v3770, 96
        %v4216 = vpop.permute.xlu0 %4215
        %4217 = vrot.lane.b32.xlu0 %v3771, 96
        %v4218 = vpop.permute.xlu0 %4217
        %4219 = vrot.lane.b32.xlu0 %v3772, 96
        %v4220 = vpop.permute.xlu0 %4219
        %4221 = vrot.lane.b32.xlu0 %v3773, 96
        %v4222 = vpop.permute.xlu0 %4221
        %4223 = vrot.lane.b32.xlu0 %v3774, 96
        %v4224 = vpop.permute.xlu0 %4223
        %4225 = vrot.lane.b32.xlu0 %v3775, 96
        %v4226 = vpop.permute.xlu0 %4225
        %4227 = vrot.lane.b32.xlu0 %v3776, 96
        %v4228 = vpop.permute.xlu0 %4227
        %4229 = vrot.lane.b32.xlu0 %v3777, 96
        %v4230 = vpop.permute.xlu0 %4229
        %4231 = vrot.lane.b32.xlu0 %v3778, 96
        %v4232 = vpop.permute.xlu0 %4231
        %4233 = vrot.lane.b32.xlu0 %v3779, 96
        %v4234 = vpop.permute.xlu0 %4233
        %4235 = vrot.lane.b32.xlu0 %v3780, 96
        %v4236 = vpop.permute.xlu0 %4235
        %4237 = vrot.lane.b32.xlu0 %v3781, 96
        %v4238 = vpop.permute.xlu0 %4237
        %vm4255 = vcmask 261120
        %v4256 = vsel %vm4255, %v286, %v3888
        %v4257 = vsel %vm4255, %v287, %v3890
        %v4258 = vsel %vm4255, %v288, %v3892
        %v4259 = vsel %vm4255, %v289, %v3894
        %v4260 = vsel %vm4255, %v290, %v3896
        %v4261 = vsel %vm4255, %v291, %v3898
        %v4262 = vsel %vm4255, %v292, %v3900
        %v4263 = vsel %vm4255, %v293, %v3902
        %v4264 = vsel %vm4255, %v294, %v3904
        %v4265 = vsel %vm4255, %v295, %v3906
        %v4266 = vsel %vm4255, %v296, %v3908
        %v4267 = vsel %vm4255, %v297, %v3910
        %v4268 = vsel %vm4255, %v298, %v3912
        %v4269 = vsel %vm4255, %v299, %v3914
        %v4270 = vsel %vm4255, %v300, %v3916
        %v4271 = vsel %vm4255, %v301, %v3918
        %vm4272 = vcmask 523264
        %v4273 = vsel %vm4272, %v4256, %v3952
        %v4274 = vsel %vm4272, %v4257, %v3954
        %v4275 = vsel %vm4272, %v4258, %v3956
        %v4276 = vsel %vm4272, %v4259, %v3958
        %v4277 = vsel %vm4272, %v4260, %v3960
        %v4278 = vsel %vm4272, %v4261, %v3962
        %v4279 = vsel %vm4272, %v4262, %v3964
        %v4280 = vsel %vm4272, %v4263, %v3966
        %v4281 = vsel %vm4272, %v4264, %v3968
        %v4282 = vsel %vm4272, %v4265, %v3970
        %v4283 = vsel %vm4272, %v4266, %v3972
        %v4284 = vsel %vm4272, %v4267, %v3974
        %v4285 = vsel %vm4272, %v4268, %v3976
        %v4286 = vsel %vm4272, %v4269, %v3978
        %v4287 = vsel %vm4272, %v4270, %v3980
        %v4288 = vsel %vm4272, %v4271, %v3982
        %vm4289 = vcmask 785408
        %v4290 = vsel %vm4289, %v4273, %v4016
        %v4291 = vsel %vm4289, %v4274, %v4018
        %v4292 = vsel %vm4289, %v4275, %v4020
        %v4293 = vsel %vm4289, %v4276, %v4022
        %v4294 = vsel %vm4289, %v4277, %v4024
        %v4295 = vsel %vm4289, %v4278, %v4026
        %v4296 = vsel %vm4289, %v4279, %v4028
        %v4297 = vsel %vm4289, %v4280, %v4030
        %v4298 = vsel %vm4289, %v4281, %v4032
        %v4299 = vsel %vm4289, %v4282, %v4034
        %v4300 = vsel %vm4289, %v4283, %v4036
        %v4301 = vsel %vm4289, %v4284, %v4038
        %v4302 = vsel %vm4289, %v4285, %v4040
        %v4303 = vsel %vm4289, %v4286, %v4042
        %v4304 = vsel %vm4289, %v4287, %v4044
        %v4305 = vsel %vm4289, %v4288, %v4046
        %v4306 = vsel %vm4255, %v3511, %v4080
        %v4307 = vsel %vm4255, %v3512, %v4082
        %v4308 = vsel %vm4255, %v3513, %v4084
        %v4309 = vsel %vm4255, %v3514, %v4086
        %v4310 = vsel %vm4255, %v3515, %v4088
        %v4311 = vsel %vm4255, %v3516, %v4090
        %v4312 = vsel %vm4255, %v3517, %v4092
        %v4313 = vsel %vm4255, %v3518, %v4094
        %v4314 = vsel %vm4255, %v3519, %v4096
        %v4315 = vsel %vm4255, %v3520, %v4098
        %v4316 = vsel %vm4255, %v3521, %v4100
        %v4317 = vsel %vm4255, %v3522, %v4102
        %v4318 = vsel %vm4255, %v3523, %v4104
        %v4319 = vsel %vm4255, %v3524, %v4106
        %v4320 = vsel %vm4255, %v3525, %v4108
        %v4321 = vsel %vm4255, %v3526, %v4110
        %v4322 = vsel %vm4272, %v4306, %v4144
        %v4323 = vsel %vm4272, %v4307, %v4146
        %v4324 = vsel %vm4272, %v4308, %v4148
        %v4325 = vsel %vm4272, %v4309, %v4150
        %v4326 = vsel %vm4272, %v4310, %v4152
        %v4327 = vsel %vm4272, %v4311, %v4154
        %v4328 = vsel %vm4272, %v4312, %v4156
        %v4329 = vsel %vm4272, %v4313, %v4158
        %v4330 = vsel %vm4272, %v4314, %v4160
        %v4331 = vsel %vm4272, %v4315, %v4162
        %v4332 = vsel %vm4272, %v4316, %v4164
        %v4333 = vsel %vm4272, %v4317, %v4166
        %v4334 = vsel %vm4272, %v4318, %v4168
        %v4335 = vsel %vm4272, %v4319, %v4170
        %v4336 = vsel %vm4272, %v4320, %v4172
        %v4337 = vsel %vm4272, %v4321, %v4174
        %v4338 = vsel %vm4289, %v4322, %v4208
        %v4339 = vsel %vm4289, %v4323, %v4210
        %v4340 = vsel %vm4289, %v4324, %v4212
        %v4341 = vsel %vm4289, %v4325, %v4214
        %v4342 = vsel %vm4289, %v4326, %v4216
        %v4343 = vsel %vm4289, %v4327, %v4218
        %v4344 = vsel %vm4289, %v4328, %v4220
        %v4345 = vsel %vm4289, %v4329, %v4222
        %v4346 = vsel %vm4289, %v4330, %v4224
        %v4347 = vsel %vm4289, %v4331, %v4226
        %v4348 = vsel %vm4289, %v4332, %v4228
        %v4349 = vsel %vm4289, %v4333, %v4230
        %v4350 = vsel %vm4289, %v4334, %v4232
        %v4351 = vsel %vm4289, %v4335, %v4234
        %v4352 = vsel %vm4289, %v4336, %v4236
        %v4353 = vsel %vm4289, %v4337, %v4238
        %v4354 = vld [vmem:[%s2] sm:$0xff]
        %v4355 = vld [vmem:[%s2 + $0x8] sm:$0xff]
        %v4356 = vld [vmem:[%s2 + $0x10] sm:$0xff]
        %v4357 = vld [vmem:[%s2 + $0x18] sm:$0xff]
        %v4358 = vld [vmem:[%s2 + $0x20] sm:$0xff]
        %v4359 = vld [vmem:[%s2 + $0x28] sm:$0xff]
        %v4360 = vld [vmem:[%s2 + $0x30] sm:$0xff]
        %v4361 = vld [vmem:[%s2 + $0x38] sm:$0xff]
        %v4362 = vld [vmem:[%s2 + $0x40] sm:$0xff]
        %v4363 = vld [vmem:[%s2 + $0x48] sm:$0xff]
        %v4364 = vld [vmem:[%s2 + $0x50] sm:$0xff]
        %v4365 = vld [vmem:[%s2 + $0x58] sm:$0xff]
        %v4366 = vld [vmem:[%s2 + $0x60] sm:$0xff]
        %v4367 = vld [vmem:[%s2 + $0x68] sm:$0xff]
        %v4368 = vld [vmem:[%s2 + $0x70] sm:$0xff]
        %v4369 = vld [vmem:[%s2 + $0x78] sm:$0xff]
        %v4370 = vld [vmem:[%s2 + $0x80] sm:$0xff]
        %v4371 = vld [vmem:[%s2 + $0x88] sm:$0xff]
        %v4372 = vld [vmem:[%s2 + $0x90] sm:$0xff]
        %v4373 = vld [vmem:[%s2 + $0x98] sm:$0xff]
        %v4374 = vld [vmem:[%s2 + $0xa0] sm:$0xff]
        %v4375 = vld [vmem:[%s2 + $0xa8] sm:$0xff]
        %v4376 = vld [vmem:[%s2 + $0xb0] sm:$0xff]
        %v4377 = vld [vmem:[%s2 + $0xb8] sm:$0xff]
        %v4378 = vld [vmem:[%s2 + $0xc0] sm:$0xff]
        %v4379 = vld [vmem:[%s2 + $0xc8] sm:$0xff]
        %v4380 = vld [vmem:[%s2 + $0xd0] sm:$0xff]
        %v4381 = vld [vmem:[%s2 + $0xd8] sm:$0xff]
        %v4382 = vld [vmem:[%s2 + $0xe0] sm:$0xff]
        %v4383 = vld [vmem:[%s2 + $0xe8] sm:$0xff]
        %v4384 = vld [vmem:[%s2 + $0xf0] sm:$0xff]
        %v4385 = vld [vmem:[%s2 + $0xf8] sm:$0xff]
        %v4386 = vld [vmem:[%s2 + $0x100] sm:$0xff]
        %v4387 = vld [vmem:[%s2 + $0x108] sm:$0xff]
        %v4388 = vld [vmem:[%s2 + $0x110] sm:$0xff]
        %v4389 = vld [vmem:[%s2 + $0x118] sm:$0xff]
        %v4391 = vsel %vm4255, %v3855, 0
        %v4394 = vsel %vm4255, %v3856, 0
        %v4397 = vsel %vm4255, %v3857, 0
        %v4400 = vsel %vm4255, %v3858, 0
        %v4403 = vsel %vm4255, %v3859, 0
        %v4406 = vsel %vm4255, %v3860, 0
        %v4409 = vsel %vm4255, %v3861, 0
        %v4412 = vsel %vm4255, %v3862, 0
        %v4415 = vsel %vm4255, %v3863, 0
        %v4418 = vsel %vm4255, %v3864, 0
        %v4421 = vsel %vm4255, %v3865, 0
        %v4424 = vsel %vm4255, %v3866, 0
        %v4427 = vsel %vm4255, %v3867, 0
        %v4430 = vsel %vm4255, %v3868, 0
        %v4433 = vsel %vm4255, %v3869, 0
        %v4436 = vsel %vm4255, %v3870, 0
        %4438 = vmatprep.subr.mxu0 0.0
        %4439 = vmatpush1.msra.mxu0 %v4369
        %4440 = vmatprep.subr.mxu0 0.0
        %4441 = vmatpush1.msra.mxu0 %v4368
        %4442 = vmatprep.subr.mxu0 0.0
        %4443 = vmatpush1.msra.mxu0 %v4367
        %4444 = vmatprep.subr.mxu0 0.0
        %4445 = vmatpush1.msra.mxu0 %v4366
        %4446 = vmatprep.subr.mxu0 0.0
        %4447 = vmatpush1.msra.mxu0 %v4365
        %4448 = vmatprep.subr.mxu0 0.0
        %4449 = vmatpush1.msra.mxu0 %v4364
        %4450 = vmatprep.subr.mxu0 0.0
        %4451 = vmatpush1.msra.mxu0 %v4363
        %4452 = vmatprep.subr.mxu0 0.0
        %4453 = vmatpush1.msra.mxu0 %v4362
        %4454 = vmatprep.subr.mxu0 0.0
        %4455 = vmatpush1.msra.mxu0 %v4361
        %4456 = vmatprep.subr.mxu0 0.0
        %4457 = vmatpush1.msra.mxu0 %v4360
        %4458 = vmatprep.subr.mxu0 0.0
        %4459 = vmatpush1.msra.mxu0 %v4359
        %4460 = vmatprep.subr.mxu0 0.0
        %4461 = vmatpush1.msra.mxu0 %v4358
        %4462 = vmatprep.subr.mxu0 0.0
        %4463 = vmatpush1.msra.mxu0 %v4357
        %4464 = vmatprep.subr.mxu0 0.0
        %4465 = vmatpush1.msra.mxu0 %v4356
        %4466 = vmatprep.subr.mxu0 0.0
        %4467 = vmatpush1.msra.mxu0 %v4355
        %4468 = vmatprep.subr.mxu0 0.0
        %4469 = vmatpush1.msra.mxu0 %v4354
        %4470 = vmatprep.subr.mxu0 0.0
        %4471 = vmatpush2.msra.mxu0 %v4385
        %4472 = vmatprep.subr.mxu0 0.0
        %4473 = vmatpush2.msra.mxu0 %v4384
        %4474 = vmatprep.subr.mxu0 0.0
        %4475 = vmatpush2.msra.mxu0 %v4383
        %4476 = vmatprep.subr.mxu0 0.0
        %4477 = vmatpush2.msra.mxu0 %v4382
        %4478 = vmatprep.subr.mxu0 0.0
        %4479 = vmatpush2.msra.mxu0 %v4381
        %4480 = vmatprep.subr.mxu0 0.0
        %4481 = vmatpush2.msra.mxu0 %v4380
        %4482 = vmatprep.subr.mxu0 0.0
        %4483 = vmatpush2.msra.mxu0 %v4379
        %4484 = vmatprep.subr.mxu0 0.0
        %4485 = vmatpush2.msra.mxu0 %v4378
        %4486 = vmatprep.subr.mxu0 0.0
        %4487 = vmatpush2.msra.mxu0 %v4377
        %4488 = vmatprep.subr.mxu0 0.0
        %4489 = vmatpush2.msra.mxu0 %v4376
        %4490 = vmatprep.subr.mxu0 0.0
        %4491 = vmatpush2.msra.mxu0 %v4375
        %4492 = vmatprep.subr.mxu0 0.0
        %4493 = vmatpush2.msra.mxu0 %v4374
        %4494 = vmatprep.subr.mxu0 0.0
        %4495 = vmatpush2.msra.mxu0 %v4373
        %4496 = vmatprep.subr.mxu0 0.0
        %4497 = vmatpush2.msra.mxu0 %v4372
        %4498 = vmatprep.subr.mxu0 0.0
        %4499 = vmatpush2.msra.mxu0 %v4371
        %4500 = vmatprep.subr.mxu0 0.0
        %4501 = vmatpush2.msra.mxu0 %v4370
        %4502 = vmatprep.mubr.f32.mxu0 %v4338
        %4503 = vmatmul.mubr.f32.gmra.mxu0 %v4290
        %v4504 = vpop.f32.mrf.mxu0
        %v4505 = vadd.f32 0.0, %v4504
        %v4506 = vpop.f32.mrf.mxu0
        %4507 = vmatprep.mubr.f32.mxu0 %v4339
        %4508 = vmatmul.mubr.f32.gmra.mxu0 %v4291
        %v4509 = vpop.f32.mrf.mxu0
        %v4510 = vadd.f32 0.0, %v4509
        %v4511 = vpop.f32.mrf.mxu0
        %4512 = vmatprep.mubr.f32.mxu0 %v4340
        %4513 = vmatmul.mubr.f32.gmra.mxu0 %v4292
        %v4514 = vpop.f32.mrf.mxu0
        %v4515 = vadd.f32 0.0, %v4514
        %v4516 = vpop.f32.mrf.mxu0
        %4517 = vmatprep.mubr.f32.mxu0 %v4341
        %4518 = vmatmul.mubr.f32.gmra.mxu0 %v4293
        %v4519 = vpop.f32.mrf.mxu0
        %v4520 = vadd.f32 0.0, %v4519
        %v4521 = vpop.f32.mrf.mxu0
        %4522 = vmatprep.mubr.f32.mxu0 %v4342
        %4523 = vmatmul.mubr.f32.gmra.mxu0 %v4294
        %v4524 = vpop.f32.mrf.mxu0
        %v4525 = vadd.f32 0.0, %v4524
        %v4526 = vpop.f32.mrf.mxu0
        %4527 = vmatprep.mubr.f32.mxu0 %v4343
        %4528 = vmatmul.mubr.f32.gmra.mxu0 %v4295
        %v4529 = vpop.f32.mrf.mxu0
        %v4530 = vadd.f32 0.0, %v4529
        %v4531 = vpop.f32.mrf.mxu0
        %4532 = vmatprep.mubr.f32.mxu0 %v4344
        %4533 = vmatmul.mubr.f32.gmra.mxu0 %v4296
        %v4534 = vpop.f32.mrf.mxu0
        %v4535 = vadd.f32 0.0, %v4534
        %v4536 = vpop.f32.mrf.mxu0
        %4537 = vmatprep.mubr.f32.mxu0 %v4345
        %4538 = vmatmul.mubr.f32.gmra.mxu0 %v4297
        %v4539 = vpop.f32.mrf.mxu0
        %v4540 = vadd.f32 0.0, %v4539
        %v4541 = vpop.f32.mrf.mxu0
        %4542 = vmatprep.mubr.f32.mxu0 %v4346
        %4543 = vmatmul.mubr.f32.gmra.mxu0 %v4298
        %v4544 = vpop.f32.mrf.mxu0
        %v4545 = vadd.f32 0.0, %v4544
        %v4546 = vpop.f32.mrf.mxu0
        %4547 = vmatprep.mubr.f32.mxu0 %v4347
        %4548 = vmatmul.mubr.f32.gmra.mxu0 %v4299
        %v4549 = vpop.f32.mrf.mxu0
        %v4550 = vadd.f32 0.0, %v4549
        %v4551 = vpop.f32.mrf.mxu0
        %4552 = vmatprep.mubr.f32.mxu0 %v4348
        %4553 = vmatmul.mubr.f32.gmra.mxu0 %v4300
        %v4554 = vpop.f32.mrf.mxu0
        %v4555 = vadd.f32 0.0, %v4554
        %v4556 = vpop.f32.mrf.mxu0
        %4557 = vmatprep.mubr.f32.mxu0 %v4349
        %4558 = vmatmul.mubr.f32.gmra.mxu0 %v4301
        %v4559 = vpop.f32.mrf.mxu0
        %v4560 = vadd.f32 0.0, %v4559
        %v4561 = vpop.f32.mrf.mxu0
        %4562 = vmatprep.mubr.f32.mxu0 %v4350
        %4563 = vmatmul.mubr.f32.gmra.mxu0 %v4302
        %v4564 = vpop.f32.mrf.mxu0
        %v4565 = vadd.f32 0.0, %v4564
        %v4566 = vpop.f32.mrf.mxu0
        %4567 = vmatprep.mubr.f32.mxu0 %v4351
        %4568 = vmatmul.mubr.f32.gmra.mxu0 %v4303
        %v4569 = vpop.f32.mrf.mxu0
        %v4570 = vadd.f32 0.0, %v4569
        %v4571 = vpop.f32.mrf.mxu0
        %4572 = vmatprep.mubr.f32.mxu0 %v4352
        %4573 = vmatmul.mubr.f32.gmra.mxu0 %v4304
        %v4574 = vpop.f32.mrf.mxu0
        %v4575 = vadd.f32 0.0, %v4574
        %v4576 = vpop.f32.mrf.mxu0
        %4577 = vmatprep.mubr.f32.mxu0 %v4353
        %4578 = vmatmul.mubr.f32.gmra.mxu0 %v4305
        %v4579 = vpop.f32.mrf.mxu0
        %v4580 = vadd.f32 0.0, %v4579
        %v4581 = vpop.f32.mrf.mxu0
        %4582 = vdwg.mxu0
        %4583 = vmatprep.subr.mxu0 0.0
        %4584 = vmatpush1.msra.mxu0 0.0
        %4585 = vmatprep.subr.mxu0 0.0
        %4586 = vmatpush1.msra.mxu0 0.0
        %4587 = vmatprep.subr.mxu0 0.0
        %4588 = vmatpush1.msra.mxu0 0.0
        %4589 = vmatprep.subr.mxu0 0.0
        %4590 = vmatpush1.msra.mxu0 0.0
        %4591 = vmatprep.subr.mxu0 0.0
        %4592 = vmatpush1.msra.mxu0 0.0
        %4593 = vmatprep.subr.mxu0 0.0
        %4594 = vmatpush1.msra.mxu0 0.0
        %4595 = vmatprep.subr.mxu0 0.0
        %4596 = vmatpush1.msra.mxu0 0.0
        %4597 = vmatprep.subr.mxu0 0.0
        %4598 = vmatpush1.msra.mxu0 0.0
        %4599 = vmatprep.subr.mxu0 0.0
        %4600 = vmatpush1.msra.mxu0 0.0
        %4601 = vmatprep.subr.mxu0 0.0
        %4602 = vmatpush1.msra.mxu0 0.0
        %4603 = vmatprep.subr.mxu0 0.0
        %4604 = vmatpush1.msra.mxu0 0.0
        %4605 = vmatprep.subr.mxu0 0.0
        %4606 = vmatpush1.msra.mxu0 0.0
        %4607 = vmatprep.subr.mxu0 0.0
        %4608 = vmatpush1.msra.mxu0 %v4389
        %4609 = vmatprep.subr.mxu0 0.0
        %4610 = vmatpush1.msra.mxu0 %v4388
        %4611 = vmatprep.subr.mxu0 0.0
        %4612 = vmatpush1.msra.mxu0 %v4387
        %4613 = vmatprep.subr.mxu0 0.0
        %4614 = vmatpush1.msra.mxu0 %v4386
        %4615 = vmatprep.subr.mxu0 0.0
        %4616 = vmatpush2.msra.mxu0 0.0
        %4617 = vmatprep.subr.mxu0 0.0
        %4618 = vmatpush2.msra.mxu0 0.0
        %4619 = vmatprep.subr.mxu0 0.0
        %4620 = vmatpush2.msra.mxu0 0.0
        %4621 = vmatprep.subr.mxu0 0.0
        %4622 = vmatpush2.msra.mxu0 0.0
        %4623 = vmatprep.subr.mxu0 0.0
        %4624 = vmatpush2.msra.mxu0 0.0
        %4625 = vmatprep.subr.mxu0 0.0
        %4626 = vmatpush2.msra.mxu0 0.0
        %4627 = vmatprep.subr.mxu0 0.0
        %4628 = vmatpush2.msra.mxu0 0.0
        %4629 = vmatprep.subr.mxu0 0.0
        %4630 = vmatpush2.msra.mxu0 0.0
        %4631 = vmatprep.subr.mxu0 0.0
        %4632 = vmatpush2.msra.mxu0 0.0
        %4633 = vmatprep.subr.mxu0 0.0
        %4634 = vmatpush2.msra.mxu0 0.0
        %4635 = vmatprep.subr.mxu0 0.0
        %4636 = vmatpush2.msra.mxu0 0.0
        %4637 = vmatprep.subr.mxu0 0.0
        %4638 = vmatpush2.msra.mxu0 0.0
        %4639 = vmatprep.subr.mxu0 0.0
        %4640 = vmatpush2.msra.mxu0 0.0
        %4641 = vmatprep.subr.mxu0 0.0
        %4642 = vmatpush2.msra.mxu0 0.0
        %4643 = vmatprep.subr.mxu0 0.0
        %4644 = vmatpush2.msra.mxu0 0.0
        %4645 = vmatprep.subr.mxu0 0.0
        %4646 = vmatpush2.msra.mxu0 0.0
        %4647 = vmatprep.mubr.f32.mxu0 0.0
        %4648 = vmatmul.mubr.f32.gmra.mxu0 %v4391
        %v4649 = vpop.f32.mrf.mxu0
        %v4650 = vadd.f32 %v4505, %v4649
        %v4651 = vpop.f32.mrf.mxu0
        %4652 = vmatprep.mubr.f32.mxu0 0.0
        %4653 = vmatmul.mubr.f32.gmra.mxu0 %v4394
        %v4654 = vpop.f32.mrf.mxu0
        %v4655 = vadd.f32 %v4510, %v4654
        %v4656 = vpop.f32.mrf.mxu0
        %4657 = vmatprep.mubr.f32.mxu0 0.0
        %4658 = vmatmul.mubr.f32.gmra.mxu0 %v4397
        %v4659 = vpop.f32.mrf.mxu0
        %v4660 = vadd.f32 %v4515, %v4659
        %v4661 = vpop.f32.mrf.mxu0
        %4662 = vmatprep.mubr.f32.mxu0 0.0
        %4663 = vmatmul.mubr.f32.gmra.mxu0 %v4400
        %v4664 = vpop.f32.mrf.mxu0
        %v4665 = vadd.f32 %v4520, %v4664
        %v4666 = vpop.f32.mrf.mxu0
        %4667 = vmatprep.mubr.f32.mxu0 0.0
        %4668 = vmatmul.mubr.f32.gmra.mxu0 %v4403
        %v4669 = vpop.f32.mrf.mxu0
        %v4670 = vadd.f32 %v4525, %v4669
        %v4671 = vpop.f32.mrf.mxu0
        %4672 = vmatprep.mubr.f32.mxu0 0.0
        %4673 = vmatmul.mubr.f32.gmra.mxu0 %v4406
        %v4674 = vpop.f32.mrf.mxu0
        %v4675 = vadd.f32 %v4530, %v4674
        %v4676 = vpop.f32.mrf.mxu0
        %4677 = vmatprep.mubr.f32.mxu0 0.0
        %4678 = vmatmul.mubr.f32.gmra.mxu0 %v4409
        %v4679 = vpop.f32.mrf.mxu0
        %v4680 = vadd.f32 %v4535, %v4679
        %v4681 = vpop.f32.mrf.mxu0
        %4682 = vmatprep.mubr.f32.mxu0 0.0
        %4683 = vmatmul.mubr.f32.gmra.mxu0 %v4412
        %v4684 = vpop.f32.mrf.mxu0
        %v4685 = vadd.f32 %v4540, %v4684
        %v4686 = vpop.f32.mrf.mxu0
        %4687 = vmatprep.mubr.f32.mxu0 0.0
        %4688 = vmatmul.mubr.f32.gmra.mxu0 %v4415
        %v4689 = vpop.f32.mrf.mxu0
        %v4690 = vadd.f32 %v4545, %v4689
        %v4691 = vpop.f32.mrf.mxu0
        %4692 = vmatprep.mubr.f32.mxu0 0.0
        %4693 = vmatmul.mubr.f32.gmra.mxu0 %v4418
        %v4694 = vpop.f32.mrf.mxu0
        %v4695 = vadd.f32 %v4550, %v4694
        %v4696 = vpop.f32.mrf.mxu0
        %4697 = vmatprep.mubr.f32.mxu0 0.0
        %4698 = vmatmul.mubr.f32.gmra.mxu0 %v4421
        %v4699 = vpop.f32.mrf.mxu0
        %v4700 = vadd.f32 %v4555, %v4699
        %v4701 = vpop.f32.mrf.mxu0
        %4702 = vmatprep.mubr.f32.mxu0 0.0
        %4703 = vmatmul.mubr.f32.gmra.mxu0 %v4424
        %v4704 = vpop.f32.mrf.mxu0
        %v4705 = vadd.f32 %v4560, %v4704
        %v4706 = vpop.f32.mrf.mxu0
        %4707 = vmatprep.mubr.f32.mxu0 0.0
        %4708 = vmatmul.mubr.f32.gmra.mxu0 %v4427
        %v4709 = vpop.f32.mrf.mxu0
        %v4710 = vadd.f32 %v4565, %v4709
        %v4711 = vpop.f32.mrf.mxu0
        %4712 = vmatprep.mubr.f32.mxu0 0.0
        %4713 = vmatmul.mubr.f32.gmra.mxu0 %v4430
        %v4714 = vpop.f32.mrf.mxu0
        %v4715 = vadd.f32 %v4570, %v4714
        %v4716 = vpop.f32.mrf.mxu0
        %4717 = vmatprep.mubr.f32.mxu0 0.0
        %4718 = vmatmul.mubr.f32.gmra.mxu0 %v4433
        %v4719 = vpop.f32.mrf.mxu0
        %v4720 = vadd.f32 %v4575, %v4719
        %v4721 = vpop.f32.mrf.mxu0
        %4722 = vmatprep.mubr.f32.mxu0 0.0
        %4723 = vmatmul.mubr.f32.gmra.mxu0 %v4436
        %v4724 = vpop.f32.mrf.mxu0
        %v4725 = vadd.f32 %v4580, %v4724
        %v4726 = vpop.f32.mrf.mxu0
        %4727 = vdwg.mxu0
        %4728 = vst [vmem:[%s164] sm:$0xff] %v4650
        %4729 = vst [vmem:[%s164 + $0x8] sm:$0xff] %v4655
        %4730 = vst [vmem:[%s164 + $0x10] sm:$0xff] %v4660
        %4731 = vst [vmem:[%s164 + $0x18] sm:$0xff] %v4665
        %4732 = vst [vmem:[%s164 + $0x20] sm:$0xff] %v4670
        %4733 = vst [vmem:[%s164 + $0x28] sm:$0xff] %v4675
        %4734 = vst [vmem:[%s164 + $0x30] sm:$0xff] %v4680
        %4735 = vst [vmem:[%s164 + $0x38] sm:$0xff] %v4685
        %4736 = vst [vmem:[%s164 + $0x40] sm:$0xff] %v4690
        %4737 = vst [vmem:[%s164 + $0x48] sm:$0xff] %v4695
        %4738 = vst [vmem:[%s164 + $0x50] sm:$0xff] %v4700
        %4739 = vst [vmem:[%s164 + $0x58] sm:$0xff] %v4705
        %4740 = vst [vmem:[%s164 + $0x60] sm:$0xff] %v4710
        %4741 = vst [vmem:[%s164 + $0x68] sm:$0xff] %v4715
        %4742 = vst [vmem:[%s164 + $0x70] sm:$0xff] %v4720
        %4743 = vst [vmem:[%s164 + $0x78] sm:$0xff] %v4725
        %s4744 = sand.u32 %s93, 1
        %s4745 = scalar_lea.sflag [#allocation3], %s4744
        %s4746 = sand.u32 %s93, 1
        %s4747 = smul.addr %s4746, 128
        %s4748 = scalar_lea.vmem [#allocation2], %s4747
        // Predicated region
        $region33: #{tpu_custom_call.1} parent=31 // pred_check
          %p4749 = pneg %p103
        $region34: #{tpu_custom_call.1} parent=31 // pred_check_branch
          %4751 = sbr.rel (%p4749) target = $region36
        $region35: #{tpu_custom_call.1} parent=31 // pred_region
          %s4752 = smul.u32 16, %s17
          %s4754 = ssub.s32 2048, 2048
          %4755 = vsyncadd %s4745, %s4754
          %s4756 = smul.addr %s4752, 128
          %s4757 = scalar_lea.hbm %s3, %s4756
          %s4758 = sshll.u32 %s4748, 4
          %s4759 = int_to_ptr.vmem [resolvable:$true] %s4758
          %4764 = dma.vmem_to_hbm [thread:$0]  %s4759, 2048, %s4757, %s4745, 128, 128, 8
        $region36: #{tpu_custom_call.1} parent=31 // pred_fallthru
          _
      $region32: #{tpu_custom_call.1} parent=5 // pred_fallthru
        _
      %p4765 = scmp.le.s32.totalorder 2, %s12
      // Predicated region
      $region37: #{tpu_custom_call.1} parent=5 // pred_check
        %p4766 = pneg %p4765
      $region38: #{tpu_custom_call.1} parent=5 // pred_check_branch
        %4768 = sbr.rel (%p4766) target = $region40
      $region39: #{tpu_custom_call.1} parent=5 // pred_region
        %s4769 = ssub.s32 %s12, 2
        // Predicated region
        $region41: #{tpu_custom_call.1} parent=39 // pred_check
          %p4770 = pneg %p109
        $region42: #{tpu_custom_call.1} parent=39 // pred_check_branch
          %4772 = sbr.rel (%p4770) target = $region44
        $region43: #{tpu_custom_call.1} parent=39 // pred_region
          %s4773 = sand.u32 %s94, 1
          %s4774 = scalar_lea.sflag [#allocation3], %s4773
          %s4775 = sand.u32 %s94, 1
          %s4776 = smul.addr %s4775, 128
          %s4777 = scalar_lea.vmem [#allocation2], %s4776
          %4778 = dma.done %s4774, 2048
        $region44: #{tpu_custom_call.1} parent=39 // pred_fallthru
          _
      $region40: #{tpu_custom_call.1} parent=5 // pred_fallthru
        _
    $region6: #{tpu_custom_call.1} parent=1 // loop_footer
      %s16 = sadd.s32 1, %s12
    $region7: #{tpu_custom_call.1} parent=1 // loop_footer_branch
      %11 = sbr.rel target = $region3
    $region8: #{tpu_custom_call.1} parent=1 // loop_exit
      _
    %4779 = vsyncpa [#allocation3], 1
    %s4780 = scalar_lea.sflag [#allocation3], 1
    %4781 = vsyncpa %s4780, 1

</llo_original>
